<compile_context>
chip_gen: v6e
topology: v6e:2x2x1
jax: 0.10.0
libtpu: 0.0.40
codegen_flags: <defaults>
</compile_context>

<pallas_src>
import functools

import jax
import jax.numpy as jnp
from jax.experimental import pallas as pl
from jax.experimental.pallas import tpu as pltpu


def convgru_kernel(h_ref, xc_ref, whv_ref, urz_ref, alpha_ref, o_ref, *, H, W):
    # h_ref:   (1, E, HW)   hidden state, channel-major (flattened NCHW)
    # xc_ref:  (1, 3E, HW)  precomputed [W_x(x)+b_r ; V_x(x)+b_z ; U_x(x)+b_ht]
    # whv_ref: (9, 2E, E)   bf16 per-tap fused [W_h ; V_h] filters (Cout, Cin)
    # urz_ref: (9, E, E)    bf16 per-tap U_rz filters
    # alpha_ref: (1,) SMEM  PReLU slope
    # o_ref:   (1, E, HW)   new hidden state (HW on the lane axis: lane-dense)
    E = h_ref.shape[1]
    HW = H * W
    f32 = jnp.float32
    bf16 = jnp.bfloat16

    alpha = alpha_ref[0]                       # scalar, read once from SMEM

    h = h_ref[0].astype(f32)                   # (E, HW)
    xc = xc_ref[0]                             # (3E, HW) f32, biases folded in

    # 3x3 'SAME'-padding edge-validity masks, hoisted to full (E, HW) shape
    # and shared by both h-path convolutions.
    pos = jax.lax.broadcasted_iota(jnp.int32, (E, HW), 1)
    col = pos % W
    top = pos >= W                             # row > 0     -> valid for dy=-1
    bot = pos < (H - 1) * W                    # row < H-1   -> valid for dy=+1
    lft = col > 0                              # valid for dx = -1
    rgt = col < (W - 1)                        # valid for dx = +1
    row_m = {-1: top, 0: None, 1: bot}
    col_m = {-1: lft, 0: None, 1: rgt}
    taps = [(-1, -1), (-1, 0), (-1, 1),
            (0, -1), (0, 0), (0, 1),
            (1, -1), (1, 0), (1, 1)]
    masks = {}
    for (dy, dx) in taps:
        rm, cm = row_m[dy], col_m[dx]
        if rm is None:
            masks[(dy, dx)] = cm
        elif cm is None:
            masks[(dy, dx)] = rm
        else:
            masks[(dy, dx)] = jnp.logical_and(rm, cm)

    def conv3x3(src_f32, w_ref):
        # Per-tap accumulation: lane-roll (XLU) + edge mask (VPU) + one small
        # bf16 MXU matmul per tap, f32 accumulate.  No (HW, 9*Cin) patch
        # matrix is ever materialized (no lane-offset concat stores).
        acc = jnp.dot(w_ref[4], src_f32.astype(bf16),          # centre tap
                      preferred_element_type=f32)
        for t, (dy, dx) in enumerate(taps):
            if dy == 0 and dx == 0:
                continue
            shift = (-(dy * W + dx)) % HW
            v = pltpu.roll(src_f32, shift=shift, axis=1)       # (Cin, HW) f32
            v = jnp.where(masks[(dy, dx)], v, 0.0).astype(bf16)
            acc = acc + jnp.dot(w_ref[t], v, preferred_element_type=f32)
        return acc                                             # (Cout, HW) f32

    def prelu(y):
        return jnp.where(y >= 0, y, alpha * y)

    # r, z gates:  prelu(W_h(h) + W_x(x) + b_r) ; prelu(V_h(h) + V_x(x) + b_z)
    rz = prelu(conv3x3(h, whv_ref) + xc[:2 * E])               # (2E, HW)
    r = rz[:E]
    z = rz[E:]

    # h_tilda = prelu(U_rz(r*h) + U_x(x) + b_h_tilda)
    h_tilda = prelu(conv3x3(r * h, urz_ref) + xc[2 * E:])      # (E, HW)

    # GRU blend; HW on the lane axis -> unmasked, lane-dense store.
    o_ref[0] = (z * h + (1.0 - z) * h_tilda).astype(o_ref.dtype)


def convgru_forward(h_nchw, x_nchw, params):
    """h_nchw: (N, E, H, W), x_nchw: (N, C, H, W) -> new h (N, E, H, W)."""
    N, E, H, W = h_nchw.shape
    C = x_nchw.shape[1]
    HW = H * W
    f32 = jnp.float32
    bf16 = jnp.bfloat16

    # x-path hoisted out of the kernel: one batched XLA conv with the three
    # x-filters fused along Cout and the per-gate biases folded in.  (x does
    # not depend on h, so it has no business inside the serial grid loop.)
    wx3 = jnp.concatenate([params["W_x"], params["V_x"], params["U_x"]],
                          axis=-1)                              # (3,3,C,3E)
    xc = jax.lax.conv_general_dilated(
        x_nchw.astype(bf16), wx3.astype(bf16),
        window_strides=(1, 1), padding="SAME",
        dimension_numbers=("NCHW", "HWIO", "NCHW"),
        preferred_element_type=f32)                             # (N, 3E, H, W)
    bias = jnp.concatenate([params["b_r"], params["b_z"],
                            params["b_h_tilda"]], axis=-1)      # (1, 3E)
    xc = (xc + bias.reshape(1, 3 * E, 1, 1)).reshape(N, 3 * E, HW)

    # Channel-major kernel layout: pure metadata reshapes, no HBM transposes.
    h_flat = h_nchw.reshape(N, E, HW)

    # Per-tap (Cout, Cin) weight matrices for the h-path convolutions.
    def per_tap(w_hwio):                       # (3,3,I,O) -> (9, O, I)
        i, o = w_hwio.shape[2], w_hwio.shape[3]
        return jnp.transpose(w_hwio.reshape(9, i, o), (0, 2, 1))

    whv = jnp.concatenate([per_tap(params["W_h"]), per_tap(params["V_h"])],
                          axis=1).astype(bf16)                  # (9, 2E, E)
    urz = per_tap(params["U_rz"]).astype(bf16)                  # (9, E, E)
    alpha = params["alpha"].reshape(1).astype(f32)              # (1,)

    kernel = functools.partial(convgru_kernel, H=H, W=W)

    out = pl.pallas_call(
        kernel,
        out_shape=jax.ShapeDtypeStruct((N, E, HW), h_nchw.dtype),
        grid=(N,),
        in_specs=[
            pl.BlockSpec((1, E, HW), lambda n: (n, 0, 0)),        # h
            pl.BlockSpec((1, 3 * E, HW), lambda n: (n, 0, 0)),    # xc
            pl.BlockSpec((9, 2 * E, E), lambda n: (0, 0, 0)),     # W_h||V_h taps
            pl.BlockSpec((9, E, E), lambda n: (0, 0, 0)),         # U_rz taps
            pl.BlockSpec(memory_space=pltpu.MemorySpace.SMEM),    # alpha
        ],
        out_specs=pl.BlockSpec((1, E, HW), lambda n: (n, 0, 0)),
        compiler_params=pltpu.CompilerParams(
            dimension_semantics=("parallel",)),
    )(h_flat, xc, whv, urz, alpha)

    # Free metadata reshape back to NCHW (no transpose, no HBM round trip).
    return out.reshape(N, E, H, W)


def convgru_reference(h_nchw, x_nchw, params):
    """Pure-JAX reference with matching numerics (bf16 conv operands)."""
    def conv(x_nhwc, w_hwio):
        return jax.lax.conv_general_dilated(
            x_nhwc.astype(jnp.bfloat16), w_hwio.astype(jnp.bfloat16),
            window_strides=(1, 1), padding="SAME",
            dimension_numbers=("NHWC", "HWIO", "NHWC"),
            preferred_element_type=jnp.float32)

    def prelu(y, a):
        return jnp.where(y >= 0, y, a * y)

    h = jnp.transpose(h_nchw, (0, 2, 3, 1)).astype(jnp.float32)
    x = jnp.transpose(x_nchw, (0, 2, 3, 1)).astype(jnp.float32)
    a = params["alpha"][0, 0]
    r = prelu(conv(h, params["W_h"]) + conv(x, params["W_x"])
              + params["b_r"][0], a)
    z = prelu(conv(h, params["V_h"]) + conv(x, params["V_x"])
              + params["b_z"][0], a)
    h_t = prelu(conv(r * h, params["U_rz"]) + conv(x, params["U_x"])
                + params["b_h_tilda"][0], a)
    h_new = z * h + (1.0 - z) * h_t
    return jnp.transpose(h_new, (0, 3, 1, 2))


def init_params(key, code_dim, embed_dim):
    ks = jax.random.split(key, 9)

    def w(k, cin, cout):
        return jax.random.normal(k, (3, 3, cin, cout), jnp.float32) * 0.05

    return {
        "W_h": w(ks[0], embed_dim, embed_dim),
        "W_x": w(ks[1], code_dim, embed_dim),
        "V_h": w(ks[2], embed_dim, embed_dim),
        "V_x": w(ks[3], code_dim, embed_dim),
        "U_rz": w(ks[4], embed_dim, embed_dim),
        "U_x": w(ks[5], code_dim, embed_dim),
        # nn.Parameter(torch.rand(E,1,1)/10) -> per-channel bias in [0, 0.1)
        "b_r": jax.random.uniform(ks[6], (1, embed_dim), jnp.float32) * 0.1,
        "b_z": jax.random.uniform(ks[7], (1, embed_dim), jnp.float32) * 0.1,
        "b_h_tilda": jax.random.uniform(ks[8], (1, embed_dim), jnp.float32) * 0.1,
        # nn.PReLU() default: single shared slope 0.25 (the PyTorch module
        # really does use PReLU on the r/z gates, not sigmoid).
        "alpha": jnp.full((1, 1), 0.25, jnp.float32),
    }


if __name__ == "__main__":
    N, code_dim, embed_dim, H, W = 2, 4, 32, 16, 16

    key = jax.random.PRNGKey(0)
    kh, kx, kp = jax.random.split(key, 3)
    h0 = jax.random.normal(kh, (N, embed_dim, H, W), jnp.float32)  # hidden
    x = jax.random.normal(kx, (N, code_dim, H, W), jnp.float32)    # input
    params = init_params(kp, code_dim, embed_dim)

    out = jax.block_until_ready(convgru_forward(h0, x, params))
    ref = jax.block_until_ready(convgru_reference(h0, x, params))

    assert out.shape == (N, embed_dim, H, W)
    max_err = float(jnp.max(jnp.abs(out - ref)))
    assert jnp.allclose(out, ref, atol=5e-3, rtol=5e-3), f"max_err={max_err}"

    print("KERNEL_OK")
</pallas_src>

<mosaic_0001>
module attributes {stable_mosaic.version = 11 : i64} {
  func.func @convgru_kernel(%arg0: i32, %arg1: memref<1x32x256xf32, #tpu.memory_space<vmem>>, %arg2: memref<1x96x256xf32, #tpu.memory_space<vmem>>, %arg3: memref<9x64x32xbf16, #tpu.memory_space<vmem>>, %arg4: memref<9x32x32xbf16, #tpu.memory_space<vmem>>, %arg5: memref<1xf32, #tpu.memory_space<smem>>, %arg6: memref<1x32x256xf32, #tpu.memory_space<vmem>>) attributes {dimension_semantics = [#tpu.dimension_semantics<parallel>], iteration_bounds = array<i64: 2>, scalar_prefetch = 0 : i64, scratch_operands = 0 : i64, tpu.core_type = #tpu.core_type<tc>, window_params = [{transform_indices = @transform_0, window_bounds = array<i64: 1, 32, 256>}, {transform_indices = @transform_1, window_bounds = array<i64: 1, 96, 256>}, {pipeline_mode = #tpu.pipeline_mode<synchronous>, transform_indices = @transform_2, window_bounds = array<i64: 9, 64, 32>}, {pipeline_mode = #tpu.pipeline_mode<synchronous>, transform_indices = @transform_3, window_bounds = array<i64: 9, 32, 32>}, {transform_indices = @transform_4, window_bounds = array<i64: 1>}, {transform_indices = @transform_5, window_bounds = array<i64: 1, 32, 256>}]} {
    %c0 = arith.constant 0 : index
    %0 = memref.load %arg5[%c0] : memref<1xf32, #tpu.memory_space<smem>>
    %c0_0 = arith.constant 0 : index
    %c0_1 = arith.constant 0 : index
    %c0_2 = arith.constant 0 : index
    %1 = vector.load %arg1[%c0_0, %c0_1, %c0_2] : memref<1x32x256xf32, #tpu.memory_space<vmem>>, vector<1x32x256xf32>
    %2 = vector.shape_cast %1 : vector<1x32x256xf32> to vector<32x256xf32>
    %c0_3 = arith.constant 0 : index
    %c0_4 = arith.constant 0 : index
    %c0_5 = arith.constant 0 : index
    %3 = vector.load %arg2[%c0_3, %c0_4, %c0_5] : memref<1x96x256xf32, #tpu.memory_space<vmem>>, vector<1x96x256xf32>
    %4 = vector.shape_cast %3 : vector<1x96x256xf32> to vector<96x256xf32>
    %5 = tpu.iota {dimensions = array<i32: 1>} : vector<32x256xi32>
    %c16_i32 = arith.constant 16 : i32
    %c0_i32 = arith.constant 0 : i32
    %6 = arith.cmpi eq, %c16_i32, %c0_i32 : i32
    %c1_i32 = arith.constant 1 : i32
    %7 = arith.select %6, %c1_i32, %c16_i32 : i32
    %8 = vector.broadcast %7 : i32 to vector<32x256xi32>
    %9 = arith.remsi %5, %8 : vector<32x256xi32>
    %c0_i32_6 = arith.constant 0 : i32
    %10 = vector.broadcast %c0_i32_6 : i32 to vector<32x256xi32>
    %11 = arith.cmpi ne, %9, %10 : vector<32x256xi32>
    %c0_i32_7 = arith.constant 0 : i32
    %12 = vector.broadcast %c0_i32_7 : i32 to vector<32x256xi32>
    %13 = arith.cmpi slt, %9, %12 : vector<32x256xi32>
    %c0_i32_8 = arith.constant 0 : i32
    %14 = arith.cmpi slt, %7, %c0_i32_8 : i32
    %15 = vector.broadcast %14 : i1 to vector<32x256xi1>
    %16 = vector.broadcast %15 : vector<32x256xi1> to vector<32x256xi1>
    %17 = arith.xori %13, %16 : vector<32x256xi1>
    %18 = arith.andi %17, %11 : vector<32x256xi1>
    %19 = vector.broadcast %7 : i32 to vector<32x256xi32>
    %20 = arith.addi %9, %19 : vector<32x256xi32>
    %21 = arith.select %18, %20, %9 : vector<32x256xi1>, vector<32x256xi32>
    %c16_i32_9 = arith.constant 16 : i32
    %22 = vector.broadcast %c16_i32_9 : i32 to vector<32x256xi32>
    %23 = arith.cmpi sge, %5, %22 : vector<32x256xi32>
    %c240_i32 = arith.constant 240 : i32
    %24 = vector.broadcast %c240_i32 : i32 to vector<32x256xi32>
    %25 = arith.cmpi slt, %5, %24 : vector<32x256xi32>
    %c0_i32_10 = arith.constant 0 : i32
    %26 = vector.broadcast %c0_i32_10 : i32 to vector<32x256xi32>
    %27 = arith.cmpi sgt, %21, %26 : vector<32x256xi32>
    %c15_i32 = arith.constant 15 : i32
    %28 = vector.broadcast %c15_i32 : i32 to vector<32x256xi32>
    %29 = arith.cmpi slt, %21, %28 : vector<32x256xi32>
    %30 = arith.andi %23, %27 : vector<32x256xi1>
    %31 = arith.andi %23, %29 : vector<32x256xi1>
    %32 = arith.andi %25, %27 : vector<32x256xi1>
    %33 = arith.andi %25, %29 : vector<32x256xi1>
    %c4 = arith.constant 4 : index
    %c0_11 = arith.constant 0 : index
    %c0_12 = arith.constant 0 : index
    %34 = vector.load %arg3[%c4, %c0_11, %c0_12] : memref<9x64x32xbf16, #tpu.memory_space<vmem>>, vector<1x64x32xbf16>
    %35 = vector.shape_cast %34 : vector<1x64x32xbf16> to vector<64x32xbf16>
    %36 = arith.truncf %2 : vector<32x256xf32> to vector<32x256xbf16>
    %cst = arith.constant dense<0.000000e+00> : vector<64x256xf32>
    %37 = tpu.matmul %35, %36, %cst {dimension_numbers = #tpu.dot_dimension_numbers<[1], [0], [0], [1], [0, 0, 1, 1], [], []>} : vector<64x32xbf16>, vector<32x256xbf16>, vector<64x256xf32> -> vector<64x256xf32>
    %c17_i32 = arith.constant 17 : i32
    %38 = tpu.dynamic_rotate %2 by %c17_i32 dim 1 : vector<32x256xf32>, i32 -> vector<32x256xf32>
    %cst_13 = arith.constant 0.000000e+00 : f32
    %39 = vector.broadcast %cst_13 : f32 to vector<32x256xf32>
    %40 = arith.select %30, %38, %39 : vector<32x256xi1>, vector<32x256xf32>
    %41 = arith.truncf %40 : vector<32x256xf32> to vector<32x256xbf16>
    %c0_14 = arith.constant 0 : index
    %c0_15 = arith.constant 0 : index
    %c0_16 = arith.constant 0 : index
    %42 = vector.load %arg3[%c0_14, %c0_15, %c0_16] : memref<9x64x32xbf16, #tpu.memory_space<vmem>>, vector<1x64x32xbf16>
    %43 = vector.shape_cast %42 : vector<1x64x32xbf16> to vector<64x32xbf16>
    %cst_17 = arith.constant dense<0.000000e+00> : vector<64x256xf32>
    %44 = tpu.matmul %43, %41, %cst_17 {dimension_numbers = #tpu.dot_dimension_numbers<[1], [0], [0], [1], [0, 0, 1, 1], [], []>} : vector<64x32xbf16>, vector<32x256xbf16>, vector<64x256xf32> -> vector<64x256xf32>
    %45 = arith.addf %37, %44 : vector<64x256xf32>
    %c16_i32_18 = arith.constant 16 : i32
    %46 = tpu.dynamic_rotate %2 by %c16_i32_18 dim 1 : vector<32x256xf32>, i32 -> vector<32x256xf32>
    %cst_19 = arith.constant 0.000000e+00 : f32
    %47 = vector.broadcast %cst_19 : f32 to vector<32x256xf32>
    %48 = arith.select %23, %46, %47 : vector<32x256xi1>, vector<32x256xf32>
    %49 = arith.truncf %48 : vector<32x256xf32> to vector<32x256xbf16>
    %c1 = arith.constant 1 : index
    %c0_20 = arith.constant 0 : index
    %c0_21 = arith.constant 0 : index
    %50 = vector.load %arg3[%c1, %c0_20, %c0_21] : memref<9x64x32xbf16, #tpu.memory_space<vmem>>, vector<1x64x32xbf16>
    %51 = vector.shape_cast %50 : vector<1x64x32xbf16> to vector<64x32xbf16>
    %cst_22 = arith.constant dense<0.000000e+00> : vector<64x256xf32>
    %52 = tpu.matmul %51, %49, %cst_22 {dimension_numbers = #tpu.dot_dimension_numbers<[1], [0], [0], [1], [0, 0, 1, 1], [], []>} : vector<64x32xbf16>, vector<32x256xbf16>, vector<64x256xf32> -> vector<64x256xf32>
    %53 = arith.addf %45, %52 : vector<64x256xf32>
    %c15_i32_23 = arith.constant 15 : i32
    %54 = tpu.dynamic_rotate %2 by %c15_i32_23 dim 1 : vector<32x256xf32>, i32 -> vector<32x256xf32>
    %cst_24 = arith.constant 0.000000e+00 : f32
    %55 = vector.broadcast %cst_24 : f32 to vector<32x256xf32>
    %56 = arith.select %31, %54, %55 : vector<32x256xi1>, vector<32x256xf32>
    %57 = arith.truncf %56 : vector<32x256xf32> to vector<32x256xbf16>
    %c2 = arith.constant 2 : index
    %c0_25 = arith.constant 0 : index
    %c0_26 = arith.constant 0 : index
    %58 = vector.load %arg3[%c2, %c0_25, %c0_26] : memref<9x64x32xbf16, #tpu.memory_space<vmem>>, vector<1x64x32xbf16>
    %59 = vector.shape_cast %58 : vector<1x64x32xbf16> to vector<64x32xbf16>
    %cst_27 = arith.constant dense<0.000000e+00> : vector<64x256xf32>
    %60 = tpu.matmul %59, %57, %cst_27 {dimension_numbers = #tpu.dot_dimension_numbers<[1], [0], [0], [1], [0, 0, 1, 1], [], []>} : vector<64x32xbf16>, vector<32x256xbf16>, vector<64x256xf32> -> vector<64x256xf32>
    %61 = arith.addf %53, %60 : vector<64x256xf32>
    %c1_i32_28 = arith.constant 1 : i32
    %62 = tpu.dynamic_rotate %2 by %c1_i32_28 dim 1 : vector<32x256xf32>, i32 -> vector<32x256xf32>
    %cst_29 = arith.constant 0.000000e+00 : f32
    %63 = vector.broadcast %cst_29 : f32 to vector<32x256xf32>
    %64 = arith.select %27, %62, %63 : vector<32x256xi1>, vector<32x256xf32>
    %65 = arith.truncf %64 : vector<32x256xf32> to vector<32x256xbf16>
    %c3 = arith.constant 3 : index
    %c0_30 = arith.constant 0 : index
    %c0_31 = arith.constant 0 : index
    %66 = vector.load %arg3[%c3, %c0_30, %c0_31] : memref<9x64x32xbf16, #tpu.memory_space<vmem>>, vector<1x64x32xbf16>
    %67 = vector.shape_cast %66 : vector<1x64x32xbf16> to vector<64x32xbf16>
    %cst_32 = arith.constant dense<0.000000e+00> : vector<64x256xf32>
    %68 = tpu.matmul %67, %65, %cst_32 {dimension_numbers = #tpu.dot_dimension_numbers<[1], [0], [0], [1], [0, 0, 1, 1], [], []>} : vector<64x32xbf16>, vector<32x256xbf16>, vector<64x256xf32> -> vector<64x256xf32>
    %69 = arith.addf %61, %68 : vector<64x256xf32>
    %c255_i32 = arith.constant 255 : i32
    %70 = tpu.dynamic_rotate %2 by %c255_i32 dim 1 : vector<32x256xf32>, i32 -> vector<32x256xf32>
    %cst_33 = arith.constant 0.000000e+00 : f32
    %71 = vector.broadcast %cst_33 : f32 to vector<32x256xf32>
    %72 = arith.select %29, %70, %71 : vector<32x256xi1>, vector<32x256xf32>
    %73 = arith.truncf %72 : vector<32x256xf32> to vector<32x256xbf16>
    %c5 = arith.constant 5 : index
    %c0_34 = arith.constant 0 : index
    %c0_35 = arith.constant 0 : index
    %74 = vector.load %arg3[%c5, %c0_34, %c0_35] : memref<9x64x32xbf16, #tpu.memory_space<vmem>>, vector<1x64x32xbf16>
    %75 = vector.shape_cast %74 : vector<1x64x32xbf16> to vector<64x32xbf16>
    %cst_36 = arith.constant dense<0.000000e+00> : vector<64x256xf32>
    %76 = tpu.matmul %75, %73, %cst_36 {dimension_numbers = #tpu.dot_dimension_numbers<[1], [0], [0], [1], [0, 0, 1, 1], [], []>} : vector<64x32xbf16>, vector<32x256xbf16>, vector<64x256xf32> -> vector<64x256xf32>
    %77 = arith.addf %69, %76 : vector<64x256xf32>
    %c241_i32 = arith.constant 241 : i32
    %78 = tpu.dynamic_rotate %2 by %c241_i32 dim 1 : vector<32x256xf32>, i32 -> vector<32x256xf32>
    %cst_37 = arith.constant 0.000000e+00 : f32
    %79 = vector.broadcast %cst_37 : f32 to vector<32x256xf32>
    %80 = arith.select %32, %78, %79 : vector<32x256xi1>, vector<32x256xf32>
    %81 = arith.truncf %80 : vector<32x256xf32> to vector<32x256xbf16>
    %c6 = arith.constant 6 : index
    %c0_38 = arith.constant 0 : index
    %c0_39 = arith.constant 0 : index
    %82 = vector.load %arg3[%c6, %c0_38, %c0_39] : memref<9x64x32xbf16, #tpu.memory_space<vmem>>, vector<1x64x32xbf16>
    %83 = vector.shape_cast %82 : vector<1x64x32xbf16> to vector<64x32xbf16>
    %cst_40 = arith.constant dense<0.000000e+00> : vector<64x256xf32>
    %84 = tpu.matmul %83, %81, %cst_40 {dimension_numbers = #tpu.dot_dimension_numbers<[1], [0], [0], [1], [0, 0, 1, 1], [], []>} : vector<64x32xbf16>, vector<32x256xbf16>, vector<64x256xf32> -> vector<64x256xf32>
    %85 = arith.addf %77, %84 : vector<64x256xf32>
    %c240_i32_41 = arith.constant 240 : i32
    %86 = tpu.dynamic_rotate %2 by %c240_i32_41 dim 1 : vector<32x256xf32>, i32 -> vector<32x256xf32>
    %cst_42 = arith.constant 0.000000e+00 : f32
    %87 = vector.broadcast %cst_42 : f32 to vector<32x256xf32>
    %88 = arith.select %25, %86, %87 : vector<32x256xi1>, vector<32x256xf32>
    %89 = arith.truncf %88 : vector<32x256xf32> to vector<32x256xbf16>
    %c7 = arith.constant 7 : index
    %c0_43 = arith.constant 0 : index
    %c0_44 = arith.constant 0 : index
    %90 = vector.load %arg3[%c7, %c0_43, %c0_44] : memref<9x64x32xbf16, #tpu.memory_space<vmem>>, vector<1x64x32xbf16>
    %91 = vector.shape_cast %90 : vector<1x64x32xbf16> to vector<64x32xbf16>
    %cst_45 = arith.constant dense<0.000000e+00> : vector<64x256xf32>
    %92 = tpu.matmul %91, %89, %cst_45 {dimension_numbers = #tpu.dot_dimension_numbers<[1], [0], [0], [1], [0, 0, 1, 1], [], []>} : vector<64x32xbf16>, vector<32x256xbf16>, vector<64x256xf32> -> vector<64x256xf32>
    %93 = arith.addf %85, %92 : vector<64x256xf32>
    %c239_i32 = arith.constant 239 : i32
    %94 = tpu.dynamic_rotate %2 by %c239_i32 dim 1 : vector<32x256xf32>, i32 -> vector<32x256xf32>
    %cst_46 = arith.constant 0.000000e+00 : f32
    %95 = vector.broadcast %cst_46 : f32 to vector<32x256xf32>
    %96 = arith.select %33, %94, %95 : vector<32x256xi1>, vector<32x256xf32>
    %97 = arith.truncf %96 : vector<32x256xf32> to vector<32x256xbf16>
    %c8 = arith.constant 8 : index
    %c0_47 = arith.constant 0 : index
    %c0_48 = arith.constant 0 : index
    %98 = vector.load %arg3[%c8, %c0_47, %c0_48] : memref<9x64x32xbf16, #tpu.memory_space<vmem>>, vector<1x64x32xbf16>
    %99 = vector.shape_cast %98 : vector<1x64x32xbf16> to vector<64x32xbf16>
    %cst_49 = arith.constant dense<0.000000e+00> : vector<64x256xf32>
    %100 = tpu.matmul %99, %97, %cst_49 {dimension_numbers = #tpu.dot_dimension_numbers<[1], [0], [0], [1], [0, 0, 1, 1], [], []>} : vector<64x32xbf16>, vector<32x256xbf16>, vector<64x256xf32> -> vector<64x256xf32>
    %101 = arith.addf %93, %100 : vector<64x256xf32>
    %102 = vector.extract_strided_slice %4 {offsets = [0, 0], sizes = [64, 256], strides = [1, 1]} : vector<96x256xf32> to vector<64x256xf32>
    %103 = arith.addf %101, %102 : vector<64x256xf32>
    %cst_50 = arith.constant 0.000000e+00 : f32
    %104 = vector.broadcast %cst_50 : f32 to vector<64x256xf32>
    %105 = arith.cmpf oge, %103, %104 : vector<64x256xf32>
    %106 = vector.broadcast %0 : f32 to vector<64x256xf32>
    %107 = arith.mulf %106, %103 : vector<64x256xf32>
    %108 = arith.select %105, %103, %107 : vector<64x256xi1>, vector<64x256xf32>
    %109 = vector.extract_strided_slice %108 {offsets = [0, 0], sizes = [32, 256], strides = [1, 1]} : vector<64x256xf32> to vector<32x256xf32>
    %110 = vector.extract_strided_slice %108 {offsets = [32, 0], sizes = [32, 256], strides = [1, 1]} : vector<64x256xf32> to vector<32x256xf32>
    %111 = arith.mulf %109, %2 : vector<32x256xf32>
    %c4_51 = arith.constant 4 : index
    %c0_52 = arith.constant 0 : index
    %c0_53 = arith.constant 0 : index
    %112 = vector.load %arg4[%c4_51, %c0_52, %c0_53] : memref<9x32x32xbf16, #tpu.memory_space<vmem>>, vector<1x32x32xbf16>
    %113 = vector.shape_cast %112 : vector<1x32x32xbf16> to vector<32x32xbf16>
    %114 = arith.truncf %111 : vector<32x256xf32> to vector<32x256xbf16>
    %cst_54 = arith.constant dense<0.000000e+00> : vector<32x256xf32>
    %115 = tpu.matmul %113, %114, %cst_54 {dimension_numbers = #tpu.dot_dimension_numbers<[1], [0], [0], [1], [0, 0, 1, 1], [], []>} : vector<32x32xbf16>, vector<32x256xbf16>, vector<32x256xf32> -> vector<32x256xf32>
    %c17_i32_55 = arith.constant 17 : i32
    %116 = tpu.dynamic_rotate %111 by %c17_i32_55 dim 1 : vector<32x256xf32>, i32 -> vector<32x256xf32>
    %cst_56 = arith.constant 0.000000e+00 : f32
    %117 = vector.broadcast %cst_56 : f32 to vector<32x256xf32>
    %118 = arith.select %30, %116, %117 : vector<32x256xi1>, vector<32x256xf32>
    %119 = arith.truncf %118 : vector<32x256xf32> to vector<32x256xbf16>
    %c0_57 = arith.constant 0 : index
    %c0_58 = arith.constant 0 : index
    %c0_59 = arith.constant 0 : index
    %120 = vector.load %arg4[%c0_57, %c0_58, %c0_59] : memref<9x32x32xbf16, #tpu.memory_space<vmem>>, vector<1x32x32xbf16>
    %121 = vector.shape_cast %120 : vector<1x32x32xbf16> to vector<32x32xbf16>
    %cst_60 = arith.constant dense<0.000000e+00> : vector<32x256xf32>
    %122 = tpu.matmul %121, %119, %cst_60 {dimension_numbers = #tpu.dot_dimension_numbers<[1], [0], [0], [1], [0, 0, 1, 1], [], []>} : vector<32x32xbf16>, vector<32x256xbf16>, vector<32x256xf32> -> vector<32x256xf32>
    %123 = arith.addf %115, %122 : vector<32x256xf32>
    %c16_i32_61 = arith.constant 16 : i32
    %124 = tpu.dynamic_rotate %111 by %c16_i32_61 dim 1 : vector<32x256xf32>, i32 -> vector<32x256xf32>
    %cst_62 = arith.constant 0.000000e+00 : f32
    %125 = vector.broadcast %cst_62 : f32 to vector<32x256xf32>
    %126 = arith.select %23, %124, %125 : vector<32x256xi1>, vector<32x256xf32>
    %127 = arith.truncf %126 : vector<32x256xf32> to vector<32x256xbf16>
    %c1_63 = arith.constant 1 : index
    %c0_64 = arith.constant 0 : index
    %c0_65 = arith.constant 0 : index
    %128 = vector.load %arg4[%c1_63, %c0_64, %c0_65] : memref<9x32x32xbf16, #tpu.memory_space<vmem>>, vector<1x32x32xbf16>
    %129 = vector.shape_cast %128 : vector<1x32x32xbf16> to vector<32x32xbf16>
    %cst_66 = arith.constant dense<0.000000e+00> : vector<32x256xf32>
    %130 = tpu.matmul %129, %127, %cst_66 {dimension_numbers = #tpu.dot_dimension_numbers<[1], [0], [0], [1], [0, 0, 1, 1], [], []>} : vector<32x32xbf16>, vector<32x256xbf16>, vector<32x256xf32> -> vector<32x256xf32>
    %131 = arith.addf %123, %130 : vector<32x256xf32>
    %c15_i32_67 = arith.constant 15 : i32
    %132 = tpu.dynamic_rotate %111 by %c15_i32_67 dim 1 : vector<32x256xf32>, i32 -> vector<32x256xf32>
    %cst_68 = arith.constant 0.000000e+00 : f32
    %133 = vector.broadcast %cst_68 : f32 to vector<32x256xf32>
    %134 = arith.select %31, %132, %133 : vector<32x256xi1>, vector<32x256xf32>
    %135 = arith.truncf %134 : vector<32x256xf32> to vector<32x256xbf16>
    %c2_69 = arith.constant 2 : index
    %c0_70 = arith.constant 0 : index
    %c0_71 = arith.constant 0 : index
    %136 = vector.load %arg4[%c2_69, %c0_70, %c0_71] : memref<9x32x32xbf16, #tpu.memory_space<vmem>>, vector<1x32x32xbf16>
    %137 = vector.shape_cast %136 : vector<1x32x32xbf16> to vector<32x32xbf16>
    %cst_72 = arith.constant dense<0.000000e+00> : vector<32x256xf32>
    %138 = tpu.matmul %137, %135, %cst_72 {dimension_numbers = #tpu.dot_dimension_numbers<[1], [0], [0], [1], [0, 0, 1, 1], [], []>} : vector<32x32xbf16>, vector<32x256xbf16>, vector<32x256xf32> -> vector<32x256xf32>
    %139 = arith.addf %131, %138 : vector<32x256xf32>
    %c1_i32_73 = arith.constant 1 : i32
    %140 = tpu.dynamic_rotate %111 by %c1_i32_73 dim 1 : vector<32x256xf32>, i32 -> vector<32x256xf32>
    %cst_74 = arith.constant 0.000000e+00 : f32
    %141 = vector.broadcast %cst_74 : f32 to vector<32x256xf32>
    %142 = arith.select %27, %140, %141 : vector<32x256xi1>, vector<32x256xf32>
    %143 = arith.truncf %142 : vector<32x256xf32> to vector<32x256xbf16>
    %c3_75 = arith.constant 3 : index
    %c0_76 = arith.constant 0 : index
    %c0_77 = arith.constant 0 : index
    %144 = vector.load %arg4[%c3_75, %c0_76, %c0_77] : memref<9x32x32xbf16, #tpu.memory_space<vmem>>, vector<1x32x32xbf16>
    %145 = vector.shape_cast %144 : vector<1x32x32xbf16> to vector<32x32xbf16>
    %cst_78 = arith.constant dense<0.000000e+00> : vector<32x256xf32>
    %146 = tpu.matmul %145, %143, %cst_78 {dimension_numbers = #tpu.dot_dimension_numbers<[1], [0], [0], [1], [0, 0, 1, 1], [], []>} : vector<32x32xbf16>, vector<32x256xbf16>, vector<32x256xf32> -> vector<32x256xf32>
    %147 = arith.addf %139, %146 : vector<32x256xf32>
    %c255_i32_79 = arith.constant 255 : i32
    %148 = tpu.dynamic_rotate %111 by %c255_i32_79 dim 1 : vector<32x256xf32>, i32 -> vector<32x256xf32>
    %cst_80 = arith.constant 0.000000e+00 : f32
    %149 = vector.broadcast %cst_80 : f32 to vector<32x256xf32>
    %150 = arith.select %29, %148, %149 : vector<32x256xi1>, vector<32x256xf32>
    %151 = arith.truncf %150 : vector<32x256xf32> to vector<32x256xbf16>
    %c5_81 = arith.constant 5 : index
    %c0_82 = arith.constant 0 : index
    %c0_83 = arith.constant 0 : index
    %152 = vector.load %arg4[%c5_81, %c0_82, %c0_83] : memref<9x32x32xbf16, #tpu.memory_space<vmem>>, vector<1x32x32xbf16>
    %153 = vector.shape_cast %152 : vector<1x32x32xbf16> to vector<32x32xbf16>
    %cst_84 = arith.constant dense<0.000000e+00> : vector<32x256xf32>
    %154 = tpu.matmul %153, %151, %cst_84 {dimension_numbers = #tpu.dot_dimension_numbers<[1], [0], [0], [1], [0, 0, 1, 1], [], []>} : vector<32x32xbf16>, vector<32x256xbf16>, vector<32x256xf32> -> vector<32x256xf32>
    %155 = arith.addf %147, %154 : vector<32x256xf32>
    %c241_i32_85 = arith.constant 241 : i32
    %156 = tpu.dynamic_rotate %111 by %c241_i32_85 dim 1 : vector<32x256xf32>, i32 -> vector<32x256xf32>
    %cst_86 = arith.constant 0.000000e+00 : f32
    %157 = vector.broadcast %cst_86 : f32 to vector<32x256xf32>
    %158 = arith.select %32, %156, %157 : vector<32x256xi1>, vector<32x256xf32>
    %159 = arith.truncf %158 : vector<32x256xf32> to vector<32x256xbf16>
    %c6_87 = arith.constant 6 : index
    %c0_88 = arith.constant 0 : index
    %c0_89 = arith.constant 0 : index
    %160 = vector.load %arg4[%c6_87, %c0_88, %c0_89] : memref<9x32x32xbf16, #tpu.memory_space<vmem>>, vector<1x32x32xbf16>
    %161 = vector.shape_cast %160 : vector<1x32x32xbf16> to vector<32x32xbf16>
    %cst_90 = arith.constant dense<0.000000e+00> : vector<32x256xf32>
    %162 = tpu.matmul %161, %159, %cst_90 {dimension_numbers = #tpu.dot_dimension_numbers<[1], [0], [0], [1], [0, 0, 1, 1], [], []>} : vector<32x32xbf16>, vector<32x256xbf16>, vector<32x256xf32> -> vector<32x256xf32>
    %163 = arith.addf %155, %162 : vector<32x256xf32>
    %c240_i32_91 = arith.constant 240 : i32
    %164 = tpu.dynamic_rotate %111 by %c240_i32_91 dim 1 : vector<32x256xf32>, i32 -> vector<32x256xf32>
    %cst_92 = arith.constant 0.000000e+00 : f32
    %165 = vector.broadcast %cst_92 : f32 to vector<32x256xf32>
    %166 = arith.select %25, %164, %165 : vector<32x256xi1>, vector<32x256xf32>
    %167 = arith.truncf %166 : vector<32x256xf32> to vector<32x256xbf16>
    %c7_93 = arith.constant 7 : index
    %c0_94 = arith.constant 0 : index
    %c0_95 = arith.constant 0 : index
    %168 = vector.load %arg4[%c7_93, %c0_94, %c0_95] : memref<9x32x32xbf16, #tpu.memory_space<vmem>>, vector<1x32x32xbf16>
    %169 = vector.shape_cast %168 : vector<1x32x32xbf16> to vector<32x32xbf16>
    %cst_96 = arith.constant dense<0.000000e+00> : vector<32x256xf32>
    %170 = tpu.matmul %169, %167, %cst_96 {dimension_numbers = #tpu.dot_dimension_numbers<[1], [0], [0], [1], [0, 0, 1, 1], [], []>} : vector<32x32xbf16>, vector<32x256xbf16>, vector<32x256xf32> -> vector<32x256xf32>
    %171 = arith.addf %163, %170 : vector<32x256xf32>
    %c239_i32_97 = arith.constant 239 : i32
    %172 = tpu.dynamic_rotate %111 by %c239_i32_97 dim 1 : vector<32x256xf32>, i32 -> vector<32x256xf32>
    %cst_98 = arith.constant 0.000000e+00 : f32
    %173 = vector.broadcast %cst_98 : f32 to vector<32x256xf32>
    %174 = arith.select %33, %172, %173 : vector<32x256xi1>, vector<32x256xf32>
    %175 = arith.truncf %174 : vector<32x256xf32> to vector<32x256xbf16>
    %c8_99 = arith.constant 8 : index
    %c0_100 = arith.constant 0 : index
    %c0_101 = arith.constant 0 : index
    %176 = vector.load %arg4[%c8_99, %c0_100, %c0_101] : memref<9x32x32xbf16, #tpu.memory_space<vmem>>, vector<1x32x32xbf16>
    %177 = vector.shape_cast %176 : vector<1x32x32xbf16> to vector<32x32xbf16>
    %cst_102 = arith.constant dense<0.000000e+00> : vector<32x256xf32>
    %178 = tpu.matmul %177, %175, %cst_102 {dimension_numbers = #tpu.dot_dimension_numbers<[1], [0], [0], [1], [0, 0, 1, 1], [], []>} : vector<32x32xbf16>, vector<32x256xbf16>, vector<32x256xf32> -> vector<32x256xf32>
    %179 = arith.addf %171, %178 : vector<32x256xf32>
    %180 = vector.extract_strided_slice %4 {offsets = [64, 0], sizes = [32, 256], strides = [1, 1]} : vector<96x256xf32> to vector<32x256xf32>
    %181 = arith.addf %179, %180 : vector<32x256xf32>
    %cst_103 = arith.constant 0.000000e+00 : f32
    %182 = vector.broadcast %cst_103 : f32 to vector<32x256xf32>
    %183 = arith.cmpf oge, %181, %182 : vector<32x256xf32>
    %184 = vector.broadcast %0 : f32 to vector<32x256xf32>
    %185 = arith.mulf %184, %181 : vector<32x256xf32>
    %186 = arith.select %183, %181, %185 : vector<32x256xi1>, vector<32x256xf32>
    %187 = arith.mulf %110, %2 : vector<32x256xf32>
    %cst_104 = arith.constant 1.000000e+00 : f32
    %188 = vector.broadcast %cst_104 : f32 to vector<32x256xf32>
    %189 = arith.subf %188, %110 : vector<32x256xf32>
    %190 = arith.mulf %189, %186 : vector<32x256xf32>
    %191 = arith.addf %187, %190 : vector<32x256xf32>
    %c0_105 = arith.constant 0 : index
    %c0_106 = arith.constant 0 : index
    %c0_107 = arith.constant 0 : index
    %192 = vector.load %arg6[%c0_105, %c0_106, %c0_107] : memref<1x32x256xf32, #tpu.memory_space<vmem>>, vector<1x32x256xf32>
    %193 = vector.shape_cast %192 : vector<1x32x256xf32> to vector<32x256xf32>
    %194 = vector.shape_cast %191 : vector<32x256xf32> to vector<1x32x256xf32>
    tpu.vector_store %arg6[%c0_105, %c0_106, %c0_107], %194 {strides = array<i32>} : memref<1x32x256xf32, #tpu.memory_space<vmem>>, vector<1x32x256xf32>,
    return
  }
  func.func @transform_0(%arg0: i32) -> (i32, i32, i32) {
    %c0_i32 = arith.constant 0 : i32
    %c0_i32_0 = arith.constant 0 : i32
    %c0_i32_1 = arith.constant 0 : i32
    return %arg0, %c0_i32, %c0_i32_0 : i32, i32, i32
  }
  func.func @transform_1(%arg0: i32) -> (i32, i32, i32) {
    %c0_i32 = arith.constant 0 : i32
    %c0_i32_0 = arith.constant 0 : i32
    %c0_i32_1 = arith.constant 0 : i32
    return %arg0, %c0_i32, %c0_i32_0 : i32, i32, i32
  }
  func.func @transform_2(%arg0: i32) -> (i32, i32, i32) {
    %c0_i32 = arith.constant 0 : i32
    %c0_i32_0 = arith.constant 0 : i32
    %c0_i32_1 = arith.constant 0 : i32
    %c0_i32_2 = arith.constant 0 : i32
    return %c0_i32, %c0_i32_0, %c0_i32_1 : i32, i32, i32
  }
  func.func @transform_3(%arg0: i32) -> (i32, i32, i32) {
    %c0_i32 = arith.constant 0 : i32
    %c0_i32_0 = arith.constant 0 : i32
    %c0_i32_1 = arith.constant 0 : i32
    %c0_i32_2 = arith.constant 0 : i32
    return %c0_i32, %c0_i32_0, %c0_i32_1 : i32, i32, i32
  }
  func.func @transform_4(%arg0: i32) -> i32 {
    %c0_i32 = arith.constant 0 : i32
    %c0_i32_0 = arith.constant 0 : i32
    return %c0_i32 : i32
  }
  func.func @transform_5(%arg0: i32) -> (i32, i32, i32) {
    %c0_i32 = arith.constant 0 : i32
    %c0_i32_0 = arith.constant 0 : i32
    %c0_i32_1 = arith.constant 0 : i32
    return %arg0, %c0_i32, %c0_i32_0 : i32, i32, i32
  }
}

</mosaic_0001>

<llo_original>
// kernel: tpu_custom_call.1
$region0: #{tpu_custom_call.1}
  #allocation0 [shape = 'u32[]', space=smem, size = 0x4, offset = 0x4, fixed_abs, tag = 'smem constant byte address 0x4 - core index']
  #allocation1 [shape = 'u32[144,128]{1,0:T(1,128)}', space=vmem, size = 0x12000, scoped, tag = 'internal scratch']
  #allocation2 [shape = 'f32[1]{0:T(128)S(6)}', space=smem, size = 0x200, scoped, tag = 'scoped memory for tpu_custom_call.1']
  %s0 = inlined_call_operand.hbm [shape: f32[2,32,256], index: 0, kind: input, shape index: {}]
  %s1 = inlined_call_operand.vmem [shape: f32[2,96,256], index: 1, kind: input, shape index: {}]
  %s2 = inlined_call_operand.vmem [shape: bf16[9,64,32], index: 2, kind: input, shape index: {}]
  %s3 = inlined_call_operand.hbm [shape: bf16[9,32,32], index: 3, kind: input, shape index: {}]
  %s4 = inlined_call_operand.<no memory space> [shape: f32[1], index: 4, kind: input, shape index: {}]
  %s5 = inlined_call_operand.hbm [shape: f32[2,32,256], index: 5, kind: output, shape index: {}]
  %s6 = sld [smem:[#allocation0]]
  $region61: #{tpu_custom_call.1} parent=0
    _
  %s8 = ssub.s32 1, %s6
  %s9 = scalar_select 0, %s8, %s6
  %10 = sst [smem:[#allocation2]] %s4
  $region1: #{tpu_custom_call.1} parent=0
    #allocation3 [shape = 'u8[65536]{0}', space=vmem, size = 0x10000, scoped, tag = 'input window, operand 0']
    #allocation4 [shape = 's32[2]{0}', space=sflag, size = 0x8, scoped, tag = 'scoped memory for tpu_custom_call.1']
    #allocation5 [shape = 's32[2]{0}', space=sflag, size = 0x8, scoped, tag = 'scoped memory for tpu_custom_call.1']
    #allocation6 [shape = 'u8[73728]{0}', space=vmem, size = 0x12000, scoped, tag = 'input window, operand 3, single buffered']
    #allocation7 [shape = 's32[1]{0}', space=sflag, size = 0x4, scoped, tag = 'scoped memory for tpu_custom_call.1']
    #allocation8 [shape = 'u8[65536]{0}', space=vmem, size = 0x10000, scoped, tag = 'output window, operand 0']
    %11 = vsyncpa [#allocation4], 0
    %s12 = scalar_lea.sflag [#allocation4], 1
    %13 = vsyncpa %s12, 0
    %14 = vsyncpa [#allocation7], 0
    %15 = vsyncpa [#allocation5], 0
    %s16 = scalar_lea.sflag [#allocation5], 1
    %17 = vsyncpa %s16, 0
    loop: start=0, step=1, limit=4
    $region2: #{tpu_custom_call.1} parent=1 // loop_pre_header
      _
    $region3: #{tpu_custom_call.1} parent=1 // loop_header
      %s19 = sphi 0, %s23
      %p20 = scmp.ge.s32.totalorder %s19, 4
      %s29 = sphi 0, %s31
      %s32 = sphi 0, %s29
      %s33 = sphi 0, %s32
      %s49 = sphi 0, %s33
      %s55 = sphi 0, %s57
      %s58 = sphi 0, %s55
      %s59 = sphi 0, %s58
      %s75 = sphi 0, %s59
      %s79 = sphi 0, %s79
      %s81 = sphi 0, %s79
      %s82 = sphi 0, %s81
      %s96 = sphi 0, %s82
      %s100 = sphi 0, %s100
      %s102 = sphi 0, %s100
      %s103 = sphi 0, %s102
      %s117 = sphi 0, %s103
      %s121 = sphi 0, %s121
      %s123 = sphi 0, %s121
      %s124 = sphi 0, %s123
      %s138 = sphi 0, %s124
      %s144 = sphi 0, %s146
      %s147 = sphi 0, %s144
      %s148 = sphi 0, %s147
      %s164 = sphi 0, %s148
    $region4: #{tpu_custom_call.1} parent=1 // loop_header_branch
      %22 = sbr.rel (%p20) target = $region8
    $region5: #{tpu_custom_call.1} parent=1 // loop_body
      %s24 = ssub.s32 %s19, 1
      %s25 = ssub.s32 %s19, 2
      %s26 = sadd.s32 %s19, 1
      %s27 = ssub.s32 %s19, %s26
      %p28 = scmp.eq.s32.totalorder %s27, 0
      %s30 = sadd.s32 %s29, 1
      %s31 = scalar_select %p28, %s29, %s30
      %p34 = pneg %p28
      %p35 = scmp.eq.s32.totalorder %s19, 1
      %p36 = por %p34, %p35
      %p37 = scmp.ne.s32.totalorder %s29, %s32
      %p38 = scmp.eq.s32.totalorder %s19, 0
      %p39 = por %p37, %p38
      %p40 = scmp.ne.s32.totalorder %s29, %s32
      %p41 = scmp.eq.s32.totalorder %s24, 1
      %p42 = por %p40, %p41
      %p43 = scmp.ne.s32.totalorder %s32, %s33
      %p44 = scmp.eq.s32.totalorder %s24, 0
      %p45 = por %p43, %p44
      %p46 = scmp.ne.s32.totalorder %s32, %s33
      %p47 = scmp.eq.s32.totalorder %s25, 1
      %p48 = por %p46, %p47
      %p50 = scmp.ne.s32.totalorder %s33, %s49
      %p51 = scmp.eq.s32.totalorder %s25, 0
      %p52 = por %p50, %p51
      %s53 = ssub.s32 %s19, %s26
      %p54 = scmp.eq.s32.totalorder %s53, 0
      %s56 = sadd.s32 %s55, 1
      %s57 = scalar_select %p54, %s55, %s56
      %p60 = pneg %p54
      %p61 = scmp.eq.s32.totalorder %s19, 1
      %p62 = por %p60, %p61
      %p63 = scmp.ne.s32.totalorder %s55, %s58
      %p64 = scmp.eq.s32.totalorder %s19, 0
      %p65 = por %p63, %p64
      %p66 = scmp.ne.s32.totalorder %s55, %s58
      %p67 = scmp.eq.s32.totalorder %s24, 1
      %p68 = por %p66, %p67
      %p69 = scmp.ne.s32.totalorder %s58, %s59
      %p70 = scmp.eq.s32.totalorder %s24, 0
      %p71 = por %p69, %p70
      %p72 = scmp.ne.s32.totalorder %s58, %s59
      %p73 = scmp.eq.s32.totalorder %s25, 1
      %p74 = por %p72, %p73
      %p76 = scmp.ne.s32.totalorder %s59, %s75
      %p77 = scmp.eq.s32.totalorder %s25, 0
      %p78 = por %p76, %p77
      %s80 = sadd.s32 %s79, 1
      %p83 = scmp.eq.s32.totalorder %s19, 1
      %p84 = scmp.ne.s32.totalorder %s79, %s81
      %p85 = scmp.eq.s32.totalorder %s19, 0
      %p86 = por %p84, %p85
      %p87 = scmp.ne.s32.totalorder %s79, %s81
      %p88 = scmp.eq.s32.totalorder %s24, 1
      %p89 = por %p87, %p88
      %p90 = scmp.ne.s32.totalorder %s81, %s82
      %p91 = scmp.eq.s32.totalorder %s24, 0
      %p92 = por %p90, %p91
      %p93 = scmp.ne.s32.totalorder %s81, %s82
      %p94 = scmp.eq.s32.totalorder %s25, 1
      %p95 = por %p93, %p94
      %p97 = scmp.ne.s32.totalorder %s82, %s96
      %p98 = scmp.eq.s32.totalorder %s25, 0
      %p99 = por %p97, %p98
      %s101 = sadd.s32 %s100, 1
      %p104 = scmp.eq.s32.totalorder %s19, 1
      %p105 = scmp.ne.s32.totalorder %s100, %s102
      %p106 = scmp.eq.s32.totalorder %s19, 0
      %p107 = por %p105, %p106
      %p108 = scmp.ne.s32.totalorder %s100, %s102
      %p109 = scmp.eq.s32.totalorder %s24, 1
      %p110 = por %p108, %p109
      %p111 = scmp.ne.s32.totalorder %s102, %s103
      %p112 = scmp.eq.s32.totalorder %s24, 0
      %p113 = por %p111, %p112
      %p114 = scmp.ne.s32.totalorder %s102, %s103
      %p115 = scmp.eq.s32.totalorder %s25, 1
      %p116 = por %p114, %p115
      %p118 = scmp.ne.s32.totalorder %s103, %s117
      %p119 = scmp.eq.s32.totalorder %s25, 0
      %p120 = por %p118, %p119
      %s122 = sadd.s32 %s121, 1
      %p125 = scmp.eq.s32.totalorder %s19, 1
      %p126 = scmp.ne.s32.totalorder %s121, %s123
      %p127 = scmp.eq.s32.totalorder %s19, 0
      %p128 = por %p126, %p127
      %p129 = scmp.ne.s32.totalorder %s121, %s123
      %p130 = scmp.eq.s32.totalorder %s24, 1
      %p131 = por %p129, %p130
      %p132 = scmp.ne.s32.totalorder %s123, %s124
      %p133 = scmp.eq.s32.totalorder %s24, 0
      %p134 = por %p132, %p133
      %p135 = scmp.ne.s32.totalorder %s123, %s124
      %p136 = scmp.eq.s32.totalorder %s25, 1
      %p137 = por %p135, %p136
      %p139 = scmp.ne.s32.totalorder %s124, %s138
      %p140 = scmp.eq.s32.totalorder %s25, 0
      %p141 = por %p139, %p140
      %s142 = ssub.s32 %s19, %s26
      %p143 = scmp.eq.s32.totalorder %s142, 0
      %s145 = sadd.s32 %s144, 1
      %s146 = scalar_select %p143, %s144, %s145
      %p149 = pneg %p143
      %p150 = scmp.eq.s32.totalorder %s19, 1
      %p151 = por %p149, %p150
      %p152 = scmp.ne.s32.totalorder %s144, %s147
      %p153 = scmp.eq.s32.totalorder %s19, 0
      %p154 = por %p152, %p153
      %p155 = scmp.ne.s32.totalorder %s144, %s147
      %p156 = scmp.eq.s32.totalorder %s24, 1
      %p157 = por %p155, %p156
      %p158 = scmp.ne.s32.totalorder %s147, %s148
      %p159 = scmp.eq.s32.totalorder %s24, 0
      %p160 = por %p158, %p159
      %p161 = scmp.ne.s32.totalorder %s147, %s148
      %p162 = scmp.eq.s32.totalorder %s25, 1
      %p163 = por %p161, %p162
      %p165 = scmp.ne.s32.totalorder %s148, %s164
      %p166 = scmp.eq.s32.totalorder %s25, 0
      %p167 = por %p165, %p166
      %p168 = scmp.le.s32.totalorder 1, %s19
      %p169 = scmp.lt.s32.totalorder %s19, 3
      %p170 = pnand %p168, %p169
      %p171 = pneg %p170
      // Predicated region
      $region9: #{tpu_custom_call.1} parent=5 // pred_check
        _
      $region10: #{tpu_custom_call.1} parent=5 // pred_check_branch
        %173 = sbr.rel (%p170) target = $region12
      $region11: #{tpu_custom_call.1} parent=5 // pred_region
        %s174 = ssub.s32 %s19, 1
        // Predicated region
        $region13: #{tpu_custom_call.1} parent=11 // pred_check
          %p175 = pneg %p92
        $region14: #{tpu_custom_call.1} parent=11 // pred_check_branch
          %177 = sbr.rel (%p175) target = $region16
        $region15: #{tpu_custom_call.1} parent=11 // pred_region
          _
        $region16: #{tpu_custom_call.1} parent=11 // pred_fallthru
          _
        // Predicated region
        $region17: #{tpu_custom_call.1} parent=11 // pred_check
          %p178 = pneg %p113
        $region18: #{tpu_custom_call.1} parent=11 // pred_check_branch
          %180 = sbr.rel (%p178) target = $region20
        $region19: #{tpu_custom_call.1} parent=11 // pred_region
          %s182 = ssub.s32 2304, 2304
          %183 = vsyncadd [#allocation7], %s182
          %s184 = sshll.u32 [#allocation6], 4
          %s185 = int_to_ptr.vmem [resolvable:$true] %s184
          %190 = dma.hbm_to_vmem [thread:$0]  %s3, 2304, %s185, [#allocation7], 64, 64, 4
        $region20: #{tpu_custom_call.1} parent=11 // pred_fallthru
          _
        // Predicated region
        $region21: #{tpu_custom_call.1} parent=11 // pred_check
          %p191 = pneg %p134
        $region22: #{tpu_custom_call.1} parent=11 // pred_check_branch
          %193 = sbr.rel (%p191) target = $region24
        $region23: #{tpu_custom_call.1} parent=11 // pred_region
          _
        $region24: #{tpu_custom_call.1} parent=11 // pred_fallthru
          _
      $region12: #{tpu_custom_call.1} parent=5 // pred_fallthru
        _
      %p194 = scmp.lt.s32.totalorder %s19, 2
      // Predicated region
      $region25: #{tpu_custom_call.1} parent=5 // pred_check
        %p195 = pneg %p194
      $region26: #{tpu_custom_call.1} parent=5 // pred_check_branch
        %197 = sbr.rel (%p195) target = $region28
      $region27: #{tpu_custom_call.1} parent=5 // pred_region
        // Predicated region
        $region29: #{tpu_custom_call.1} parent=27 // pred_check
          %p198 = pneg %p39
        $region30: #{tpu_custom_call.1} parent=27 // pred_check_branch
          %200 = sbr.rel (%p198) target = $region32
        $region31: #{tpu_custom_call.1} parent=27 // pred_region
          %s201 = sand.u32 %s29, 1
          %s202 = scalar_lea.sflag [#allocation4], %s201
          %s203 = sand.u32 %s29, 1
          %s204 = smul.addr %s203, 64
          %s205 = scalar_lea.vmem [#allocation3], %s204
          %s207 = ssub.s32 1024, 1024
          %208 = vsyncadd %s202, %s207
          %s209 = smul.addr %s19, 8
          %s210 = smul.addr %s209, 128
          %s211 = scalar_lea.hbm %s0, %s210
          %s212 = sshll.u32 %s205, 4
          %s213 = int_to_ptr.vmem [resolvable:$true] %s212
          %218 = dma.hbm_to_vmem [thread:$0]  %s211, 1024, %s213, %s202, 256, 256, 16
        $region32: #{tpu_custom_call.1} parent=27 // pred_fallthru
          _
        // Predicated region
        $region33: #{tpu_custom_call.1} parent=27 // pred_check
          %p219 = pneg %p65
        $region34: #{tpu_custom_call.1} parent=27 // pred_check_branch
          %221 = sbr.rel (%p219) target = $region36
        $region35: #{tpu_custom_call.1} parent=27 // pred_region
          %p222 = scmp.lt.s32.totalorder %s19, 1
          %s223 = scalar_select %p222, %s19, 1
          %s224 = smul.addr %s223, 24
          %s225 = smul.addr %s224, 8
          %s226 = scalar_lea.vmem %s1, %s225
        $region36: #{tpu_custom_call.1} parent=27 // pred_fallthru
          _
      $region28: #{tpu_custom_call.1} parent=5 // pred_fallthru
        _
      %p227 = scmp.le.s32.totalorder 1, %s19
      %p228 = scmp.lt.s32.totalorder %s19, 3
      %p229 = pnand %p227, %p228
      %p230 = pneg %p229
      // Predicated region
      $region37: #{tpu_custom_call.1} parent=5 // pred_check
        _
      $region38: #{tpu_custom_call.1} parent=5 // pred_check_branch
        %232 = sbr.rel (%p229) target = $region40
      $region39: #{tpu_custom_call.1} parent=5 // pred_region
        %s233 = ssub.s32 %s19, 1
        %s234 = sand.u32 %s32, 1
        %s235 = scalar_lea.sflag [#allocation4], %s234
        %s236 = sand.u32 %s32, 1
        %s237 = smul.addr %s236, 64
        %s238 = scalar_lea.vmem [#allocation3], %s237
        // Predicated region
        $region41: #{tpu_custom_call.1} parent=39 // pred_check
          %p239 = pneg %p45
        $region42: #{tpu_custom_call.1} parent=39 // pred_check_branch
          %241 = sbr.rel (%p239) target = $region44
        $region43: #{tpu_custom_call.1} parent=39 // pred_region
          %242 = dma.done %s235, 1024
        $region44: #{tpu_custom_call.1} parent=39 // pred_fallthru
          _
        // Predicated region
        $region45: #{tpu_custom_call.1} parent=39 // pred_check
          %p243 = pneg %p113
        $region46: #{tpu_custom_call.1} parent=39 // pred_check_branch
          %245 = sbr.rel (%p243) target = $region48
        $region47: #{tpu_custom_call.1} parent=39 // pred_region
          %246 = dma.done [#allocation7], 2304
        $region48: #{tpu_custom_call.1} parent=39 // pred_fallthru
          _
        %s247 = sand.u32 %s32, 1
        %s248 = scalar_lea.sflag [#allocation4], %s247
        %s249 = sand.u32 %s32, 1
        %s250 = smul.addr %s249, 64
        %s251 = scalar_lea.vmem [#allocation3], %s250
        %p252 = pneg %p45
        %p253 = pneg %p42
        %p254 = scmp.lt.s32.totalorder %s24, 1
        %s255 = scalar_select %p254, %s24, 1
        %s256 = smul.addr %s255, 24
        %s257 = smul.addr %s256, 8
        %s258 = scalar_lea.vmem %s1, %s257
        %p259 = pneg %p71
        %p260 = pneg %p68
        %p261 = pneg %p92
        %p262 = pneg %p89
        %p263 = pneg %p113
        %p264 = pneg %p110
        %p265 = pneg %p134
        %p266 = pneg %p131
        %p267 = pneg %p160
        %p268 = pneg %p157
        %s269 = sand.u32 %s147, 1
        %s270 = scalar_lea.sflag [#allocation5], %s269
        %s271 = sand.u32 %s147, 1
        %s272 = smul.addr %s271, 64
        %s273 = scalar_lea.vmem [#allocation8], %s272
        %p274 = scmp.lt.s32.totalorder %s24, 1
        %s275 = scalar_select %p274, %s24, 1
        %s276 = smul.addr %s275, 24
        %s277 = smul.addr %s276, 8
        %s278 = scalar_lea.vmem %s1, %s277
        %s280 = sld [smem:[#allocation2]]
        %v281 = vld [vmem:[%s238] sm:$0xff]
        %v282 = vld [vmem:[%s238 + $0x8] sm:$0xff]
        %v283 = vld [vmem:[%s238 + $0x10] sm:$0xff]
        %v284 = vld [vmem:[%s238 + $0x18] sm:$0xff]
        %v285 = vld [vmem:[%s238 + $0x20] sm:$0xff]
        %v286 = vld [vmem:[%s238 + $0x28] sm:$0xff]
        %v287 = vld [vmem:[%s238 + $0x30] sm:$0xff]
        %v288 = vld [vmem:[%s238 + $0x38] sm:$0xff]
        %v289 = vld [vmem:[%s278] sm:$0xff]
        %v290 = vld [vmem:[%s278 + $0x8] sm:$0xff]
        %v291 = vld [vmem:[%s278 + $0x10] sm:$0xff]
        %v292 = vld [vmem:[%s278 + $0x18] sm:$0xff]
        %v293 = vld [vmem:[%s278 + $0x20] sm:$0xff]
        %v294 = vld [vmem:[%s278 + $0x28] sm:$0xff]
        %v295 = vld [vmem:[%s278 + $0x30] sm:$0xff]
        %v296 = vld [vmem:[%s278 + $0x38] sm:$0xff]
        %v297 = vld [vmem:[%s278 + $0x40] sm:$0xff]
        %v298 = vld [vmem:[%s278 + $0x48] sm:$0xff]
        %v299 = vld [vmem:[%s278 + $0x50] sm:$0xff]
        %v300 = vld [vmem:[%s278 + $0x58] sm:$0xff]
        %v301 = vld [vmem:[%s278 + $0x60] sm:$0xff]
        %v302 = vld [vmem:[%s278 + $0x68] sm:$0xff]
        %v303 = vld [vmem:[%s278 + $0x70] sm:$0xff]
        %v304 = vld [vmem:[%s278 + $0x78] sm:$0xff]
        %v305 = vld [vmem:[%s278 + $0x80] sm:$0xff]
        %v306 = vld [vmem:[%s278 + $0x88] sm:$0xff]
        %v307 = vld [vmem:[%s278 + $0x90] sm:$0xff]
        %v308 = vld [vmem:[%s278 + $0x98] sm:$0xff]
        %v309 = vld [vmem:[%s278 + $0xa0] sm:$0xff]
        %v310 = vld [vmem:[%s278 + $0xa8] sm:$0xff]
        %v311 = vld [vmem:[%s278 + $0xb0] sm:$0xff]
        %v312 = vld [vmem:[%s278 + $0xb8] sm:$0xff]
        %v313 = vlaneseq
        %v314 = vand.u32 %v313, 127
        %v315 = vadd.s32 %v314, 128
        %vm316 = vcmp.lt.s32.totalorder %v314, 0
        %v317 = vsub.s32 0, %v314
        %v318 = vsel %vm316, %v317, %v314
        %v319 = vshrl.u32 %v318, 4
        %v320 = vand.u32 %v318, 15
        %v321 = vsub.s32 0, %v320
        %v322 = vsel %vm316, %v321, %v320
        %vm323 = vcmp.lt.s32.totalorder %v315, 0
        %v324 = vsub.s32 0, %v315
        %v325 = vsel %vm323, %v324, %v315
        %v326 = vshrl.u32 %v325, 4
        %v327 = vand.u32 %v325, 15
        %v328 = vsub.s32 0, %v327
        %v329 = vsel %vm323, %v328, %v327
        %vm330 = vcmp.ne.s32.totalorder %v322, 0
        %vm331 = vcmp.ne.s32.totalorder %v329, 0
        %vm332 = vcmp.lt.s32.totalorder %v322, 0
        %vm333 = vcmp.lt.s32.totalorder %v329, 0
        %vm334 = vmand %vm332, %vm330
        %vm335 = vmand %vm333, %vm331
        %v336 = vadd.s32 %v322, 16
        %v337 = vadd.s32 %v329, 16
        %v338 = vsel %vm334, %v336, %v322
        %v339 = vsel %vm335, %v337, %v329
        %vm340 = vcmp.ge.s32.totalorder %v314, 16
        %vm341 = vcmp.ge.s32.totalorder %v315, 16
        %vm342 = vcmp.lt.s32.totalorder %v314, 240
        %vm343 = vcmp.lt.s32.totalorder %v315, 240
        %vm344 = vcmp.gt.s32.totalorder %v338, 0
        %vm345 = vcmp.gt.s32.totalorder %v339, 0
        %vm346 = vcmp.lt.s32.totalorder %v338, 15
        %vm347 = vcmp.lt.s32.totalorder %v339, 15
        %vm348 = vmand %vm340, %vm344
        %vm349 = vmand %vm341, %vm345
        %vm350 = vmand %vm340, %vm346
        %vm351 = vmand %vm341, %vm347
        %vm352 = vmand %vm342, %vm344
        %vm353 = vmand %vm343, %vm345
        %vm354 = vmand %vm342, %vm346
        %vm355 = vmand %vm343, %vm347
        %s356 = scalar_lea.vmem %s2, 128
        %v357 = vld [vmem:[%s356] sm:$0xf]
        %v358 = vld [vmem:[%s356 + $0x4] sm:$0xf]
        %v359 = vld [vmem:[%s356 + $0x8] sm:$0xf]
        %v360 = vld [vmem:[%s356 + $0xc] sm:$0xf]
        %v361 = vld [vmem:[%s356 + $0x10] sm:$0xf]
        %v362 = vld [vmem:[%s356 + $0x14] sm:$0xf]
        %v363 = vld [vmem:[%s356 + $0x18] sm:$0xf]
        %v364 = vld [vmem:[%s356 + $0x1c] sm:$0xf]
        %v365 = vpack.c.bf16 %v283, %v281
        %v366 = vpack.c.bf16 %v284, %v282
        %v367 = vpack.c.bf16 %v287, %v285
        %v368 = vpack.c.bf16 %v288, %v286
        %369 = vrot.lane.b32.xlu0 %v281, 17
        %v370 = vpop.permute.xlu0 %369
        %371 = vrot.lane.b32.xlu0 %v283, 17
        %v372 = vpop.permute.xlu0 %371
        %373 = vrot.lane.b32.xlu0 %v285, 17
        %v374 = vpop.permute.xlu0 %373
        %375 = vrot.lane.b32.xlu0 %v287, 17
        %v376 = vpop.permute.xlu0 %375
        %377 = vrot.lane.b32.xlu0 %v282, 17
        %v378 = vpop.permute.xlu0 %377
        %379 = vrot.lane.b32.xlu0 %v284, 17
        %v380 = vpop.permute.xlu0 %379
        %381 = vrot.lane.b32.xlu0 %v286, 17
        %v382 = vpop.permute.xlu0 %381
        %383 = vrot.lane.b32.xlu0 %v288, 17
        %v384 = vpop.permute.xlu0 %383
        %vm385 = vcmp.lt.s32.totalorder %v314, 17
        %v386 = vsel %vm385, %v370, %v378
        %v387 = vsel %vm385, %v372, %v380
        %v388 = vsel %vm385, %v374, %v382
        %v389 = vsel %vm385, %v376, %v384
        %v390 = vsel %vm385, %v378, %v370
        %v391 = vsel %vm385, %v380, %v372
        %v392 = vsel %vm385, %v382, %v374
        %v393 = vsel %vm385, %v384, %v376
        %v394 = vsel %vm348, %v390, 0.0
        %v395 = vsel %vm349, %v386, 0.0
        %v396 = vsel %vm348, %v391, 0.0
        %v397 = vsel %vm349, %v387, 0.0
        %v398 = vsel %vm348, %v392, 0.0
        %v399 = vsel %vm349, %v388, 0.0
        %v400 = vsel %vm348, %v393, 0.0
        %v401 = vsel %vm349, %v389, 0.0
        %v402 = vpack.c.bf16 %v396, %v394
        %v403 = vpack.c.bf16 %v397, %v395
        %v404 = vpack.c.bf16 %v400, %v398
        %v405 = vpack.c.bf16 %v401, %v399
        %v406 = vld [vmem:[%s2] sm:$0xf]
        %v407 = vld [vmem:[%s2 + $0x4] sm:$0xf]
        %v408 = vld [vmem:[%s2 + $0x8] sm:$0xf]
        %v409 = vld [vmem:[%s2 + $0xc] sm:$0xf]
        %v410 = vld [vmem:[%s2 + $0x10] sm:$0xf]
        %v411 = vld [vmem:[%s2 + $0x14] sm:$0xf]
        %v412 = vld [vmem:[%s2 + $0x18] sm:$0xf]
        %v413 = vld [vmem:[%s2 + $0x1c] sm:$0xf]
        %v422 = vunpack.c.l.b16 %v406
        %v423 = vunpack.c.l.b16 %v407
        %v424 = vunpack.c.l.b16 %v408
        %v425 = vunpack.c.l.b16 %v409
        %v426 = vunpack.c.l.b16 %v410
        %v427 = vunpack.c.l.b16 %v411
        %v428 = vunpack.c.l.b16 %v412
        %v429 = vunpack.c.l.b16 %v413
        %v430 = vpack.c.b16 %v423, %v422
        %v431 = vpack.c.b16 %v425, %v424
        %v432 = vpack.c.b16 %v427, %v426
        %v433 = vpack.c.b16 %v429, %v428
        %vm434 = vcmask 261120
        %v436 = vsel %vm434, %v430, 0
        %v439 = vsel %vm434, %v431, 0
        %v442 = vsel %vm434, %v432, 0
        %v445 = vsel %vm434, %v433, 0
        %447 = vmatprep.subr.bf16.mxu0 0
        %448 = vmatpush1.bf16.msra.mxu0 0
        %449 = vmatprep.subr.bf16.mxu0 0
        %450 = vmatpush1.bf16.msra.mxu0 0
        %451 = vmatprep.subr.bf16.mxu0 0
        %452 = vmatpush1.bf16.msra.mxu0 0
        %453 = vmatprep.subr.bf16.mxu0 0
        %454 = vmatpush1.bf16.msra.mxu0 0
        %455 = vmatprep.subr.bf16.mxu0 0
        %456 = vmatpush1.bf16.msra.mxu0 0
        %457 = vmatprep.subr.bf16.mxu0 0
        %458 = vmatpush1.bf16.msra.mxu0 0
        %459 = vmatprep.subr.bf16.mxu0 %v405
        %460 = vmatpush1.bf16.msra.mxu0 %v404
        %461 = vmatprep.subr.bf16.mxu0 %v403
        %462 = vmatpush1.bf16.msra.mxu0 %v402
        %463 = vmatprep.subr.bf16.mxu0 0
        %464 = vmatpush2.bf16.msra.mxu0 0
        %465 = vmatprep.subr.bf16.mxu0 0
        %466 = vmatpush2.bf16.msra.mxu0 0
        %467 = vmatprep.subr.bf16.mxu0 0
        %468 = vmatpush2.bf16.msra.mxu0 0
        %469 = vmatprep.subr.bf16.mxu0 0
        %470 = vmatpush2.bf16.msra.mxu0 0
        %471 = vmatprep.subr.bf16.mxu0 0
        %472 = vmatpush2.bf16.msra.mxu0 0
        %473 = vmatprep.subr.bf16.mxu0 0
        %474 = vmatpush2.bf16.msra.mxu0 0
        %475 = vmatprep.subr.bf16.mxu0 0
        %476 = vmatpush2.bf16.msra.mxu0 0
        %477 = vmatprep.subr.bf16.mxu0 0
        %478 = vmatpush2.bf16.msra.mxu0 0
        %479 = vmatprep.mubr.bf16.mxu0 0
        %480 = vmatmul.mubr.bf16.gmra.mxu0 %v436
        %v481 = vpop.f32.mrf.mxu0
        %v482 = vadd.f32 0.0, %v481
        %v483 = vpop.f32.mrf.mxu0
        %v484 = vadd.f32 0.0, %v483
        %v485 = vpop.f32.mrf.mxu0
        %v486 = vadd.f32 0.0, %v485
        %v487 = vpop.f32.mrf.mxu0
        %v488 = vadd.f32 0.0, %v487
        %489 = vmatprep.mubr.bf16.mxu0 0
        %490 = vmatmul.mubr.bf16.gmra.mxu0 %v439
        %v491 = vpop.f32.mrf.mxu0
        %v492 = vadd.f32 0.0, %v491
        %v493 = vpop.f32.mrf.mxu0
        %v494 = vadd.f32 0.0, %v493
        %v495 = vpop.f32.mrf.mxu0
        %v496 = vadd.f32 0.0, %v495
        %v497 = vpop.f32.mrf.mxu0
        %v498 = vadd.f32 0.0, %v497
        %499 = vmatprep.mubr.bf16.mxu0 0
        %500 = vmatmul.mubr.bf16.gmra.mxu0 %v442
        %v501 = vpop.f32.mrf.mxu0
        %v502 = vadd.f32 0.0, %v501
        %v503 = vpop.f32.mrf.mxu0
        %v504 = vadd.f32 0.0, %v503
        %v505 = vpop.f32.mrf.mxu0
        %v506 = vadd.f32 0.0, %v505
        %v507 = vpop.f32.mrf.mxu0
        %v508 = vadd.f32 0.0, %v507
        %509 = vmatprep.mubr.bf16.mxu0 0
        %510 = vmatmul.mubr.bf16.gmra.mxu0 %v445
        %v511 = vpop.f32.mrf.mxu0
        %v512 = vadd.f32 0.0, %v511
        %v513 = vpop.f32.mrf.mxu0
        %v514 = vadd.f32 0.0, %v513
        %v515 = vpop.f32.mrf.mxu0
        %v516 = vadd.f32 0.0, %v515
        %v517 = vpop.f32.mrf.mxu0
        %v518 = vadd.f32 0.0, %v517
        %519 = vdwg.mxu0
        %v528 = vunpack.c.l.b16 %v357
        %v529 = vunpack.c.l.b16 %v358
        %v530 = vunpack.c.l.b16 %v359
        %v531 = vunpack.c.l.b16 %v360
        %v532 = vunpack.c.l.b16 %v361
        %v533 = vunpack.c.l.b16 %v362
        %v534 = vunpack.c.l.b16 %v363
        %v535 = vunpack.c.l.b16 %v364
        %v536 = vpack.c.b16 %v529, %v528
        %v537 = vpack.c.b16 %v531, %v530
        %v538 = vpack.c.b16 %v533, %v532
        %v539 = vpack.c.b16 %v535, %v534
        %v541 = vsel %vm434, %v536, 0
        %v544 = vsel %vm434, %v537, 0
        %v547 = vsel %vm434, %v538, 0
        %v550 = vsel %vm434, %v539, 0
        %552 = vmatprep.subr.bf16.mxu0 0
        %553 = vmatpush1.bf16.msra.mxu0 0
        %554 = vmatprep.subr.bf16.mxu0 0
        %555 = vmatpush1.bf16.msra.mxu0 0
        %556 = vmatprep.subr.bf16.mxu0 0
        %557 = vmatpush1.bf16.msra.mxu0 0
        %558 = vmatprep.subr.bf16.mxu0 0
        %559 = vmatpush1.bf16.msra.mxu0 0
        %560 = vmatprep.subr.bf16.mxu0 0
        %561 = vmatpush1.bf16.msra.mxu0 0
        %562 = vmatprep.subr.bf16.mxu0 0
        %563 = vmatpush1.bf16.msra.mxu0 0
        %564 = vmatprep.subr.bf16.mxu0 %v368
        %565 = vmatpush1.bf16.msra.mxu0 %v367
        %566 = vmatprep.subr.bf16.mxu0 %v366
        %567 = vmatpush1.bf16.msra.mxu0 %v365
        %568 = vmatprep.subr.bf16.mxu0 0
        %569 = vmatpush2.bf16.msra.mxu0 0
        %570 = vmatprep.subr.bf16.mxu0 0
        %571 = vmatpush2.bf16.msra.mxu0 0
        %572 = vmatprep.subr.bf16.mxu0 0
        %573 = vmatpush2.bf16.msra.mxu0 0
        %574 = vmatprep.subr.bf16.mxu0 0
        %575 = vmatpush2.bf16.msra.mxu0 0
        %576 = vmatprep.subr.bf16.mxu0 0
        %577 = vmatpush2.bf16.msra.mxu0 0
        %578 = vmatprep.subr.bf16.mxu0 0
        %579 = vmatpush2.bf16.msra.mxu0 0
        %580 = vmatprep.subr.bf16.mxu0 0
        %581 = vmatpush2.bf16.msra.mxu0 0
        %582 = vmatprep.subr.bf16.mxu0 0
        %583 = vmatpush2.bf16.msra.mxu0 0
        %584 = vmatprep.mubr.bf16.mxu0 0
        %585 = vmatmul.mubr.bf16.gmra.mxu0 %v541
        %v586 = vpop.f32.mrf.mxu0
        %v587 = vadd.f32 %v482, %v586
        %v588 = vpop.f32.mrf.mxu0
        %v589 = vadd.f32 %v484, %v588
        %v590 = vpop.f32.mrf.mxu0
        %v591 = vadd.f32 %v486, %v590
        %v592 = vpop.f32.mrf.mxu0
        %v593 = vadd.f32 %v488, %v592
        %594 = vmatprep.mubr.bf16.mxu0 0
        %595 = vmatmul.mubr.bf16.gmra.mxu0 %v544
        %v596 = vpop.f32.mrf.mxu0
        %v597 = vadd.f32 %v492, %v596
        %v598 = vpop.f32.mrf.mxu0
        %v599 = vadd.f32 %v494, %v598
        %v600 = vpop.f32.mrf.mxu0
        %v601 = vadd.f32 %v496, %v600
        %v602 = vpop.f32.mrf.mxu0
        %v603 = vadd.f32 %v498, %v602
        %604 = vmatprep.mubr.bf16.mxu0 0
        %605 = vmatmul.mubr.bf16.gmra.mxu0 %v547
        %v606 = vpop.f32.mrf.mxu0
        %v607 = vadd.f32 %v502, %v606
        %v608 = vpop.f32.mrf.mxu0
        %v609 = vadd.f32 %v504, %v608
        %v610 = vpop.f32.mrf.mxu0
        %v611 = vadd.f32 %v506, %v610
        %v612 = vpop.f32.mrf.mxu0
        %v613 = vadd.f32 %v508, %v612
        %614 = vmatprep.mubr.bf16.mxu0 0
        %615 = vmatmul.mubr.bf16.gmra.mxu0 %v550
        %v616 = vpop.f32.mrf.mxu0
        %v617 = vadd.f32 %v512, %v616
        %v618 = vpop.f32.mrf.mxu0
        %v619 = vadd.f32 %v514, %v618
        %v620 = vpop.f32.mrf.mxu0
        %v621 = vadd.f32 %v516, %v620
        %v622 = vpop.f32.mrf.mxu0
        %v623 = vadd.f32 %v518, %v622
        %624 = vdwg.mxu0
        %625 = vrot.lane.b32.xlu0 %v281, 16
        %v626 = vpop.permute.xlu0 %625
        %627 = vrot.lane.b32.xlu0 %v283, 16
        %v628 = vpop.permute.xlu0 %627
        %629 = vrot.lane.b32.xlu0 %v285, 16
        %v630 = vpop.permute.xlu0 %629
        %631 = vrot.lane.b32.xlu0 %v287, 16
        %v632 = vpop.permute.xlu0 %631
        %633 = vrot.lane.b32.xlu0 %v282, 16
        %v634 = vpop.permute.xlu0 %633
        %635 = vrot.lane.b32.xlu0 %v284, 16
        %v636 = vpop.permute.xlu0 %635
        %637 = vrot.lane.b32.xlu0 %v286, 16
        %v638 = vpop.permute.xlu0 %637
        %639 = vrot.lane.b32.xlu0 %v288, 16
        %v640 = vpop.permute.xlu0 %639
        %vm641 = vcmp.lt.s32.totalorder %v314, 16
        %v642 = vsel %vm641, %v626, %v634
        %v643 = vsel %vm641, %v628, %v636
        %v644 = vsel %vm641, %v630, %v638
        %v645 = vsel %vm641, %v632, %v640
        %v646 = vsel %vm641, %v634, %v626
        %v647 = vsel %vm641, %v636, %v628
        %v648 = vsel %vm641, %v638, %v630
        %v649 = vsel %vm641, %v640, %v632
        %v650 = vsel %vm340, %v646, 0.0
        %v651 = vsel %vm341, %v642, 0.0
        %v652 = vsel %vm340, %v647, 0.0
        %v653 = vsel %vm341, %v643, 0.0
        %v654 = vsel %vm340, %v648, 0.0
        %v655 = vsel %vm341, %v644, 0.0
        %v656 = vsel %vm340, %v649, 0.0
        %v657 = vsel %vm341, %v645, 0.0
        %v658 = vpack.c.bf16 %v652, %v650
        %v659 = vpack.c.bf16 %v653, %v651
        %v660 = vpack.c.bf16 %v656, %v654
        %v661 = vpack.c.bf16 %v657, %v655
        %s662 = scalar_lea.vmem %s2, 32
        %v663 = vld [vmem:[%s662] sm:$0xf]
        %v664 = vld [vmem:[%s662 + $0x4] sm:$0xf]
        %v665 = vld [vmem:[%s662 + $0x8] sm:$0xf]
        %v666 = vld [vmem:[%s662 + $0xc] sm:$0xf]
        %v667 = vld [vmem:[%s662 + $0x10] sm:$0xf]
        %v668 = vld [vmem:[%s662 + $0x14] sm:$0xf]
        %v669 = vld [vmem:[%s662 + $0x18] sm:$0xf]
        %v670 = vld [vmem:[%s662 + $0x1c] sm:$0xf]
        %v679 = vunpack.c.l.b16 %v663
        %v680 = vunpack.c.l.b16 %v664
        %v681 = vunpack.c.l.b16 %v665
        %v682 = vunpack.c.l.b16 %v666
        %v683 = vunpack.c.l.b16 %v667
        %v684 = vunpack.c.l.b16 %v668
        %v685 = vunpack.c.l.b16 %v669
        %v686 = vunpack.c.l.b16 %v670
        %v687 = vpack.c.b16 %v680, %v679
        %v688 = vpack.c.b16 %v682, %v681
        %v689 = vpack.c.b16 %v684, %v683
        %v690 = vpack.c.b16 %v686, %v685
        %v692 = vsel %vm434, %v687, 0
        %v695 = vsel %vm434, %v688, 0
        %v698 = vsel %vm434, %v689, 0
        %v701 = vsel %vm434, %v690, 0
        %703 = vmatprep.subr.bf16.mxu0 0
        %704 = vmatpush1.bf16.msra.mxu0 0
        %705 = vmatprep.subr.bf16.mxu0 0
        %706 = vmatpush1.bf16.msra.mxu0 0
        %707 = vmatprep.subr.bf16.mxu0 0
        %708 = vmatpush1.bf16.msra.mxu0 0
        %709 = vmatprep.subr.bf16.mxu0 0
        %710 = vmatpush1.bf16.msra.mxu0 0
        %711 = vmatprep.subr.bf16.mxu0 0
        %712 = vmatpush1.bf16.msra.mxu0 0
        %713 = vmatprep.subr.bf16.mxu0 0
        %714 = vmatpush1.bf16.msra.mxu0 0
        %715 = vmatprep.subr.bf16.mxu0 %v661
        %716 = vmatpush1.bf16.msra.mxu0 %v660
        %717 = vmatprep.subr.bf16.mxu0 %v659
        %718 = vmatpush1.bf16.msra.mxu0 %v658
        %719 = vmatprep.subr.bf16.mxu0 0
        %720 = vmatpush2.bf16.msra.mxu0 0
        %721 = vmatprep.subr.bf16.mxu0 0
        %722 = vmatpush2.bf16.msra.mxu0 0
        %723 = vmatprep.subr.bf16.mxu0 0
        %724 = vmatpush2.bf16.msra.mxu0 0
        %725 = vmatprep.subr.bf16.mxu0 0
        %726 = vmatpush2.bf16.msra.mxu0 0
        %727 = vmatprep.subr.bf16.mxu0 0
        %728 = vmatpush2.bf16.msra.mxu0 0
        %729 = vmatprep.subr.bf16.mxu0 0
        %730 = vmatpush2.bf16.msra.mxu0 0
        %731 = vmatprep.subr.bf16.mxu0 0
        %732 = vmatpush2.bf16.msra.mxu0 0
        %733 = vmatprep.subr.bf16.mxu0 0
        %734 = vmatpush2.bf16.msra.mxu0 0
        %735 = vmatprep.mubr.bf16.mxu0 0
        %736 = vmatmul.mubr.bf16.gmra.mxu0 %v692
        %v737 = vpop.f32.mrf.mxu0
        %v738 = vadd.f32 0.0, %v737
        %v739 = vpop.f32.mrf.mxu0
        %v740 = vadd.f32 0.0, %v739
        %v741 = vpop.f32.mrf.mxu0
        %v742 = vadd.f32 0.0, %v741
        %v743 = vpop.f32.mrf.mxu0
        %v744 = vadd.f32 0.0, %v743
        %745 = vmatprep.mubr.bf16.mxu0 0
        %746 = vmatmul.mubr.bf16.gmra.mxu0 %v695
        %v747 = vpop.f32.mrf.mxu0
        %v748 = vadd.f32 0.0, %v747
        %v749 = vpop.f32.mrf.mxu0
        %v750 = vadd.f32 0.0, %v749
        %v751 = vpop.f32.mrf.mxu0
        %v752 = vadd.f32 0.0, %v751
        %v753 = vpop.f32.mrf.mxu0
        %v754 = vadd.f32 0.0, %v753
        %755 = vmatprep.mubr.bf16.mxu0 0
        %756 = vmatmul.mubr.bf16.gmra.mxu0 %v698
        %v757 = vpop.f32.mrf.mxu0
        %v758 = vadd.f32 0.0, %v757
        %v759 = vpop.f32.mrf.mxu0
        %v760 = vadd.f32 0.0, %v759
        %v761 = vpop.f32.mrf.mxu0
        %v762 = vadd.f32 0.0, %v761
        %v763 = vpop.f32.mrf.mxu0
        %v764 = vadd.f32 0.0, %v763
        %765 = vmatprep.mubr.bf16.mxu0 0
        %766 = vmatmul.mubr.bf16.gmra.mxu0 %v701
        %v767 = vpop.f32.mrf.mxu0
        %v768 = vadd.f32 0.0, %v767
        %v769 = vpop.f32.mrf.mxu0
        %v770 = vadd.f32 0.0, %v769
        %v771 = vpop.f32.mrf.mxu0
        %v772 = vadd.f32 0.0, %v771
        %v773 = vpop.f32.mrf.mxu0
        %v774 = vadd.f32 0.0, %v773
        %775 = vdwg.mxu0
        %v776 = vadd.f32 %v587, %v738
        %v777 = vadd.f32 %v589, %v740
        %v778 = vadd.f32 %v591, %v742
        %v779 = vadd.f32 %v593, %v744
        %v780 = vadd.f32 %v597, %v748
        %v781 = vadd.f32 %v599, %v750
        %v782 = vadd.f32 %v601, %v752
        %v783 = vadd.f32 %v603, %v754
        %v784 = vadd.f32 %v607, %v758
        %v785 = vadd.f32 %v609, %v760
        %v786 = vadd.f32 %v611, %v762
        %v787 = vadd.f32 %v613, %v764
        %v788 = vadd.f32 %v617, %v768
        %v789 = vadd.f32 %v619, %v770
        %v790 = vadd.f32 %v621, %v772
        %v791 = vadd.f32 %v623, %v774
        %792 = vrot.lane.b32.xlu0 %v281, 15
        %v793 = vpop.permute.xlu0 %792
        %794 = vrot.lane.b32.xlu0 %v283, 15
        %v795 = vpop.permute.xlu0 %794
        %796 = vrot.lane.b32.xlu0 %v285, 15
        %v797 = vpop.permute.xlu0 %796
        %798 = vrot.lane.b32.xlu0 %v287, 15
        %v799 = vpop.permute.xlu0 %798
        %800 = vrot.lane.b32.xlu0 %v282, 15
        %v801 = vpop.permute.xlu0 %800
        %802 = vrot.lane.b32.xlu0 %v284, 15
        %v803 = vpop.permute.xlu0 %802
        %804 = vrot.lane.b32.xlu0 %v286, 15
        %v805 = vpop.permute.xlu0 %804
        %806 = vrot.lane.b32.xlu0 %v288, 15
        %v807 = vpop.permute.xlu0 %806
        %vm808 = vcmp.lt.s32.totalorder %v314, 15
        %v809 = vsel %vm808, %v793, %v801
        %v810 = vsel %vm808, %v795, %v803
        %v811 = vsel %vm808, %v797, %v805
        %v812 = vsel %vm808, %v799, %v807
        %v813 = vsel %vm808, %v801, %v793
        %v814 = vsel %vm808, %v803, %v795
        %v815 = vsel %vm808, %v805, %v797
        %v816 = vsel %vm808, %v807, %v799
        %v817 = vsel %vm350, %v813, 0.0
        %v818 = vsel %vm351, %v809, 0.0
        %v819 = vsel %vm350, %v814, 0.0
        %v820 = vsel %vm351, %v810, 0.0
        %v821 = vsel %vm350, %v815, 0.0
        %v822 = vsel %vm351, %v811, 0.0
        %v823 = vsel %vm350, %v816, 0.0
        %v824 = vsel %vm351, %v812, 0.0
        %v825 = vpack.c.bf16 %v819, %v817
        %v826 = vpack.c.bf16 %v820, %v818
        %v827 = vpack.c.bf16 %v823, %v821
        %v828 = vpack.c.bf16 %v824, %v822
        %s829 = scalar_lea.vmem %s2, 64
        %v830 = vld [vmem:[%s829] sm:$0xf]
        %v831 = vld [vmem:[%s829 + $0x4] sm:$0xf]
        %v832 = vld [vmem:[%s829 + $0x8] sm:$0xf]
        %v833 = vld [vmem:[%s829 + $0xc] sm:$0xf]
        %v834 = vld [vmem:[%s829 + $0x10] sm:$0xf]
        %v835 = vld [vmem:[%s829 + $0x14] sm:$0xf]
        %v836 = vld [vmem:[%s829 + $0x18] sm:$0xf]
        %v837 = vld [vmem:[%s829 + $0x1c] sm:$0xf]
        %v846 = vunpack.c.l.b16 %v830
        %v847 = vunpack.c.l.b16 %v831
        %v848 = vunpack.c.l.b16 %v832
        %v849 = vunpack.c.l.b16 %v833
        %v850 = vunpack.c.l.b16 %v834
        %v851 = vunpack.c.l.b16 %v835
        %v852 = vunpack.c.l.b16 %v836
        %v853 = vunpack.c.l.b16 %v837
        %v854 = vpack.c.b16 %v847, %v846
        %v855 = vpack.c.b16 %v849, %v848
        %v856 = vpack.c.b16 %v851, %v850
        %v857 = vpack.c.b16 %v853, %v852
        %v859 = vsel %vm434, %v854, 0
        %v862 = vsel %vm434, %v855, 0
        %v865 = vsel %vm434, %v856, 0
        %v868 = vsel %vm434, %v857, 0
        %870 = vmatprep.subr.bf16.mxu0 0
        %871 = vmatpush1.bf16.msra.mxu0 0
        %872 = vmatprep.subr.bf16.mxu0 0
        %873 = vmatpush1.bf16.msra.mxu0 0
        %874 = vmatprep.subr.bf16.mxu0 0
        %875 = vmatpush1.bf16.msra.mxu0 0
        %876 = vmatprep.subr.bf16.mxu0 0
        %877 = vmatpush1.bf16.msra.mxu0 0
        %878 = vmatprep.subr.bf16.mxu0 0
        %879 = vmatpush1.bf16.msra.mxu0 0
        %880 = vmatprep.subr.bf16.mxu0 0
        %881 = vmatpush1.bf16.msra.mxu0 0
        %882 = vmatprep.subr.bf16.mxu0 %v828
        %883 = vmatpush1.bf16.msra.mxu0 %v827
        %884 = vmatprep.subr.bf16.mxu0 %v826
        %885 = vmatpush1.bf16.msra.mxu0 %v825
        %886 = vmatprep.subr.bf16.mxu0 0
        %887 = vmatpush2.bf16.msra.mxu0 0
        %888 = vmatprep.subr.bf16.mxu0 0
        %889 = vmatpush2.bf16.msra.mxu0 0
        %890 = vmatprep.subr.bf16.mxu0 0
        %891 = vmatpush2.bf16.msra.mxu0 0
        %892 = vmatprep.subr.bf16.mxu0 0
        %893 = vmatpush2.bf16.msra.mxu0 0
        %894 = vmatprep.subr.bf16.mxu0 0
        %895 = vmatpush2.bf16.msra.mxu0 0
        %896 = vmatprep.subr.bf16.mxu0 0
        %897 = vmatpush2.bf16.msra.mxu0 0
        %898 = vmatprep.subr.bf16.mxu0 0
        %899 = vmatpush2.bf16.msra.mxu0 0
        %900 = vmatprep.subr.bf16.mxu0 0
        %901 = vmatpush2.bf16.msra.mxu0 0
        %902 = vmatprep.mubr.bf16.mxu0 0
        %903 = vmatmul.mubr.bf16.gmra.mxu0 %v859
        %v904 = vpop.f32.mrf.mxu0
        %v905 = vadd.f32 0.0, %v904
        %v906 = vpop.f32.mrf.mxu0
        %v907 = vadd.f32 0.0, %v906
        %v908 = vpop.f32.mrf.mxu0
        %v909 = vadd.f32 0.0, %v908
        %v910 = vpop.f32.mrf.mxu0
        %v911 = vadd.f32 0.0, %v910
        %912 = vmatprep.mubr.bf16.mxu0 0
        %913 = vmatmul.mubr.bf16.gmra.mxu0 %v862
        %v914 = vpop.f32.mrf.mxu0
        %v915 = vadd.f32 0.0, %v914
        %v916 = vpop.f32.mrf.mxu0
        %v917 = vadd.f32 0.0, %v916
        %v918 = vpop.f32.mrf.mxu0
        %v919 = vadd.f32 0.0, %v918
        %v920 = vpop.f32.mrf.mxu0
        %v921 = vadd.f32 0.0, %v920
        %922 = vmatprep.mubr.bf16.mxu0 0
        %923 = vmatmul.mubr.bf16.gmra.mxu0 %v865
        %v924 = vpop.f32.mrf.mxu0
        %v925 = vadd.f32 0.0, %v924
        %v926 = vpop.f32.mrf.mxu0
        %v927 = vadd.f32 0.0, %v926
        %v928 = vpop.f32.mrf.mxu0
        %v929 = vadd.f32 0.0, %v928
        %v930 = vpop.f32.mrf.mxu0
        %v931 = vadd.f32 0.0, %v930
        %932 = vmatprep.mubr.bf16.mxu0 0
        %933 = vmatmul.mubr.bf16.gmra.mxu0 %v868
        %v934 = vpop.f32.mrf.mxu0
        %v935 = vadd.f32 0.0, %v934
        %v936 = vpop.f32.mrf.mxu0
        %v937 = vadd.f32 0.0, %v936
        %v938 = vpop.f32.mrf.mxu0
        %v939 = vadd.f32 0.0, %v938
        %v940 = vpop.f32.mrf.mxu0
        %v941 = vadd.f32 0.0, %v940
        %942 = vdwg.mxu0
        %v943 = vadd.f32 %v776, %v905
        %v944 = vadd.f32 %v777, %v907
        %v945 = vadd.f32 %v778, %v909
        %v946 = vadd.f32 %v779, %v911
        %v947 = vadd.f32 %v780, %v915
        %v948 = vadd.f32 %v781, %v917
        %v949 = vadd.f32 %v782, %v919
        %v950 = vadd.f32 %v783, %v921
        %v951 = vadd.f32 %v784, %v925
        %v952 = vadd.f32 %v785, %v927
        %v953 = vadd.f32 %v786, %v929
        %v954 = vadd.f32 %v787, %v931
        %v955 = vadd.f32 %v788, %v935
        %v956 = vadd.f32 %v789, %v937
        %v957 = vadd.f32 %v790, %v939
        %v958 = vadd.f32 %v791, %v941
        %959 = vrot.lane.b32.xlu0 %v281, 1
        %v960 = vpop.permute.xlu0 %959
        %961 = vrot.lane.b32.xlu0 %v283, 1
        %v962 = vpop.permute.xlu0 %961
        %963 = vrot.lane.b32.xlu0 %v285, 1
        %v964 = vpop.permute.xlu0 %963
        %965 = vrot.lane.b32.xlu0 %v287, 1
        %v966 = vpop.permute.xlu0 %965
        %967 = vrot.lane.b32.xlu0 %v282, 1
        %v968 = vpop.permute.xlu0 %967
        %969 = vrot.lane.b32.xlu0 %v284, 1
        %v970 = vpop.permute.xlu0 %969
        %971 = vrot.lane.b32.xlu0 %v286, 1
        %v972 = vpop.permute.xlu0 %971
        %973 = vrot.lane.b32.xlu0 %v288, 1
        %v974 = vpop.permute.xlu0 %973
        %vm975 = vcmp.lt.s32.totalorder %v314, 1
        %v976 = vsel %vm975, %v960, %v968
        %v977 = vsel %vm975, %v962, %v970
        %v978 = vsel %vm975, %v964, %v972
        %v979 = vsel %vm975, %v966, %v974
        %v980 = vsel %vm975, %v968, %v960
        %v981 = vsel %vm975, %v970, %v962
        %v982 = vsel %vm975, %v972, %v964
        %v983 = vsel %vm975, %v974, %v966
        %v984 = vsel %vm344, %v980, 0.0
        %v985 = vsel %vm345, %v976, 0.0
        %v986 = vsel %vm344, %v981, 0.0
        %v987 = vsel %vm345, %v977, 0.0
        %v988 = vsel %vm344, %v982, 0.0
        %v989 = vsel %vm345, %v978, 0.0
        %v990 = vsel %vm344, %v983, 0.0
        %v991 = vsel %vm345, %v979, 0.0
        %v992 = vpack.c.bf16 %v986, %v984
        %v993 = vpack.c.bf16 %v987, %v985
        %v994 = vpack.c.bf16 %v990, %v988
        %v995 = vpack.c.bf16 %v991, %v989
        %s996 = scalar_lea.vmem %s2, 96
        %v997 = vld [vmem:[%s996] sm:$0xf]
        %v998 = vld [vmem:[%s996 + $0x4] sm:$0xf]
        %v999 = vld [vmem:[%s996 + $0x8] sm:$0xf]
        %v1000 = vld [vmem:[%s996 + $0xc] sm:$0xf]
        %v1001 = vld [vmem:[%s996 + $0x10] sm:$0xf]
        %v1002 = vld [vmem:[%s996 + $0x14] sm:$0xf]
        %v1003 = vld [vmem:[%s996 + $0x18] sm:$0xf]
        %v1004 = vld [vmem:[%s996 + $0x1c] sm:$0xf]
        %v1013 = vunpack.c.l.b16 %v997
        %v1014 = vunpack.c.l.b16 %v998
        %v1015 = vunpack.c.l.b16 %v999
        %v1016 = vunpack.c.l.b16 %v1000
        %v1017 = vunpack.c.l.b16 %v1001
        %v1018 = vunpack.c.l.b16 %v1002
        %v1019 = vunpack.c.l.b16 %v1003
        %v1020 = vunpack.c.l.b16 %v1004
        %v1021 = vpack.c.b16 %v1014, %v1013
        %v1022 = vpack.c.b16 %v1016, %v1015
        %v1023 = vpack.c.b16 %v1018, %v1017
        %v1024 = vpack.c.b16 %v1020, %v1019
        %v1026 = vsel %vm434, %v1021, 0
        %v1029 = vsel %vm434, %v1022, 0
        %v1032 = vsel %vm434, %v1023, 0
        %v1035 = vsel %vm434, %v1024, 0
        %1037 = vmatprep.subr.bf16.mxu0 0
        %1038 = vmatpush1.bf16.msra.mxu0 0
        %1039 = vmatprep.subr.bf16.mxu0 0
        %1040 = vmatpush1.bf16.msra.mxu0 0
        %1041 = vmatprep.subr.bf16.mxu0 0
        %1042 = vmatpush1.bf16.msra.mxu0 0
        %1043 = vmatprep.subr.bf16.mxu0 0
        %1044 = vmatpush1.bf16.msra.mxu0 0
        %1045 = vmatprep.subr.bf16.mxu0 0
        %1046 = vmatpush1.bf16.msra.mxu0 0
        %1047 = vmatprep.subr.bf16.mxu0 0
        %1048 = vmatpush1.bf16.msra.mxu0 0
        %1049 = vmatprep.subr.bf16.mxu0 %v995
        %1050 = vmatpush1.bf16.msra.mxu0 %v994
        %1051 = vmatprep.subr.bf16.mxu0 %v993
        %1052 = vmatpush1.bf16.msra.mxu0 %v992
        %1053 = vmatprep.subr.bf16.mxu0 0
        %1054 = vmatpush2.bf16.msra.mxu0 0
        %1055 = vmatprep.subr.bf16.mxu0 0
        %1056 = vmatpush2.bf16.msra.mxu0 0
        %1057 = vmatprep.subr.bf16.mxu0 0
        %1058 = vmatpush2.bf16.msra.mxu0 0
        %1059 = vmatprep.subr.bf16.mxu0 0
        %1060 = vmatpush2.bf16.msra.mxu0 0
        %1061 = vmatprep.subr.bf16.mxu0 0
        %1062 = vmatpush2.bf16.msra.mxu0 0
        %1063 = vmatprep.subr.bf16.mxu0 0
        %1064 = vmatpush2.bf16.msra.mxu0 0
        %1065 = vmatprep.subr.bf16.mxu0 0
        %1066 = vmatpush2.bf16.msra.mxu0 0
        %1067 = vmatprep.subr.bf16.mxu0 0
        %1068 = vmatpush2.bf16.msra.mxu0 0
        %1069 = vmatprep.mubr.bf16.mxu0 0
        %1070 = vmatmul.mubr.bf16.gmra.mxu0 %v1026
        %v1071 = vpop.f32.mrf.mxu0
        %v1072 = vadd.f32 0.0, %v1071
        %v1073 = vpop.f32.mrf.mxu0
        %v1074 = vadd.f32 0.0, %v1073
        %v1075 = vpop.f32.mrf.mxu0
        %v1076 = vadd.f32 0.0, %v1075
        %v1077 = vpop.f32.mrf.mxu0
        %v1078 = vadd.f32 0.0, %v1077
        %1079 = vmatprep.mubr.bf16.mxu0 0
        %1080 = vmatmul.mubr.bf16.gmra.mxu0 %v1029
        %v1081 = vpop.f32.mrf.mxu0
        %v1082 = vadd.f32 0.0, %v1081
        %v1083 = vpop.f32.mrf.mxu0
        %v1084 = vadd.f32 0.0, %v1083
        %v1085 = vpop.f32.mrf.mxu0
        %v1086 = vadd.f32 0.0, %v1085
        %v1087 = vpop.f32.mrf.mxu0
        %v1088 = vadd.f32 0.0, %v1087
        %1089 = vmatprep.mubr.bf16.mxu0 0
        %1090 = vmatmul.mubr.bf16.gmra.mxu0 %v1032
        %v1091 = vpop.f32.mrf.mxu0
        %v1092 = vadd.f32 0.0, %v1091
        %v1093 = vpop.f32.mrf.mxu0
        %v1094 = vadd.f32 0.0, %v1093
        %v1095 = vpop.f32.mrf.mxu0
        %v1096 = vadd.f32 0.0, %v1095
        %v1097 = vpop.f32.mrf.mxu0
        %v1098 = vadd.f32 0.0, %v1097
        %1099 = vmatprep.mubr.bf16.mxu0 0
        %1100 = vmatmul.mubr.bf16.gmra.mxu0 %v1035
        %v1101 = vpop.f32.mrf.mxu0
        %v1102 = vadd.f32 0.0, %v1101
        %v1103 = vpop.f32.mrf.mxu0
        %v1104 = vadd.f32 0.0, %v1103
        %v1105 = vpop.f32.mrf.mxu0
        %v1106 = vadd.f32 0.0, %v1105
        %v1107 = vpop.f32.mrf.mxu0
        %v1108 = vadd.f32 0.0, %v1107
        %1109 = vdwg.mxu0
        %v1110 = vadd.f32 %v943, %v1072
        %v1111 = vadd.f32 %v944, %v1074
        %v1112 = vadd.f32 %v945, %v1076
        %v1113 = vadd.f32 %v946, %v1078
        %v1114 = vadd.f32 %v947, %v1082
        %v1115 = vadd.f32 %v948, %v1084
        %v1116 = vadd.f32 %v949, %v1086
        %v1117 = vadd.f32 %v950, %v1088
        %v1118 = vadd.f32 %v951, %v1092
        %v1119 = vadd.f32 %v952, %v1094
        %v1120 = vadd.f32 %v953, %v1096
        %v1121 = vadd.f32 %v954, %v1098
        %v1122 = vadd.f32 %v955, %v1102
        %v1123 = vadd.f32 %v956, %v1104
        %v1124 = vadd.f32 %v957, %v1106
        %v1125 = vadd.f32 %v958, %v1108
        %1126 = vrot.lane.b32.xlu0 %v281, 127
        %v1127 = vpop.permute.xlu0 %1126
        %1128 = vrot.lane.b32.xlu0 %v283, 127
        %v1129 = vpop.permute.xlu0 %1128
        %1130 = vrot.lane.b32.xlu0 %v285, 127
        %v1131 = vpop.permute.xlu0 %1130
        %1132 = vrot.lane.b32.xlu0 %v287, 127
        %v1133 = vpop.permute.xlu0 %1132
        %1134 = vrot.lane.b32.xlu0 %v282, 127
        %v1135 = vpop.permute.xlu0 %1134
        %1136 = vrot.lane.b32.xlu0 %v284, 127
        %v1137 = vpop.permute.xlu0 %1136
        %1138 = vrot.lane.b32.xlu0 %v286, 127
        %v1139 = vpop.permute.xlu0 %1138
        %1140 = vrot.lane.b32.xlu0 %v288, 127
        %v1141 = vpop.permute.xlu0 %1140
        %vm1142 = vcmp.lt.s32.totalorder %v314, 127
        %v1143 = vsel %vm1142, %v1127, %v1135
        %v1144 = vsel %vm1142, %v1129, %v1137
        %v1145 = vsel %vm1142, %v1131, %v1139
        %v1146 = vsel %vm1142, %v1133, %v1141
        %v1147 = vsel %vm1142, %v1135, %v1127
        %v1148 = vsel %vm1142, %v1137, %v1129
        %v1149 = vsel %vm1142, %v1139, %v1131
        %v1150 = vsel %vm1142, %v1141, %v1133
        %v1151 = vsel %vm346, %v1143, 0.0
        %v1152 = vsel %vm347, %v1147, 0.0
        %v1153 = vsel %vm346, %v1144, 0.0
        %v1154 = vsel %vm347, %v1148, 0.0
        %v1155 = vsel %vm346, %v1145, 0.0
        %v1156 = vsel %vm347, %v1149, 0.0
        %v1157 = vsel %vm346, %v1146, 0.0
        %v1158 = vsel %vm347, %v1150, 0.0
        %v1159 = vpack.c.bf16 %v1153, %v1151
        %v1160 = vpack.c.bf16 %v1154, %v1152
        %v1161 = vpack.c.bf16 %v1157, %v1155
        %v1162 = vpack.c.bf16 %v1158, %v1156
        %s1163 = scalar_lea.vmem %s2, 160
        %v1164 = vld [vmem:[%s1163] sm:$0xf]
        %v1165 = vld [vmem:[%s1163 + $0x4] sm:$0xf]
        %v1166 = vld [vmem:[%s1163 + $0x8] sm:$0xf]
        %v1167 = vld [vmem:[%s1163 + $0xc] sm:$0xf]
        %v1168 = vld [vmem:[%s1163 + $0x10] sm:$0xf]
        %v1169 = vld [vmem:[%s1163 + $0x14] sm:$0xf]
        %v1170 = vld [vmem:[%s1163 + $0x18] sm:$0xf]
        %v1171 = vld [vmem:[%s1163 + $0x1c] sm:$0xf]
        %v1180 = vunpack.c.l.b16 %v1164
        %v1181 = vunpack.c.l.b16 %v1165
        %v1182 = vunpack.c.l.b16 %v1166
        %v1183 = vunpack.c.l.b16 %v1167
        %v1184 = vunpack.c.l.b16 %v1168
        %v1185 = vunpack.c.l.b16 %v1169
        %v1186 = vunpack.c.l.b16 %v1170
        %v1187 = vunpack.c.l.b16 %v1171
        %v1188 = vpack.c.b16 %v1181, %v1180
        %v1189 = vpack.c.b16 %v1183, %v1182
        %v1190 = vpack.c.b16 %v1185, %v1184
        %v1191 = vpack.c.b16 %v1187, %v1186
        %v1193 = vsel %vm434, %v1188, 0
        %v1196 = vsel %vm434, %v1189, 0
        %v1199 = vsel %vm434, %v1190, 0
        %v1202 = vsel %vm434, %v1191, 0
        %1204 = vmatprep.subr.bf16.mxu0 0
        %1205 = vmatpush1.bf16.msra.mxu0 0
        %1206 = vmatprep.subr.bf16.mxu0 0
        %1207 = vmatpush1.bf16.msra.mxu0 0
        %1208 = vmatprep.subr.bf16.mxu0 0
        %1209 = vmatpush1.bf16.msra.mxu0 0
        %1210 = vmatprep.subr.bf16.mxu0 0
        %1211 = vmatpush1.bf16.msra.mxu0 0
        %1212 = vmatprep.subr.bf16.mxu0 0
        %1213 = vmatpush1.bf16.msra.mxu0 0
        %1214 = vmatprep.subr.bf16.mxu0 0
        %1215 = vmatpush1.bf16.msra.mxu0 0
        %1216 = vmatprep.subr.bf16.mxu0 %v1162
        %1217 = vmatpush1.bf16.msra.mxu0 %v1161
        %1218 = vmatprep.subr.bf16.mxu0 %v1160
        %1219 = vmatpush1.bf16.msra.mxu0 %v1159
        %1220 = vmatprep.subr.bf16.mxu0 0
        %1221 = vmatpush2.bf16.msra.mxu0 0
        %1222 = vmatprep.subr.bf16.mxu0 0
        %1223 = vmatpush2.bf16.msra.mxu0 0
        %1224 = vmatprep.subr.bf16.mxu0 0
        %1225 = vmatpush2.bf16.msra.mxu0 0
        %1226 = vmatprep.subr.bf16.mxu0 0
        %1227 = vmatpush2.bf16.msra.mxu0 0
        %1228 = vmatprep.subr.bf16.mxu0 0
        %1229 = vmatpush2.bf16.msra.mxu0 0
        %1230 = vmatprep.subr.bf16.mxu0 0
        %1231 = vmatpush2.bf16.msra.mxu0 0
        %1232 = vmatprep.subr.bf16.mxu0 0
        %1233 = vmatpush2.bf16.msra.mxu0 0
        %1234 = vmatprep.subr.bf16.mxu0 0
        %1235 = vmatpush2.bf16.msra.mxu0 0
        %1236 = vmatprep.mubr.bf16.mxu0 0
        %1237 = vmatmul.mubr.bf16.gmra.mxu0 %v1193
        %v1238 = vpop.f32.mrf.mxu0
        %v1239 = vadd.f32 0.0, %v1238
        %v1240 = vpop.f32.mrf.mxu0
        %v1241 = vadd.f32 0.0, %v1240
        %v1242 = vpop.f32.mrf.mxu0
        %v1243 = vadd.f32 0.0, %v1242
        %v1244 = vpop.f32.mrf.mxu0
        %v1245 = vadd.f32 0.0, %v1244
        %1246 = vmatprep.mubr.bf16.mxu0 0
        %1247 = vmatmul.mubr.bf16.gmra.mxu0 %v1196
        %v1248 = vpop.f32.mrf.mxu0
        %v1249 = vadd.f32 0.0, %v1248
        %v1250 = vpop.f32.mrf.mxu0
        %v1251 = vadd.f32 0.0, %v1250
        %v1252 = vpop.f32.mrf.mxu0
        %v1253 = vadd.f32 0.0, %v1252
        %v1254 = vpop.f32.mrf.mxu0
        %v1255 = vadd.f32 0.0, %v1254
        %1256 = vmatprep.mubr.bf16.mxu0 0
        %1257 = vmatmul.mubr.bf16.gmra.mxu0 %v1199
        %v1258 = vpop.f32.mrf.mxu0
        %v1259 = vadd.f32 0.0, %v1258
        %v1260 = vpop.f32.mrf.mxu0
        %v1261 = vadd.f32 0.0, %v1260
        %v1262 = vpop.f32.mrf.mxu0
        %v1263 = vadd.f32 0.0, %v1262
        %v1264 = vpop.f32.mrf.mxu0
        %v1265 = vadd.f32 0.0, %v1264
        %1266 = vmatprep.mubr.bf16.mxu0 0
        %1267 = vmatmul.mubr.bf16.gmra.mxu0 %v1202
        %v1268 = vpop.f32.mrf.mxu0
        %v1269 = vadd.f32 0.0, %v1268
        %v1270 = vpop.f32.mrf.mxu0
        %v1271 = vadd.f32 0.0, %v1270
        %v1272 = vpop.f32.mrf.mxu0
        %v1273 = vadd.f32 0.0, %v1272
        %v1274 = vpop.f32.mrf.mxu0
        %v1275 = vadd.f32 0.0, %v1274
        %1276 = vdwg.mxu0
        %v1277 = vadd.f32 %v1110, %v1239
        %v1278 = vadd.f32 %v1111, %v1241
        %v1279 = vadd.f32 %v1112, %v1243
        %v1280 = vadd.f32 %v1113, %v1245
        %v1281 = vadd.f32 %v1114, %v1249
        %v1282 = vadd.f32 %v1115, %v1251
        %v1283 = vadd.f32 %v1116, %v1253
        %v1284 = vadd.f32 %v1117, %v1255
        %v1285 = vadd.f32 %v1118, %v1259
        %v1286 = vadd.f32 %v1119, %v1261
        %v1287 = vadd.f32 %v1120, %v1263
        %v1288 = vadd.f32 %v1121, %v1265
        %v1289 = vadd.f32 %v1122, %v1269
        %v1290 = vadd.f32 %v1123, %v1271
        %v1291 = vadd.f32 %v1124, %v1273
        %v1292 = vadd.f32 %v1125, %v1275
        %1293 = vrot.lane.b32.xlu0 %v281, 113
        %v1294 = vpop.permute.xlu0 %1293
        %1295 = vrot.lane.b32.xlu0 %v283, 113
        %v1296 = vpop.permute.xlu0 %1295
        %1297 = vrot.lane.b32.xlu0 %v285, 113
        %v1298 = vpop.permute.xlu0 %1297
        %1299 = vrot.lane.b32.xlu0 %v287, 113
        %v1300 = vpop.permute.xlu0 %1299
        %1301 = vrot.lane.b32.xlu0 %v282, 113
        %v1302 = vpop.permute.xlu0 %1301
        %1303 = vrot.lane.b32.xlu0 %v284, 113
        %v1304 = vpop.permute.xlu0 %1303
        %1305 = vrot.lane.b32.xlu0 %v286, 113
        %v1306 = vpop.permute.xlu0 %1305
        %1307 = vrot.lane.b32.xlu0 %v288, 113
        %v1308 = vpop.permute.xlu0 %1307
        %vm1309 = vcmp.lt.s32.totalorder %v314, 113
        %v1310 = vsel %vm1309, %v1294, %v1302
        %v1311 = vsel %vm1309, %v1296, %v1304
        %v1312 = vsel %vm1309, %v1298, %v1306
        %v1313 = vsel %vm1309, %v1300, %v1308
        %v1314 = vsel %vm1309, %v1302, %v1294
        %v1315 = vsel %vm1309, %v1304, %v1296
        %v1316 = vsel %vm1309, %v1306, %v1298
        %v1317 = vsel %vm1309, %v1308, %v1300
        %v1318 = vsel %vm352, %v1310, 0.0
        %v1319 = vsel %vm353, %v1314, 0.0
        %v1320 = vsel %vm352, %v1311, 0.0
        %v1321 = vsel %vm353, %v1315, 0.0
        %v1322 = vsel %vm352, %v1312, 0.0
        %v1323 = vsel %vm353, %v1316, 0.0
        %v1324 = vsel %vm352, %v1313, 0.0
        %v1325 = vsel %vm353, %v1317, 0.0
        %v1326 = vpack.c.bf16 %v1320, %v1318
        %v1327 = vpack.c.bf16 %v1321, %v1319
        %v1328 = vpack.c.bf16 %v1324, %v1322
        %v1329 = vpack.c.bf16 %v1325, %v1323
        %s1330 = scalar_lea.vmem %s2, 192
        %v1331 = vld [vmem:[%s1330] sm:$0xf]
        %v1332 = vld [vmem:[%s1330 + $0x4] sm:$0xf]
        %v1333 = vld [vmem:[%s1330 + $0x8] sm:$0xf]
        %v1334 = vld [vmem:[%s1330 + $0xc] sm:$0xf]
        %v1335 = vld [vmem:[%s1330 + $0x10] sm:$0xf]
        %v1336 = vld [vmem:[%s1330 + $0x14] sm:$0xf]
        %v1337 = vld [vmem:[%s1330 + $0x18] sm:$0xf]
        %v1338 = vld [vmem:[%s1330 + $0x1c] sm:$0xf]
        %v1347 = vunpack.c.l.b16 %v1331
        %v1348 = vunpack.c.l.b16 %v1332
        %v1349 = vunpack.c.l.b16 %v1333
        %v1350 = vunpack.c.l.b16 %v1334
        %v1351 = vunpack.c.l.b16 %v1335
        %v1352 = vunpack.c.l.b16 %v1336
        %v1353 = vunpack.c.l.b16 %v1337
        %v1354 = vunpack.c.l.b16 %v1338
        %v1355 = vpack.c.b16 %v1348, %v1347
        %v1356 = vpack.c.b16 %v1350, %v1349
        %v1357 = vpack.c.b16 %v1352, %v1351
        %v1358 = vpack.c.b16 %v1354, %v1353
        %v1360 = vsel %vm434, %v1355, 0
        %v1363 = vsel %vm434, %v1356, 0
        %v1366 = vsel %vm434, %v1357, 0
        %v1369 = vsel %vm434, %v1358, 0
        %1371 = vmatprep.subr.bf16.mxu0 0
        %1372 = vmatpush1.bf16.msra.mxu0 0
        %1373 = vmatprep.subr.bf16.mxu0 0
        %1374 = vmatpush1.bf16.msra.mxu0 0
        %1375 = vmatprep.subr.bf16.mxu0 0
        %1376 = vmatpush1.bf16.msra.mxu0 0
        %1377 = vmatprep.subr.bf16.mxu0 0
        %1378 = vmatpush1.bf16.msra.mxu0 0
        %1379 = vmatprep.subr.bf16.mxu0 0
        %1380 = vmatpush1.bf16.msra.mxu0 0
        %1381 = vmatprep.subr.bf16.mxu0 0
        %1382 = vmatpush1.bf16.msra.mxu0 0
        %1383 = vmatprep.subr.bf16.mxu0 %v1329
        %1384 = vmatpush1.bf16.msra.mxu0 %v1328
        %1385 = vmatprep.subr.bf16.mxu0 %v1327
        %1386 = vmatpush1.bf16.msra.mxu0 %v1326
        %1387 = vmatprep.subr.bf16.mxu0 0
        %1388 = vmatpush2.bf16.msra.mxu0 0
        %1389 = vmatprep.subr.bf16.mxu0 0
        %1390 = vmatpush2.bf16.msra.mxu0 0
        %1391 = vmatprep.subr.bf16.mxu0 0
        %1392 = vmatpush2.bf16.msra.mxu0 0
        %1393 = vmatprep.subr.bf16.mxu0 0
        %1394 = vmatpush2.bf16.msra.mxu0 0
        %1395 = vmatprep.subr.bf16.mxu0 0
        %1396 = vmatpush2.bf16.msra.mxu0 0
        %1397 = vmatprep.subr.bf16.mxu0 0
        %1398 = vmatpush2.bf16.msra.mxu0 0
        %1399 = vmatprep.subr.bf16.mxu0 0
        %1400 = vmatpush2.bf16.msra.mxu0 0
        %1401 = vmatprep.subr.bf16.mxu0 0
        %1402 = vmatpush2.bf16.msra.mxu0 0
        %1403 = vmatprep.mubr.bf16.mxu0 0
        %1404 = vmatmul.mubr.bf16.gmra.mxu0 %v1360
        %v1405 = vpop.f32.mrf.mxu0
        %v1406 = vadd.f32 0.0, %v1405
        %v1407 = vpop.f32.mrf.mxu0
        %v1408 = vadd.f32 0.0, %v1407
        %v1409 = vpop.f32.mrf.mxu0
        %v1410 = vadd.f32 0.0, %v1409
        %v1411 = vpop.f32.mrf.mxu0
        %v1412 = vadd.f32 0.0, %v1411
        %1413 = vmatprep.mubr.bf16.mxu0 0
        %1414 = vmatmul.mubr.bf16.gmra.mxu0 %v1363
        %v1415 = vpop.f32.mrf.mxu0
        %v1416 = vadd.f32 0.0, %v1415
        %v1417 = vpop.f32.mrf.mxu0
        %v1418 = vadd.f32 0.0, %v1417
        %v1419 = vpop.f32.mrf.mxu0
        %v1420 = vadd.f32 0.0, %v1419
        %v1421 = vpop.f32.mrf.mxu0
        %v1422 = vadd.f32 0.0, %v1421
        %1423 = vmatprep.mubr.bf16.mxu0 0
        %1424 = vmatmul.mubr.bf16.gmra.mxu0 %v1366
        %v1425 = vpop.f32.mrf.mxu0
        %v1426 = vadd.f32 0.0, %v1425
        %v1427 = vpop.f32.mrf.mxu0
        %v1428 = vadd.f32 0.0, %v1427
        %v1429 = vpop.f32.mrf.mxu0
        %v1430 = vadd.f32 0.0, %v1429
        %v1431 = vpop.f32.mrf.mxu0
        %v1432 = vadd.f32 0.0, %v1431
        %1433 = vmatprep.mubr.bf16.mxu0 0
        %1434 = vmatmul.mubr.bf16.gmra.mxu0 %v1369
        %v1435 = vpop.f32.mrf.mxu0
        %v1436 = vadd.f32 0.0, %v1435
        %v1437 = vpop.f32.mrf.mxu0
        %v1438 = vadd.f32 0.0, %v1437
        %v1439 = vpop.f32.mrf.mxu0
        %v1440 = vadd.f32 0.0, %v1439
        %v1441 = vpop.f32.mrf.mxu0
        %v1442 = vadd.f32 0.0, %v1441
        %1443 = vdwg.mxu0
        %v1444 = vadd.f32 %v1277, %v1406
        %v1445 = vadd.f32 %v1278, %v1408
        %v1446 = vadd.f32 %v1279, %v1410
        %v1447 = vadd.f32 %v1280, %v1412
        %v1448 = vadd.f32 %v1281, %v1416
        %v1449 = vadd.f32 %v1282, %v1418
        %v1450 = vadd.f32 %v1283, %v1420
        %v1451 = vadd.f32 %v1284, %v1422
        %v1452 = vadd.f32 %v1285, %v1426
        %v1453 = vadd.f32 %v1286, %v1428
        %v1454 = vadd.f32 %v1287, %v1430
        %v1455 = vadd.f32 %v1288, %v1432
        %v1456 = vadd.f32 %v1289, %v1436
        %v1457 = vadd.f32 %v1290, %v1438
        %v1458 = vadd.f32 %v1291, %v1440
        %v1459 = vadd.f32 %v1292, %v1442
        %1460 = vrot.lane.b32.xlu0 %v281, 112
        %v1461 = vpop.permute.xlu0 %1460
        %1462 = vrot.lane.b32.xlu0 %v283, 112
        %v1463 = vpop.permute.xlu0 %1462
        %1464 = vrot.lane.b32.xlu0 %v285, 112
        %v1465 = vpop.permute.xlu0 %1464
        %1466 = vrot.lane.b32.xlu0 %v287, 112
        %v1467 = vpop.permute.xlu0 %1466
        %1468 = vrot.lane.b32.xlu0 %v282, 112
        %v1469 = vpop.permute.xlu0 %1468
        %1470 = vrot.lane.b32.xlu0 %v284, 112
        %v1471 = vpop.permute.xlu0 %1470
        %1472 = vrot.lane.b32.xlu0 %v286, 112
        %v1473 = vpop.permute.xlu0 %1472
        %1474 = vrot.lane.b32.xlu0 %v288, 112
        %v1475 = vpop.permute.xlu0 %1474
        %vm1476 = vcmp.lt.s32.totalorder %v314, 112
        %v1477 = vsel %vm1476, %v1461, %v1469
        %v1478 = vsel %vm1476, %v1463, %v1471
        %v1479 = vsel %vm1476, %v1465, %v1473
        %v1480 = vsel %vm1476, %v1467, %v1475
        %v1481 = vsel %vm1476, %v1469, %v1461
        %v1482 = vsel %vm1476, %v1471, %v1463
        %v1483 = vsel %vm1476, %v1473, %v1465
        %v1484 = vsel %vm1476, %v1475, %v1467
        %v1485 = vsel %vm342, %v1477, 0.0
        %v1486 = vsel %vm343, %v1481, 0.0
        %v1487 = vsel %vm342, %v1478, 0.0
        %v1488 = vsel %vm343, %v1482, 0.0
        %v1489 = vsel %vm342, %v1479, 0.0
        %v1490 = vsel %vm343, %v1483, 0.0
        %v1491 = vsel %vm342, %v1480, 0.0
        %v1492 = vsel %vm343, %v1484, 0.0
        %v1493 = vpack.c.bf16 %v1487, %v1485
        %v1494 = vpack.c.bf16 %v1488, %v1486
        %v1495 = vpack.c.bf16 %v1491, %v1489
        %v1496 = vpack.c.bf16 %v1492, %v1490
        %s1497 = scalar_lea.vmem %s2, 224
        %v1498 = vld [vmem:[%s1497] sm:$0xf]
        %v1499 = vld [vmem:[%s1497 + $0x4] sm:$0xf]
        %v1500 = vld [vmem:[%s1497 + $0x8] sm:$0xf]
        %v1501 = vld [vmem:[%s1497 + $0xc] sm:$0xf]
        %v1502 = vld [vmem:[%s1497 + $0x10] sm:$0xf]
        %v1503 = vld [vmem:[%s1497 + $0x14] sm:$0xf]
        %v1504 = vld [vmem:[%s1497 + $0x18] sm:$0xf]
        %v1505 = vld [vmem:[%s1497 + $0x1c] sm:$0xf]
        %v1514 = vunpack.c.l.b16 %v1498
        %v1515 = vunpack.c.l.b16 %v1499
        %v1516 = vunpack.c.l.b16 %v1500
        %v1517 = vunpack.c.l.b16 %v1501
        %v1518 = vunpack.c.l.b16 %v1502
        %v1519 = vunpack.c.l.b16 %v1503
        %v1520 = vunpack.c.l.b16 %v1504
        %v1521 = vunpack.c.l.b16 %v1505
        %v1522 = vpack.c.b16 %v1515, %v1514
        %v1523 = vpack.c.b16 %v1517, %v1516
        %v1524 = vpack.c.b16 %v1519, %v1518
        %v1525 = vpack.c.b16 %v1521, %v1520
        %v1527 = vsel %vm434, %v1522, 0
        %v1530 = vsel %vm434, %v1523, 0
        %v1533 = vsel %vm434, %v1524, 0
        %v1536 = vsel %vm434, %v1525, 0
        %1538 = vmatprep.subr.bf16.mxu0 0
        %1539 = vmatpush1.bf16.msra.mxu0 0
        %1540 = vmatprep.subr.bf16.mxu0 0
        %1541 = vmatpush1.bf16.msra.mxu0 0
        %1542 = vmatprep.subr.bf16.mxu0 0
        %1543 = vmatpush1.bf16.msra.mxu0 0
        %1544 = vmatprep.subr.bf16.mxu0 0
        %1545 = vmatpush1.bf16.msra.mxu0 0
        %1546 = vmatprep.subr.bf16.mxu0 0
        %1547 = vmatpush1.bf16.msra.mxu0 0
        %1548 = vmatprep.subr.bf16.mxu0 0
        %1549 = vmatpush1.bf16.msra.mxu0 0
        %1550 = vmatprep.subr.bf16.mxu0 %v1496
        %1551 = vmatpush1.bf16.msra.mxu0 %v1495
        %1552 = vmatprep.subr.bf16.mxu0 %v1494
        %1553 = vmatpush1.bf16.msra.mxu0 %v1493
        %1554 = vmatprep.subr.bf16.mxu0 0
        %1555 = vmatpush2.bf16.msra.mxu0 0
        %1556 = vmatprep.subr.bf16.mxu0 0
        %1557 = vmatpush2.bf16.msra.mxu0 0
        %1558 = vmatprep.subr.bf16.mxu0 0
        %1559 = vmatpush2.bf16.msra.mxu0 0
        %1560 = vmatprep.subr.bf16.mxu0 0
        %1561 = vmatpush2.bf16.msra.mxu0 0
        %1562 = vmatprep.subr.bf16.mxu0 0
        %1563 = vmatpush2.bf16.msra.mxu0 0
        %1564 = vmatprep.subr.bf16.mxu0 0
        %1565 = vmatpush2.bf16.msra.mxu0 0
        %1566 = vmatprep.subr.bf16.mxu0 0
        %1567 = vmatpush2.bf16.msra.mxu0 0
        %1568 = vmatprep.subr.bf16.mxu0 0
        %1569 = vmatpush2.bf16.msra.mxu0 0
        %1570 = vmatprep.mubr.bf16.mxu0 0
        %1571 = vmatmul.mubr.bf16.gmra.mxu0 %v1527
        %v1572 = vpop.f32.mrf.mxu0
        %v1573 = vadd.f32 0.0, %v1572
        %v1574 = vpop.f32.mrf.mxu0
        %v1575 = vadd.f32 0.0, %v1574
        %v1576 = vpop.f32.mrf.mxu0
        %v1577 = vadd.f32 0.0, %v1576
        %v1578 = vpop.f32.mrf.mxu0
        %v1579 = vadd.f32 0.0, %v1578
        %1580 = vmatprep.mubr.bf16.mxu0 0
        %1581 = vmatmul.mubr.bf16.gmra.mxu0 %v1530
        %v1582 = vpop.f32.mrf.mxu0
        %v1583 = vadd.f32 0.0, %v1582
        %v1584 = vpop.f32.mrf.mxu0
        %v1585 = vadd.f32 0.0, %v1584
        %v1586 = vpop.f32.mrf.mxu0
        %v1587 = vadd.f32 0.0, %v1586
        %v1588 = vpop.f32.mrf.mxu0
        %v1589 = vadd.f32 0.0, %v1588
        %1590 = vmatprep.mubr.bf16.mxu0 0
        %1591 = vmatmul.mubr.bf16.gmra.mxu0 %v1533
        %v1592 = vpop.f32.mrf.mxu0
        %v1593 = vadd.f32 0.0, %v1592
        %v1594 = vpop.f32.mrf.mxu0
        %v1595 = vadd.f32 0.0, %v1594
        %v1596 = vpop.f32.mrf.mxu0
        %v1597 = vadd.f32 0.0, %v1596
        %v1598 = vpop.f32.mrf.mxu0
        %v1599 = vadd.f32 0.0, %v1598
        %1600 = vmatprep.mubr.bf16.mxu0 0
        %1601 = vmatmul.mubr.bf16.gmra.mxu0 %v1536
        %v1602 = vpop.f32.mrf.mxu0
        %v1603 = vadd.f32 0.0, %v1602
        %v1604 = vpop.f32.mrf.mxu0
        %v1605 = vadd.f32 0.0, %v1604
        %v1606 = vpop.f32.mrf.mxu0
        %v1607 = vadd.f32 0.0, %v1606
        %v1608 = vpop.f32.mrf.mxu0
        %v1609 = vadd.f32 0.0, %v1608
        %1610 = vdwg.mxu0
        %v1611 = vadd.f32 %v1444, %v1573
        %v1612 = vadd.f32 %v1445, %v1575
        %v1613 = vadd.f32 %v1446, %v1577
        %v1614 = vadd.f32 %v1447, %v1579
        %v1615 = vadd.f32 %v1448, %v1583
        %v1616 = vadd.f32 %v1449, %v1585
        %v1617 = vadd.f32 %v1450, %v1587
        %v1618 = vadd.f32 %v1451, %v1589
        %v1619 = vadd.f32 %v1452, %v1593
        %v1620 = vadd.f32 %v1453, %v1595
        %v1621 = vadd.f32 %v1454, %v1597
        %v1622 = vadd.f32 %v1455, %v1599
        %v1623 = vadd.f32 %v1456, %v1603
        %v1624 = vadd.f32 %v1457, %v1605
        %v1625 = vadd.f32 %v1458, %v1607
        %v1626 = vadd.f32 %v1459, %v1609
        %1627 = vrot.lane.b32.xlu0 %v281, 111
        %v1628 = vpop.permute.xlu0 %1627
        %1629 = vrot.lane.b32.xlu0 %v283, 111
        %v1630 = vpop.permute.xlu0 %1629
        %1631 = vrot.lane.b32.xlu0 %v285, 111
        %v1632 = vpop.permute.xlu0 %1631
        %1633 = vrot.lane.b32.xlu0 %v287, 111
        %v1634 = vpop.permute.xlu0 %1633
        %1635 = vrot.lane.b32.xlu0 %v282, 111
        %v1636 = vpop.permute.xlu0 %1635
        %1637 = vrot.lane.b32.xlu0 %v284, 111
        %v1638 = vpop.permute.xlu0 %1637
        %1639 = vrot.lane.b32.xlu0 %v286, 111
        %v1640 = vpop.permute.xlu0 %1639
        %1641 = vrot.lane.b32.xlu0 %v288, 111
        %v1642 = vpop.permute.xlu0 %1641
        %vm1643 = vcmp.lt.s32.totalorder %v314, 111
        %v1644 = vsel %vm1643, %v1628, %v1636
        %v1645 = vsel %vm1643, %v1630, %v1638
        %v1646 = vsel %vm1643, %v1632, %v1640
        %v1647 = vsel %vm1643, %v1634, %v1642
        %v1648 = vsel %vm1643, %v1636, %v1628
        %v1649 = vsel %vm1643, %v1638, %v1630
        %v1650 = vsel %vm1643, %v1640, %v1632
        %v1651 = vsel %vm1643, %v1642, %v1634
        %v1652 = vsel %vm354, %v1644, 0.0
        %v1653 = vsel %vm355, %v1648, 0.0
        %v1654 = vsel %vm354, %v1645, 0.0
        %v1655 = vsel %vm355, %v1649, 0.0
        %v1656 = vsel %vm354, %v1646, 0.0
        %v1657 = vsel %vm355, %v1650, 0.0
        %v1658 = vsel %vm354, %v1647, 0.0
        %v1659 = vsel %vm355, %v1651, 0.0
        %v1660 = vpack.c.bf16 %v1654, %v1652
        %v1661 = vpack.c.bf16 %v1655, %v1653
        %v1662 = vpack.c.bf16 %v1658, %v1656
        %v1663 = vpack.c.bf16 %v1659, %v1657
        %s1664 = scalar_lea.vmem %s2, 256
        %v1665 = vld [vmem:[%s1664] sm:$0xf]
        %v1666 = vld [vmem:[%s1664 + $0x4] sm:$0xf]
        %v1667 = vld [vmem:[%s1664 + $0x8] sm:$0xf]
        %v1668 = vld [vmem:[%s1664 + $0xc] sm:$0xf]
        %v1669 = vld [vmem:[%s1664 + $0x10] sm:$0xf]
        %v1670 = vld [vmem:[%s1664 + $0x14] sm:$0xf]
        %v1671 = vld [vmem:[%s1664 + $0x18] sm:$0xf]
        %v1672 = vld [vmem:[%s1664 + $0x1c] sm:$0xf]
        %v1681 = vunpack.c.l.b16 %v1665
        %v1682 = vunpack.c.l.b16 %v1666
        %v1683 = vunpack.c.l.b16 %v1667
        %v1684 = vunpack.c.l.b16 %v1668
        %v1685 = vunpack.c.l.b16 %v1669
        %v1686 = vunpack.c.l.b16 %v1670
        %v1687 = vunpack.c.l.b16 %v1671
        %v1688 = vunpack.c.l.b16 %v1672
        %v1689 = vpack.c.b16 %v1682, %v1681
        %v1690 = vpack.c.b16 %v1684, %v1683
        %v1691 = vpack.c.b16 %v1686, %v1685
        %v1692 = vpack.c.b16 %v1688, %v1687
        %v1694 = vsel %vm434, %v1689, 0
        %v1697 = vsel %vm434, %v1690, 0
        %v1700 = vsel %vm434, %v1691, 0
        %v1703 = vsel %vm434, %v1692, 0
        %1705 = vmatprep.subr.bf16.mxu0 0
        %1706 = vmatpush1.bf16.msra.mxu0 0
        %1707 = vmatprep.subr.bf16.mxu0 0
        %1708 = vmatpush1.bf16.msra.mxu0 0
        %1709 = vmatprep.subr.bf16.mxu0 0
        %1710 = vmatpush1.bf16.msra.mxu0 0
        %1711 = vmatprep.subr.bf16.mxu0 0
        %1712 = vmatpush1.bf16.msra.mxu0 0
        %1713 = vmatprep.subr.bf16.mxu0 0
        %1714 = vmatpush1.bf16.msra.mxu0 0
        %1715 = vmatprep.subr.bf16.mxu0 0
        %1716 = vmatpush1.bf16.msra.mxu0 0
        %1717 = vmatprep.subr.bf16.mxu0 %v1663
        %1718 = vmatpush1.bf16.msra.mxu0 %v1662
        %1719 = vmatprep.subr.bf16.mxu0 %v1661
        %1720 = vmatpush1.bf16.msra.mxu0 %v1660
        %1721 = vmatprep.subr.bf16.mxu0 0
        %1722 = vmatpush2.bf16.msra.mxu0 0
        %1723 = vmatprep.subr.bf16.mxu0 0
        %1724 = vmatpush2.bf16.msra.mxu0 0
        %1725 = vmatprep.subr.bf16.mxu0 0
        %1726 = vmatpush2.bf16.msra.mxu0 0
        %1727 = vmatprep.subr.bf16.mxu0 0
        %1728 = vmatpush2.bf16.msra.mxu0 0
        %1729 = vmatprep.subr.bf16.mxu0 0
        %1730 = vmatpush2.bf16.msra.mxu0 0
        %1731 = vmatprep.subr.bf16.mxu0 0
        %1732 = vmatpush2.bf16.msra.mxu0 0
        %1733 = vmatprep.subr.bf16.mxu0 0
        %1734 = vmatpush2.bf16.msra.mxu0 0
        %1735 = vmatprep.subr.bf16.mxu0 0
        %1736 = vmatpush2.bf16.msra.mxu0 0
        %1737 = vmatprep.mubr.bf16.mxu0 0
        %1738 = vmatmul.mubr.bf16.gmra.mxu0 %v1694
        %v1739 = vpop.f32.mrf.mxu0
        %v1740 = vadd.f32 0.0, %v1739
        %v1741 = vpop.f32.mrf.mxu0
        %v1742 = vadd.f32 0.0, %v1741
        %v1743 = vpop.f32.mrf.mxu0
        %v1744 = vadd.f32 0.0, %v1743
        %v1745 = vpop.f32.mrf.mxu0
        %v1746 = vadd.f32 0.0, %v1745
        %1747 = vmatprep.mubr.bf16.mxu0 0
        %1748 = vmatmul.mubr.bf16.gmra.mxu0 %v1697
        %v1749 = vpop.f32.mrf.mxu0
        %v1750 = vadd.f32 0.0, %v1749
        %v1751 = vpop.f32.mrf.mxu0
        %v1752 = vadd.f32 0.0, %v1751
        %v1753 = vpop.f32.mrf.mxu0
        %v1754 = vadd.f32 0.0, %v1753
        %v1755 = vpop.f32.mrf.mxu0
        %v1756 = vadd.f32 0.0, %v1755
        %1757 = vmatprep.mubr.bf16.mxu0 0
        %1758 = vmatmul.mubr.bf16.gmra.mxu0 %v1700
        %v1759 = vpop.f32.mrf.mxu0
        %v1760 = vadd.f32 0.0, %v1759
        %v1761 = vpop.f32.mrf.mxu0
        %v1762 = vadd.f32 0.0, %v1761
        %v1763 = vpop.f32.mrf.mxu0
        %v1764 = vadd.f32 0.0, %v1763
        %v1765 = vpop.f32.mrf.mxu0
        %v1766 = vadd.f32 0.0, %v1765
        %1767 = vmatprep.mubr.bf16.mxu0 0
        %1768 = vmatmul.mubr.bf16.gmra.mxu0 %v1703
        %v1769 = vpop.f32.mrf.mxu0
        %v1770 = vadd.f32 0.0, %v1769
        %v1771 = vpop.f32.mrf.mxu0
        %v1772 = vadd.f32 0.0, %v1771
        %v1773 = vpop.f32.mrf.mxu0
        %v1774 = vadd.f32 0.0, %v1773
        %v1775 = vpop.f32.mrf.mxu0
        %v1776 = vadd.f32 0.0, %v1775
        %1777 = vdwg.mxu0
        %v1778 = vadd.f32 %v1611, %v1740
        %v1779 = vadd.f32 %v1612, %v1742
        %v1780 = vadd.f32 %v1613, %v1744
        %v1781 = vadd.f32 %v1614, %v1746
        %v1782 = vadd.f32 %v1615, %v1750
        %v1783 = vadd.f32 %v1616, %v1752
        %v1784 = vadd.f32 %v1617, %v1754
        %v1785 = vadd.f32 %v1618, %v1756
        %v1786 = vadd.f32 %v1619, %v1760
        %v1787 = vadd.f32 %v1620, %v1762
        %v1788 = vadd.f32 %v1621, %v1764
        %v1789 = vadd.f32 %v1622, %v1766
        %v1790 = vadd.f32 %v1623, %v1770
        %v1791 = vadd.f32 %v1624, %v1772
        %v1792 = vadd.f32 %v1625, %v1774
        %v1793 = vadd.f32 %v1626, %v1776
        %v1794 = vadd.f32 %v1778, %v289
        %v1795 = vadd.f32 %v1779, %v290
        %v1796 = vadd.f32 %v1780, %v291
        %v1797 = vadd.f32 %v1781, %v292
        %v1798 = vadd.f32 %v1782, %v293
        %v1799 = vadd.f32 %v1783, %v294
        %v1800 = vadd.f32 %v1784, %v295
        %v1801 = vadd.f32 %v1785, %v296
        %v1802 = vadd.f32 %v1786, %v297
        %v1803 = vadd.f32 %v1787, %v298
        %v1804 = vadd.f32 %v1788, %v299
        %v1805 = vadd.f32 %v1789, %v300
        %v1806 = vadd.f32 %v1790, %v301
        %v1807 = vadd.f32 %v1791, %v302
        %v1808 = vadd.f32 %v1792, %v303
        %v1809 = vadd.f32 %v1793, %v304
        %vm1810 = vcmp.ge.f32.partialorder %v1794, 0.0
        %vm1811 = vcmp.ge.f32.partialorder %v1795, 0.0
        %vm1812 = vcmp.ge.f32.partialorder %v1796, 0.0
        %vm1813 = vcmp.ge.f32.partialorder %v1797, 0.0
        %vm1814 = vcmp.ge.f32.partialorder %v1798, 0.0
        %vm1815 = vcmp.ge.f32.partialorder %v1799, 0.0
        %vm1816 = vcmp.ge.f32.partialorder %v1800, 0.0
        %vm1817 = vcmp.ge.f32.partialorder %v1801, 0.0
        %vm1818 = vcmp.ge.f32.partialorder %v1802, 0.0
        %vm1819 = vcmp.ge.f32.partialorder %v1803, 0.0
        %vm1820 = vcmp.ge.f32.partialorder %v1804, 0.0
        %vm1821 = vcmp.ge.f32.partialorder %v1805, 0.0
        %vm1822 = vcmp.ge.f32.partialorder %v1806, 0.0
        %vm1823 = vcmp.ge.f32.partialorder %v1807, 0.0
        %vm1824 = vcmp.ge.f32.partialorder %v1808, 0.0
        %vm1825 = vcmp.ge.f32.partialorder %v1809, 0.0
        %v1826 = vstv %s280
        %v1827 = vmul.f32 %v1826, %v1794
        %v1828 = vmul.f32 %v1826, %v1795
        %v1829 = vmul.f32 %v1826, %v1796
        %v1830 = vmul.f32 %v1826, %v1797
        %v1831 = vmul.f32 %v1826, %v1798
        %v1832 = vmul.f32 %v1826, %v1799
        %v1833 = vmul.f32 %v1826, %v1800
        %v1834 = vmul.f32 %v1826, %v1801
        %v1835 = vmul.f32 %v1826, %v1802
        %v1836 = vmul.f32 %v1826, %v1803
        %v1837 = vmul.f32 %v1826, %v1804
        %v1838 = vmul.f32 %v1826, %v1805
        %v1839 = vmul.f32 %v1826, %v1806
        %v1840 = vmul.f32 %v1826, %v1807
        %v1841 = vmul.f32 %v1826, %v1808
        %v1842 = vmul.f32 %v1826, %v1809
        %v1843 = vsel %vm1810, %v1794, %v1827
        %v1844 = vsel %vm1811, %v1795, %v1828
        %v1845 = vsel %vm1812, %v1796, %v1829
        %v1846 = vsel %vm1813, %v1797, %v1830
        %v1847 = vsel %vm1814, %v1798, %v1831
        %v1848 = vsel %vm1815, %v1799, %v1832
        %v1849 = vsel %vm1816, %v1800, %v1833
        %v1850 = vsel %vm1817, %v1801, %v1834
        %v1851 = vsel %vm1818, %v1802, %v1835
        %v1852 = vsel %vm1819, %v1803, %v1836
        %v1853 = vsel %vm1820, %v1804, %v1837
        %v1854 = vsel %vm1821, %v1805, %v1838
        %v1855 = vsel %vm1822, %v1806, %v1839
        %v1856 = vsel %vm1823, %v1807, %v1840
        %v1857 = vsel %vm1824, %v1808, %v1841
        %v1858 = vsel %vm1825, %v1809, %v1842
        %v1859 = vmul.f32 %v1843, %v281
        %v1860 = vmul.f32 %v1844, %v282
        %v1861 = vmul.f32 %v1845, %v283
        %v1862 = vmul.f32 %v1846, %v284
        %v1863 = vmul.f32 %v1847, %v285
        %v1864 = vmul.f32 %v1848, %v286
        %v1865 = vmul.f32 %v1849, %v287
        %v1866 = vmul.f32 %v1850, %v288
        %s1867 = scalar_lea.vmem [#allocation6], 64
        %v1868 = vld [vmem:[%s1867] sm:$0xf]
        %v1869 = vld [vmem:[%s1867 + $0x4] sm:$0xf]
        %v1870 = vld [vmem:[%s1867 + $0x8] sm:$0xf]
        %v1871 = vld [vmem:[%s1867 + $0xc] sm:$0xf]
        %v1872 = vpack.c.bf16 %v1861, %v1859
        %v1873 = vpack.c.bf16 %v1862, %v1860
        %v1874 = vpack.c.bf16 %v1865, %v1863
        %v1875 = vpack.c.bf16 %v1866, %v1864
        %1876 = vrot.lane.b32.xlu0 %v1859, 17
        %v1877 = vpop.permute.xlu0 %1876
        %1878 = vrot.lane.b32.xlu0 %v1861, 17
        %v1879 = vpop.permute.xlu0 %1878
        %1880 = vrot.lane.b32.xlu0 %v1863, 17
        %v1881 = vpop.permute.xlu0 %1880
        %1882 = vrot.lane.b32.xlu0 %v1865, 17
        %v1883 = vpop.permute.xlu0 %1882
        %1884 = vrot.lane.b32.xlu0 %v1860, 17
        %v1885 = vpop.permute.xlu0 %1884
        %1886 = vrot.lane.b32.xlu0 %v1862, 17
        %v1887 = vpop.permute.xlu0 %1886
        %1888 = vrot.lane.b32.xlu0 %v1864, 17
        %v1889 = vpop.permute.xlu0 %1888
        %1890 = vrot.lane.b32.xlu0 %v1866, 17
        %v1891 = vpop.permute.xlu0 %1890
        %v1892 = vsel %vm385, %v1877, %v1885
        %v1893 = vsel %vm385, %v1879, %v1887
        %v1894 = vsel %vm385, %v1881, %v1889
        %v1895 = vsel %vm385, %v1883, %v1891
        %v1896 = vsel %vm385, %v1885, %v1877
        %v1897 = vsel %vm385, %v1887, %v1879
        %v1898 = vsel %vm385, %v1889, %v1881
        %v1899 = vsel %vm385, %v1891, %v1883
        %v1900 = vsel %vm348, %v1896, 0.0
        %v1901 = vsel %vm349, %v1892, 0.0
        %v1902 = vsel %vm348, %v1897, 0.0
        %v1903 = vsel %vm349, %v1893, 0.0
        %v1904 = vsel %vm348, %v1898, 0.0
        %v1905 = vsel %vm349, %v1894, 0.0
        %v1906 = vsel %vm348, %v1899, 0.0
        %v1907 = vsel %vm349, %v1895, 0.0
        %v1908 = vpack.c.bf16 %v1902, %v1900
        %v1909 = vpack.c.bf16 %v1903, %v1901
        %v1910 = vpack.c.bf16 %v1906, %v1904
        %v1911 = vpack.c.bf16 %v1907, %v1905
        %v1912 = vld [vmem:[#allocation6] sm:$0xf]
        %v1913 = vld [vmem:[#allocation6 + $0x4] sm:$0xf]
        %v1914 = vld [vmem:[#allocation6 + $0x8] sm:$0xf]
        %v1915 = vld [vmem:[#allocation6 + $0xc] sm:$0xf]
        %v1920 = vunpack.c.l.b16 %v1912
        %v1921 = vunpack.c.l.b16 %v1913
        %v1922 = vunpack.c.l.b16 %v1914
        %v1923 = vunpack.c.l.b16 %v1915
        %v1924 = vpack.c.b16 %v1921, %v1920
        %v1925 = vpack.c.b16 %v1923, %v1922
        %v1927 = vsel %vm434, %v1924, 0
        %v1930 = vsel %vm434, %v1925, 0
        %1932 = vmatprep.subr.bf16.mxu0 0
        %1933 = vmatpush1.bf16.msra.mxu0 0
        %1934 = vmatprep.subr.bf16.mxu0 0
        %1935 = vmatpush1.bf16.msra.mxu0 0
        %1936 = vmatprep.subr.bf16.mxu0 0
        %1937 = vmatpush1.bf16.msra.mxu0 0
        %1938 = vmatprep.subr.bf16.mxu0 0
        %1939 = vmatpush1.bf16.msra.mxu0 0
        %1940 = vmatprep.subr.bf16.mxu0 0
        %1941 = vmatpush1.bf16.msra.mxu0 0
        %1942 = vmatprep.subr.bf16.mxu0 0
        %1943 = vmatpush1.bf16.msra.mxu0 0
        %1944 = vmatprep.subr.bf16.mxu0 %v1911
        %1945 = vmatpush1.bf16.msra.mxu0 %v1910
        %1946 = vmatprep.subr.bf16.mxu0 %v1909
        %1947 = vmatpush1.bf16.msra.mxu0 %v1908
        %1948 = vmatprep.subr.bf16.mxu0 0
        %1949 = vmatpush2.bf16.msra.mxu0 0
        %1950 = vmatprep.subr.bf16.mxu0 0
        %1951 = vmatpush2.bf16.msra.mxu0 0
        %1952 = vmatprep.subr.bf16.mxu0 0
        %1953 = vmatpush2.bf16.msra.mxu0 0
        %1954 = vmatprep.subr.bf16.mxu0 0
        %1955 = vmatpush2.bf16.msra.mxu0 0
        %1956 = vmatprep.subr.bf16.mxu0 0
        %1957 = vmatpush2.bf16.msra.mxu0 0
        %1958 = vmatprep.subr.bf16.mxu0 0
        %1959 = vmatpush2.bf16.msra.mxu0 0
        %1960 = vmatprep.subr.bf16.mxu0 0
        %1961 = vmatpush2.bf16.msra.mxu0 0
        %1962 = vmatprep.subr.bf16.mxu0 0
        %1963 = vmatpush2.bf16.msra.mxu0 0
        %1964 = vmatprep.mubr.bf16.mxu0 0
        %1965 = vmatmul.mubr.bf16.gmra.mxu0 %v1927
        %v1966 = vpop.f32.mrf.mxu0
        %v1967 = vadd.f32 0.0, %v1966
        %v1968 = vpop.f32.mrf.mxu0
        %v1969 = vadd.f32 0.0, %v1968
        %v1970 = vpop.f32.mrf.mxu0
        %v1971 = vadd.f32 0.0, %v1970
        %v1972 = vpop.f32.mrf.mxu0
        %v1973 = vadd.f32 0.0, %v1972
        %1974 = vmatprep.mubr.bf16.mxu0 0
        %1975 = vmatmul.mubr.bf16.gmra.mxu0 %v1930
        %v1976 = vpop.f32.mrf.mxu0
        %v1977 = vadd.f32 0.0, %v1976
        %v1978 = vpop.f32.mrf.mxu0
        %v1979 = vadd.f32 0.0, %v1978
        %v1980 = vpop.f32.mrf.mxu0
        %v1981 = vadd.f32 0.0, %v1980
        %v1982 = vpop.f32.mrf.mxu0
        %v1983 = vadd.f32 0.0, %v1982
        %1984 = vdwg.mxu0
        %v1989 = vunpack.c.l.b16 %v1868
        %v1990 = vunpack.c.l.b16 %v1869
        %v1991 = vunpack.c.l.b16 %v1870
        %v1992 = vunpack.c.l.b16 %v1871
        %v1993 = vpack.c.b16 %v1990, %v1989
        %v1994 = vpack.c.b16 %v1992, %v1991
        %v1996 = vsel %vm434, %v1993, 0
        %v1999 = vsel %vm434, %v1994, 0
        %2001 = vmatprep.subr.bf16.mxu0 0
        %2002 = vmatpush1.bf16.msra.mxu0 0
        %2003 = vmatprep.subr.bf16.mxu0 0
        %2004 = vmatpush1.bf16.msra.mxu0 0
        %2005 = vmatprep.subr.bf16.mxu0 0
        %2006 = vmatpush1.bf16.msra.mxu0 0
        %2007 = vmatprep.subr.bf16.mxu0 0
        %2008 = vmatpush1.bf16.msra.mxu0 0
        %2009 = vmatprep.subr.bf16.mxu0 0
        %2010 = vmatpush1.bf16.msra.mxu0 0
        %2011 = vmatprep.subr.bf16.mxu0 0
        %2012 = vmatpush1.bf16.msra.mxu0 0
        %2013 = vmatprep.subr.bf16.mxu0 %v1875
        %2014 = vmatpush1.bf16.msra.mxu0 %v1874
        %2015 = vmatprep.subr.bf16.mxu0 %v1873
        %2016 = vmatpush1.bf16.msra.mxu0 %v1872
        %2017 = vmatprep.subr.bf16.mxu0 0
        %2018 = vmatpush2.bf16.msra.mxu0 0
        %2019 = vmatprep.subr.bf16.mxu0 0
        %2020 = vmatpush2.bf16.msra.mxu0 0
        %2021 = vmatprep.subr.bf16.mxu0 0
        %2022 = vmatpush2.bf16.msra.mxu0 0
        %2023 = vmatprep.subr.bf16.mxu0 0
        %2024 = vmatpush2.bf16.msra.mxu0 0
        %2025 = vmatprep.subr.bf16.mxu0 0
        %2026 = vmatpush2.bf16.msra.mxu0 0
        %2027 = vmatprep.subr.bf16.mxu0 0
        %2028 = vmatpush2.bf16.msra.mxu0 0
        %2029 = vmatprep.subr.bf16.mxu0 0
        %2030 = vmatpush2.bf16.msra.mxu0 0
        %2031 = vmatprep.subr.bf16.mxu0 0
        %2032 = vmatpush2.bf16.msra.mxu0 0
        %2033 = vmatprep.mubr.bf16.mxu0 0
        %2034 = vmatmul.mubr.bf16.gmra.mxu0 %v1996
        %v2035 = vpop.f32.mrf.mxu0
        %v2036 = vadd.f32 %v1967, %v2035
        %v2037 = vpop.f32.mrf.mxu0
        %v2038 = vadd.f32 %v1969, %v2037
        %v2039 = vpop.f32.mrf.mxu0
        %v2040 = vadd.f32 %v1971, %v2039
        %v2041 = vpop.f32.mrf.mxu0
        %v2042 = vadd.f32 %v1973, %v2041
        %2043 = vmatprep.mubr.bf16.mxu0 0
        %2044 = vmatmul.mubr.bf16.gmra.mxu0 %v1999
        %v2045 = vpop.f32.mrf.mxu0
        %v2046 = vadd.f32 %v1977, %v2045
        %v2047 = vpop.f32.mrf.mxu0
        %v2048 = vadd.f32 %v1979, %v2047
        %v2049 = vpop.f32.mrf.mxu0
        %v2050 = vadd.f32 %v1981, %v2049
        %v2051 = vpop.f32.mrf.mxu0
        %v2052 = vadd.f32 %v1983, %v2051
        %2053 = vdwg.mxu0
        %2054 = vrot.lane.b32.xlu0 %v1859, 16
        %v2055 = vpop.permute.xlu0 %2054
        %2056 = vrot.lane.b32.xlu0 %v1861, 16
        %v2057 = vpop.permute.xlu0 %2056
        %2058 = vrot.lane.b32.xlu0 %v1863, 16
        %v2059 = vpop.permute.xlu0 %2058
        %2060 = vrot.lane.b32.xlu0 %v1865, 16
        %v2061 = vpop.permute.xlu0 %2060
        %2062 = vrot.lane.b32.xlu0 %v1860, 16
        %v2063 = vpop.permute.xlu0 %2062
        %2064 = vrot.lane.b32.xlu0 %v1862, 16
        %v2065 = vpop.permute.xlu0 %2064
        %2066 = vrot.lane.b32.xlu0 %v1864, 16
        %v2067 = vpop.permute.xlu0 %2066
        %2068 = vrot.lane.b32.xlu0 %v1866, 16
        %v2069 = vpop.permute.xlu0 %2068
        %v2070 = vsel %vm641, %v2055, %v2063
        %v2071 = vsel %vm641, %v2057, %v2065
        %v2072 = vsel %vm641, %v2059, %v2067
        %v2073 = vsel %vm641, %v2061, %v2069
        %v2074 = vsel %vm641, %v2063, %v2055
        %v2075 = vsel %vm641, %v2065, %v2057
        %v2076 = vsel %vm641, %v2067, %v2059
        %v2077 = vsel %vm641, %v2069, %v2061
        %v2078 = vsel %vm340, %v2074, 0.0
        %v2079 = vsel %vm341, %v2070, 0.0
        %v2080 = vsel %vm340, %v2075, 0.0
        %v2081 = vsel %vm341, %v2071, 0.0
        %v2082 = vsel %vm340, %v2076, 0.0
        %v2083 = vsel %vm341, %v2072, 0.0
        %v2084 = vsel %vm340, %v2077, 0.0
        %v2085 = vsel %vm341, %v2073, 0.0
        %v2086 = vpack.c.bf16 %v2080, %v2078
        %v2087 = vpack.c.bf16 %v2081, %v2079
        %v2088 = vpack.c.bf16 %v2084, %v2082
        %v2089 = vpack.c.bf16 %v2085, %v2083
        %s2090 = scalar_lea.vmem [#allocation6], 16
        %v2091 = vld [vmem:[%s2090] sm:$0xf]
        %v2092 = vld [vmem:[%s2090 + $0x4] sm:$0xf]
        %v2093 = vld [vmem:[%s2090 + $0x8] sm:$0xf]
        %v2094 = vld [vmem:[%s2090 + $0xc] sm:$0xf]
        %v2099 = vunpack.c.l.b16 %v2091
        %v2100 = vunpack.c.l.b16 %v2092
        %v2101 = vunpack.c.l.b16 %v2093
        %v2102 = vunpack.c.l.b16 %v2094
        %v2103 = vpack.c.b16 %v2100, %v2099
        %v2104 = vpack.c.b16 %v2102, %v2101
        %v2106 = vsel %vm434, %v2103, 0
        %v2109 = vsel %vm434, %v2104, 0
        %2111 = vmatprep.subr.bf16.mxu0 0
        %2112 = vmatpush1.bf16.msra.mxu0 0
        %2113 = vmatprep.subr.bf16.mxu0 0
        %2114 = vmatpush1.bf16.msra.mxu0 0
        %2115 = vmatprep.subr.bf16.mxu0 0
        %2116 = vmatpush1.bf16.msra.mxu0 0
        %2117 = vmatprep.subr.bf16.mxu0 0
        %2118 = vmatpush1.bf16.msra.mxu0 0
        %2119 = vmatprep.subr.bf16.mxu0 0
        %2120 = vmatpush1.bf16.msra.mxu0 0
        %2121 = vmatprep.subr.bf16.mxu0 0
        %2122 = vmatpush1.bf16.msra.mxu0 0
        %2123 = vmatprep.subr.bf16.mxu0 %v2089
        %2124 = vmatpush1.bf16.msra.mxu0 %v2088
        %2125 = vmatprep.subr.bf16.mxu0 %v2087
        %2126 = vmatpush1.bf16.msra.mxu0 %v2086
        %2127 = vmatprep.subr.bf16.mxu0 0
        %2128 = vmatpush2.bf16.msra.mxu0 0
        %2129 = vmatprep.subr.bf16.mxu0 0
        %2130 = vmatpush2.bf16.msra.mxu0 0
        %2131 = vmatprep.subr.bf16.mxu0 0
        %2132 = vmatpush2.bf16.msra.mxu0 0
        %2133 = vmatprep.subr.bf16.mxu0 0
        %2134 = vmatpush2.bf16.msra.mxu0 0
        %2135 = vmatprep.subr.bf16.mxu0 0
        %2136 = vmatpush2.bf16.msra.mxu0 0
        %2137 = vmatprep.subr.bf16.mxu0 0
        %2138 = vmatpush2.bf16.msra.mxu0 0
        %2139 = vmatprep.subr.bf16.mxu0 0
        %2140 = vmatpush2.bf16.msra.mxu0 0
        %2141 = vmatprep.subr.bf16.mxu0 0
        %2142 = vmatpush2.bf16.msra.mxu0 0
        %2143 = vmatprep.mubr.bf16.mxu0 0
        %2144 = vmatmul.mubr.bf16.gmra.mxu0 %v2106
        %v2145 = vpop.f32.mrf.mxu0
        %v2146 = vadd.f32 0.0, %v2145
        %v2147 = vpop.f32.mrf.mxu0
        %v2148 = vadd.f32 0.0, %v2147
        %v2149 = vpop.f32.mrf.mxu0
        %v2150 = vadd.f32 0.0, %v2149
        %v2151 = vpop.f32.mrf.mxu0
        %v2152 = vadd.f32 0.0, %v2151
        %2153 = vmatprep.mubr.bf16.mxu0 0
        %2154 = vmatmul.mubr.bf16.gmra.mxu0 %v2109
        %v2155 = vpop.f32.mrf.mxu0
        %v2156 = vadd.f32 0.0, %v2155
        %v2157 = vpop.f32.mrf.mxu0
        %v2158 = vadd.f32 0.0, %v2157
        %v2159 = vpop.f32.mrf.mxu0
        %v2160 = vadd.f32 0.0, %v2159
        %v2161 = vpop.f32.mrf.mxu0
        %v2162 = vadd.f32 0.0, %v2161
        %2163 = vdwg.mxu0
        %v2164 = vadd.f32 %v2036, %v2146
        %v2165 = vadd.f32 %v2038, %v2148
        %v2166 = vadd.f32 %v2040, %v2150
        %v2167 = vadd.f32 %v2042, %v2152
        %v2168 = vadd.f32 %v2046, %v2156
        %v2169 = vadd.f32 %v2048, %v2158
        %v2170 = vadd.f32 %v2050, %v2160
        %v2171 = vadd.f32 %v2052, %v2162
        %2172 = vrot.lane.b32.xlu0 %v1859, 15
        %v2173 = vpop.permute.xlu0 %2172
        %2174 = vrot.lane.b32.xlu0 %v1861, 15
        %v2175 = vpop.permute.xlu0 %2174
        %2176 = vrot.lane.b32.xlu0 %v1863, 15
        %v2177 = vpop.permute.xlu0 %2176
        %2178 = vrot.lane.b32.xlu0 %v1865, 15
        %v2179 = vpop.permute.xlu0 %2178
        %2180 = vrot.lane.b32.xlu0 %v1860, 15
        %v2181 = vpop.permute.xlu0 %2180
        %2182 = vrot.lane.b32.xlu0 %v1862, 15
        %v2183 = vpop.permute.xlu0 %2182
        %2184 = vrot.lane.b32.xlu0 %v1864, 15
        %v2185 = vpop.permute.xlu0 %2184
        %2186 = vrot.lane.b32.xlu0 %v1866, 15
        %v2187 = vpop.permute.xlu0 %2186
        %v2188 = vsel %vm808, %v2173, %v2181
        %v2189 = vsel %vm808, %v2175, %v2183
        %v2190 = vsel %vm808, %v2177, %v2185
        %v2191 = vsel %vm808, %v2179, %v2187
        %v2192 = vsel %vm808, %v2181, %v2173
        %v2193 = vsel %vm808, %v2183, %v2175
        %v2194 = vsel %vm808, %v2185, %v2177
        %v2195 = vsel %vm808, %v2187, %v2179
        %v2196 = vsel %vm350, %v2192, 0.0
        %v2197 = vsel %vm351, %v2188, 0.0
        %v2198 = vsel %vm350, %v2193, 0.0
        %v2199 = vsel %vm351, %v2189, 0.0
        %v2200 = vsel %vm350, %v2194, 0.0
        %v2201 = vsel %vm351, %v2190, 0.0
        %v2202 = vsel %vm350, %v2195, 0.0
        %v2203 = vsel %vm351, %v2191, 0.0
        %v2204 = vpack.c.bf16 %v2198, %v2196
        %v2205 = vpack.c.bf16 %v2199, %v2197
        %v2206 = vpack.c.bf16 %v2202, %v2200
        %v2207 = vpack.c.bf16 %v2203, %v2201
        %s2208 = scalar_lea.vmem [#allocation6], 32
        %v2209 = vld [vmem:[%s2208] sm:$0xf]
        %v2210 = vld [vmem:[%s2208 + $0x4] sm:$0xf]
        %v2211 = vld [vmem:[%s2208 + $0x8] sm:$0xf]
        %v2212 = vld [vmem:[%s2208 + $0xc] sm:$0xf]
        %v2217 = vunpack.c.l.b16 %v2209
        %v2218 = vunpack.c.l.b16 %v2210
        %v2219 = vunpack.c.l.b16 %v2211
        %v2220 = vunpack.c.l.b16 %v2212
        %v2221 = vpack.c.b16 %v2218, %v2217
        %v2222 = vpack.c.b16 %v2220, %v2219
        %v2224 = vsel %vm434, %v2221, 0
        %v2227 = vsel %vm434, %v2222, 0
        %2229 = vmatprep.subr.bf16.mxu0 0
        %2230 = vmatpush1.bf16.msra.mxu0 0
        %2231 = vmatprep.subr.bf16.mxu0 0
        %2232 = vmatpush1.bf16.msra.mxu0 0
        %2233 = vmatprep.subr.bf16.mxu0 0
        %2234 = vmatpush1.bf16.msra.mxu0 0
        %2235 = vmatprep.subr.bf16.mxu0 0
        %2236 = vmatpush1.bf16.msra.mxu0 0
        %2237 = vmatprep.subr.bf16.mxu0 0
        %2238 = vmatpush1.bf16.msra.mxu0 0
        %2239 = vmatprep.subr.bf16.mxu0 0
        %2240 = vmatpush1.bf16.msra.mxu0 0
        %2241 = vmatprep.subr.bf16.mxu0 %v2207
        %2242 = vmatpush1.bf16.msra.mxu0 %v2206
        %2243 = vmatprep.subr.bf16.mxu0 %v2205
        %2244 = vmatpush1.bf16.msra.mxu0 %v2204
        %2245 = vmatprep.subr.bf16.mxu0 0
        %2246 = vmatpush2.bf16.msra.mxu0 0
        %2247 = vmatprep.subr.bf16.mxu0 0
        %2248 = vmatpush2.bf16.msra.mxu0 0
        %2249 = vmatprep.subr.bf16.mxu0 0
        %2250 = vmatpush2.bf16.msra.mxu0 0
        %2251 = vmatprep.subr.bf16.mxu0 0
        %2252 = vmatpush2.bf16.msra.mxu0 0
        %2253 = vmatprep.subr.bf16.mxu0 0
        %2254 = vmatpush2.bf16.msra.mxu0 0
        %2255 = vmatprep.subr.bf16.mxu0 0
        %2256 = vmatpush2.bf16.msra.mxu0 0
        %2257 = vmatprep.subr.bf16.mxu0 0
        %2258 = vmatpush2.bf16.msra.mxu0 0
        %2259 = vmatprep.subr.bf16.mxu0 0
        %2260 = vmatpush2.bf16.msra.mxu0 0
        %2261 = vmatprep.mubr.bf16.mxu0 0
        %2262 = vmatmul.mubr.bf16.gmra.mxu0 %v2224
        %v2263 = vpop.f32.mrf.mxu0
        %v2264 = vadd.f32 0.0, %v2263
        %v2265 = vpop.f32.mrf.mxu0
        %v2266 = vadd.f32 0.0, %v2265
        %v2267 = vpop.f32.mrf.mxu0
        %v2268 = vadd.f32 0.0, %v2267
        %v2269 = vpop.f32.mrf.mxu0
        %v2270 = vadd.f32 0.0, %v2269
        %2271 = vmatprep.mubr.bf16.mxu0 0
        %2272 = vmatmul.mubr.bf16.gmra.mxu0 %v2227
        %v2273 = vpop.f32.mrf.mxu0
        %v2274 = vadd.f32 0.0, %v2273
        %v2275 = vpop.f32.mrf.mxu0
        %v2276 = vadd.f32 0.0, %v2275
        %v2277 = vpop.f32.mrf.mxu0
        %v2278 = vadd.f32 0.0, %v2277
        %v2279 = vpop.f32.mrf.mxu0
        %v2280 = vadd.f32 0.0, %v2279
        %2281 = vdwg.mxu0
        %v2282 = vadd.f32 %v2164, %v2264
        %v2283 = vadd.f32 %v2165, %v2266
        %v2284 = vadd.f32 %v2166, %v2268
        %v2285 = vadd.f32 %v2167, %v2270
        %v2286 = vadd.f32 %v2168, %v2274
        %v2287 = vadd.f32 %v2169, %v2276
        %v2288 = vadd.f32 %v2170, %v2278
        %v2289 = vadd.f32 %v2171, %v2280
        %2290 = vrot.lane.b32.xlu0 %v1859, 1
        %v2291 = vpop.permute.xlu0 %2290
        %2292 = vrot.lane.b32.xlu0 %v1861, 1
        %v2293 = vpop.permute.xlu0 %2292
        %2294 = vrot.lane.b32.xlu0 %v1863, 1
        %v2295 = vpop.permute.xlu0 %2294
        %2296 = vrot.lane.b32.xlu0 %v1865, 1
        %v2297 = vpop.permute.xlu0 %2296
        %2298 = vrot.lane.b32.xlu0 %v1860, 1
        %v2299 = vpop.permute.xlu0 %2298
        %2300 = vrot.lane.b32.xlu0 %v1862, 1
        %v2301 = vpop.permute.xlu0 %2300
        %2302 = vrot.lane.b32.xlu0 %v1864, 1
        %v2303 = vpop.permute.xlu0 %2302
        %2304 = vrot.lane.b32.xlu0 %v1866, 1
        %v2305 = vpop.permute.xlu0 %2304
        %v2306 = vsel %vm975, %v2291, %v2299
        %v2307 = vsel %vm975, %v2293, %v2301
        %v2308 = vsel %vm975, %v2295, %v2303
        %v2309 = vsel %vm975, %v2297, %v2305
        %v2310 = vsel %vm975, %v2299, %v2291
        %v2311 = vsel %vm975, %v2301, %v2293
        %v2312 = vsel %vm975, %v2303, %v2295
        %v2313 = vsel %vm975, %v2305, %v2297
        %v2314 = vsel %vm344, %v2310, 0.0
        %v2315 = vsel %vm345, %v2306, 0.0
        %v2316 = vsel %vm344, %v2311, 0.0
        %v2317 = vsel %vm345, %v2307, 0.0
        %v2318 = vsel %vm344, %v2312, 0.0
        %v2319 = vsel %vm345, %v2308, 0.0
        %v2320 = vsel %vm344, %v2313, 0.0
        %v2321 = vsel %vm345, %v2309, 0.0
        %v2322 = vpack.c.bf16 %v2316, %v2314
        %v2323 = vpack.c.bf16 %v2317, %v2315
        %v2324 = vpack.c.bf16 %v2320, %v2318
        %v2325 = vpack.c.bf16 %v2321, %v2319
        %s2326 = scalar_lea.vmem [#allocation6], 48
        %v2327 = vld [vmem:[%s2326] sm:$0xf]
        %v2328 = vld [vmem:[%s2326 + $0x4] sm:$0xf]
        %v2329 = vld [vmem:[%s2326 + $0x8] sm:$0xf]
        %v2330 = vld [vmem:[%s2326 + $0xc] sm:$0xf]
        %v2335 = vunpack.c.l.b16 %v2327
        %v2336 = vunpack.c.l.b16 %v2328
        %v2337 = vunpack.c.l.b16 %v2329
        %v2338 = vunpack.c.l.b16 %v2330
        %v2339 = vpack.c.b16 %v2336, %v2335
        %v2340 = vpack.c.b16 %v2338, %v2337
        %v2342 = vsel %vm434, %v2339, 0
        %v2345 = vsel %vm434, %v2340, 0
        %2347 = vmatprep.subr.bf16.mxu0 0
        %2348 = vmatpush1.bf16.msra.mxu0 0
        %2349 = vmatprep.subr.bf16.mxu0 0
        %2350 = vmatpush1.bf16.msra.mxu0 0
        %2351 = vmatprep.subr.bf16.mxu0 0
        %2352 = vmatpush1.bf16.msra.mxu0 0
        %2353 = vmatprep.subr.bf16.mxu0 0
        %2354 = vmatpush1.bf16.msra.mxu0 0
        %2355 = vmatprep.subr.bf16.mxu0 0
        %2356 = vmatpush1.bf16.msra.mxu0 0
        %2357 = vmatprep.subr.bf16.mxu0 0
        %2358 = vmatpush1.bf16.msra.mxu0 0
        %2359 = vmatprep.subr.bf16.mxu0 %v2325
        %2360 = vmatpush1.bf16.msra.mxu0 %v2324
        %2361 = vmatprep.subr.bf16.mxu0 %v2323
        %2362 = vmatpush1.bf16.msra.mxu0 %v2322
        %2363 = vmatprep.subr.bf16.mxu0 0
        %2364 = vmatpush2.bf16.msra.mxu0 0
        %2365 = vmatprep.subr.bf16.mxu0 0
        %2366 = vmatpush2.bf16.msra.mxu0 0
        %2367 = vmatprep.subr.bf16.mxu0 0
        %2368 = vmatpush2.bf16.msra.mxu0 0
        %2369 = vmatprep.subr.bf16.mxu0 0
        %2370 = vmatpush2.bf16.msra.mxu0 0
        %2371 = vmatprep.subr.bf16.mxu0 0
        %2372 = vmatpush2.bf16.msra.mxu0 0
        %2373 = vmatprep.subr.bf16.mxu0 0
        %2374 = vmatpush2.bf16.msra.mxu0 0
        %2375 = vmatprep.subr.bf16.mxu0 0
        %2376 = vmatpush2.bf16.msra.mxu0 0
        %2377 = vmatprep.subr.bf16.mxu0 0
        %2378 = vmatpush2.bf16.msra.mxu0 0
        %2379 = vmatprep.mubr.bf16.mxu0 0
        %2380 = vmatmul.mubr.bf16.gmra.mxu0 %v2342
        %v2381 = vpop.f32.mrf.mxu0
        %v2382 = vadd.f32 0.0, %v2381
        %v2383 = vpop.f32.mrf.mxu0
        %v2384 = vadd.f32 0.0, %v2383
        %v2385 = vpop.f32.mrf.mxu0
        %v2386 = vadd.f32 0.0, %v2385
        %v2387 = vpop.f32.mrf.mxu0
        %v2388 = vadd.f32 0.0, %v2387
        %2389 = vmatprep.mubr.bf16.mxu0 0
        %2390 = vmatmul.mubr.bf16.gmra.mxu0 %v2345
        %v2391 = vpop.f32.mrf.mxu0
        %v2392 = vadd.f32 0.0, %v2391
        %v2393 = vpop.f32.mrf.mxu0
        %v2394 = vadd.f32 0.0, %v2393
        %v2395 = vpop.f32.mrf.mxu0
        %v2396 = vadd.f32 0.0, %v2395
        %v2397 = vpop.f32.mrf.mxu0
        %v2398 = vadd.f32 0.0, %v2397
        %2399 = vdwg.mxu0
        %v2400 = vadd.f32 %v2282, %v2382
        %v2401 = vadd.f32 %v2283, %v2384
        %v2402 = vadd.f32 %v2284, %v2386
        %v2403 = vadd.f32 %v2285, %v2388
        %v2404 = vadd.f32 %v2286, %v2392
        %v2405 = vadd.f32 %v2287, %v2394
        %v2406 = vadd.f32 %v2288, %v2396
        %v2407 = vadd.f32 %v2289, %v2398
        %2408 = vrot.lane.b32.xlu0 %v1859, 127
        %v2409 = vpop.permute.xlu0 %2408
        %2410 = vrot.lane.b32.xlu0 %v1861, 127
        %v2411 = vpop.permute.xlu0 %2410
        %2412 = vrot.lane.b32.xlu0 %v1863, 127
        %v2413 = vpop.permute.xlu0 %2412
        %2414 = vrot.lane.b32.xlu0 %v1865, 127
        %v2415 = vpop.permute.xlu0 %2414
        %2416 = vrot.lane.b32.xlu0 %v1860, 127
        %v2417 = vpop.permute.xlu0 %2416
        %2418 = vrot.lane.b32.xlu0 %v1862, 127
        %v2419 = vpop.permute.xlu0 %2418
        %2420 = vrot.lane.b32.xlu0 %v1864, 127
        %v2421 = vpop.permute.xlu0 %2420
        %2422 = vrot.lane.b32.xlu0 %v1866, 127
        %v2423 = vpop.permute.xlu0 %2422
        %v2424 = vsel %vm1142, %v2409, %v2417
        %v2425 = vsel %vm1142, %v2411, %v2419
        %v2426 = vsel %vm1142, %v2413, %v2421
        %v2427 = vsel %vm1142, %v2415, %v2423
        %v2428 = vsel %vm1142, %v2417, %v2409
        %v2429 = vsel %vm1142, %v2419, %v2411
        %v2430 = vsel %vm1142, %v2421, %v2413
        %v2431 = vsel %vm1142, %v2423, %v2415
        %v2432 = vsel %vm346, %v2424, 0.0
        %v2433 = vsel %vm347, %v2428, 0.0
        %v2434 = vsel %vm346, %v2425, 0.0
        %v2435 = vsel %vm347, %v2429, 0.0
        %v2436 = vsel %vm346, %v2426, 0.0
        %v2437 = vsel %vm347, %v2430, 0.0
        %v2438 = vsel %vm346, %v2427, 0.0
        %v2439 = vsel %vm347, %v2431, 0.0
        %v2440 = vpack.c.bf16 %v2434, %v2432
        %v2441 = vpack.c.bf16 %v2435, %v2433
        %v2442 = vpack.c.bf16 %v2438, %v2436
        %v2443 = vpack.c.bf16 %v2439, %v2437
        %s2444 = scalar_lea.vmem [#allocation6], 80
        %v2445 = vld [vmem:[%s2444] sm:$0xf]
        %v2446 = vld [vmem:[%s2444 + $0x4] sm:$0xf]
        %v2447 = vld [vmem:[%s2444 + $0x8] sm:$0xf]
        %v2448 = vld [vmem:[%s2444 + $0xc] sm:$0xf]
        %v2453 = vunpack.c.l.b16 %v2445
        %v2454 = vunpack.c.l.b16 %v2446
        %v2455 = vunpack.c.l.b16 %v2447
        %v2456 = vunpack.c.l.b16 %v2448
        %v2457 = vpack.c.b16 %v2454, %v2453
        %v2458 = vpack.c.b16 %v2456, %v2455
        %v2460 = vsel %vm434, %v2457, 0
        %v2463 = vsel %vm434, %v2458, 0
        %2465 = vmatprep.subr.bf16.mxu0 0
        %2466 = vmatpush1.bf16.msra.mxu0 0
        %2467 = vmatprep.subr.bf16.mxu0 0
        %2468 = vmatpush1.bf16.msra.mxu0 0
        %2469 = vmatprep.subr.bf16.mxu0 0
        %2470 = vmatpush1.bf16.msra.mxu0 0
        %2471 = vmatprep.subr.bf16.mxu0 0
        %2472 = vmatpush1.bf16.msra.mxu0 0
        %2473 = vmatprep.subr.bf16.mxu0 0
        %2474 = vmatpush1.bf16.msra.mxu0 0
        %2475 = vmatprep.subr.bf16.mxu0 0
        %2476 = vmatpush1.bf16.msra.mxu0 0
        %2477 = vmatprep.subr.bf16.mxu0 %v2443
        %2478 = vmatpush1.bf16.msra.mxu0 %v2442
        %2479 = vmatprep.subr.bf16.mxu0 %v2441
        %2480 = vmatpush1.bf16.msra.mxu0 %v2440
        %2481 = vmatprep.subr.bf16.mxu0 0
        %2482 = vmatpush2.bf16.msra.mxu0 0
        %2483 = vmatprep.subr.bf16.mxu0 0
        %2484 = vmatpush2.bf16.msra.mxu0 0
        %2485 = vmatprep.subr.bf16.mxu0 0
        %2486 = vmatpush2.bf16.msra.mxu0 0
        %2487 = vmatprep.subr.bf16.mxu0 0
        %2488 = vmatpush2.bf16.msra.mxu0 0
        %2489 = vmatprep.subr.bf16.mxu0 0
        %2490 = vmatpush2.bf16.msra.mxu0 0
        %2491 = vmatprep.subr.bf16.mxu0 0
        %2492 = vmatpush2.bf16.msra.mxu0 0
        %2493 = vmatprep.subr.bf16.mxu0 0
        %2494 = vmatpush2.bf16.msra.mxu0 0
        %2495 = vmatprep.subr.bf16.mxu0 0
        %2496 = vmatpush2.bf16.msra.mxu0 0
        %2497 = vmatprep.mubr.bf16.mxu0 0
        %2498 = vmatmul.mubr.bf16.gmra.mxu0 %v2460
        %v2499 = vpop.f32.mrf.mxu0
        %v2500 = vadd.f32 0.0, %v2499
        %v2501 = vpop.f32.mrf.mxu0
        %v2502 = vadd.f32 0.0, %v2501
        %v2503 = vpop.f32.mrf.mxu0
        %v2504 = vadd.f32 0.0, %v2503
        %v2505 = vpop.f32.mrf.mxu0
        %v2506 = vadd.f32 0.0, %v2505
        %2507 = vmatprep.mubr.bf16.mxu0 0
        %2508 = vmatmul.mubr.bf16.gmra.mxu0 %v2463
        %v2509 = vpop.f32.mrf.mxu0
        %v2510 = vadd.f32 0.0, %v2509
        %v2511 = vpop.f32.mrf.mxu0
        %v2512 = vadd.f32 0.0, %v2511
        %v2513 = vpop.f32.mrf.mxu0
        %v2514 = vadd.f32 0.0, %v2513
        %v2515 = vpop.f32.mrf.mxu0
        %v2516 = vadd.f32 0.0, %v2515
        %2517 = vdwg.mxu0
        %v2518 = vadd.f32 %v2400, %v2500
        %v2519 = vadd.f32 %v2401, %v2502
        %v2520 = vadd.f32 %v2402, %v2504
        %v2521 = vadd.f32 %v2403, %v2506
        %v2522 = vadd.f32 %v2404, %v2510
        %v2523 = vadd.f32 %v2405, %v2512
        %v2524 = vadd.f32 %v2406, %v2514
        %v2525 = vadd.f32 %v2407, %v2516
        %2526 = vrot.lane.b32.xlu0 %v1859, 113
        %v2527 = vpop.permute.xlu0 %2526
        %2528 = vrot.lane.b32.xlu0 %v1861, 113
        %v2529 = vpop.permute.xlu0 %2528
        %2530 = vrot.lane.b32.xlu0 %v1863, 113
        %v2531 = vpop.permute.xlu0 %2530
        %2532 = vrot.lane.b32.xlu0 %v1865, 113
        %v2533 = vpop.permute.xlu0 %2532
        %2534 = vrot.lane.b32.xlu0 %v1860, 113
        %v2535 = vpop.permute.xlu0 %2534
        %2536 = vrot.lane.b32.xlu0 %v1862, 113
        %v2537 = vpop.permute.xlu0 %2536
        %2538 = vrot.lane.b32.xlu0 %v1864, 113
        %v2539 = vpop.permute.xlu0 %2538
        %2540 = vrot.lane.b32.xlu0 %v1866, 113
        %v2541 = vpop.permute.xlu0 %2540
        %v2542 = vsel %vm1309, %v2527, %v2535
        %v2543 = vsel %vm1309, %v2529, %v2537
        %v2544 = vsel %vm1309, %v2531, %v2539
        %v2545 = vsel %vm1309, %v2533, %v2541
        %v2546 = vsel %vm1309, %v2535, %v2527
        %v2547 = vsel %vm1309, %v2537, %v2529
        %v2548 = vsel %vm1309, %v2539, %v2531
        %v2549 = vsel %vm1309, %v2541, %v2533
        %v2550 = vsel %vm352, %v2542, 0.0
        %v2551 = vsel %vm353, %v2546, 0.0
        %v2552 = vsel %vm352, %v2543, 0.0
        %v2553 = vsel %vm353, %v2547, 0.0
        %v2554 = vsel %vm352, %v2544, 0.0
        %v2555 = vsel %vm353, %v2548, 0.0
        %v2556 = vsel %vm352, %v2545, 0.0
        %v2557 = vsel %vm353, %v2549, 0.0
        %v2558 = vpack.c.bf16 %v2552, %v2550
        %v2559 = vpack.c.bf16 %v2553, %v2551
        %v2560 = vpack.c.bf16 %v2556, %v2554
        %v2561 = vpack.c.bf16 %v2557, %v2555
        %s2562 = scalar_lea.vmem [#allocation6], 96
        %v2563 = vld [vmem:[%s2562] sm:$0xf]
        %v2564 = vld [vmem:[%s2562 + $0x4] sm:$0xf]
        %v2565 = vld [vmem:[%s2562 + $0x8] sm:$0xf]
        %v2566 = vld [vmem:[%s2562 + $0xc] sm:$0xf]
        %v2571 = vunpack.c.l.b16 %v2563
        %v2572 = vunpack.c.l.b16 %v2564
        %v2573 = vunpack.c.l.b16 %v2565
        %v2574 = vunpack.c.l.b16 %v2566
        %v2575 = vpack.c.b16 %v2572, %v2571
        %v2576 = vpack.c.b16 %v2574, %v2573
        %v2578 = vsel %vm434, %v2575, 0
        %v2581 = vsel %vm434, %v2576, 0
        %2583 = vmatprep.subr.bf16.mxu0 0
        %2584 = vmatpush1.bf16.msra.mxu0 0
        %2585 = vmatprep.subr.bf16.mxu0 0
        %2586 = vmatpush1.bf16.msra.mxu0 0
        %2587 = vmatprep.subr.bf16.mxu0 0
        %2588 = vmatpush1.bf16.msra.mxu0 0
        %2589 = vmatprep.subr.bf16.mxu0 0
        %2590 = vmatpush1.bf16.msra.mxu0 0
        %2591 = vmatprep.subr.bf16.mxu0 0
        %2592 = vmatpush1.bf16.msra.mxu0 0
        %2593 = vmatprep.subr.bf16.mxu0 0
        %2594 = vmatpush1.bf16.msra.mxu0 0
        %2595 = vmatprep.subr.bf16.mxu0 %v2561
        %2596 = vmatpush1.bf16.msra.mxu0 %v2560
        %2597 = vmatprep.subr.bf16.mxu0 %v2559
        %2598 = vmatpush1.bf16.msra.mxu0 %v2558
        %2599 = vmatprep.subr.bf16.mxu0 0
        %2600 = vmatpush2.bf16.msra.mxu0 0
        %2601 = vmatprep.subr.bf16.mxu0 0
        %2602 = vmatpush2.bf16.msra.mxu0 0
        %2603 = vmatprep.subr.bf16.mxu0 0
        %2604 = vmatpush2.bf16.msra.mxu0 0
        %2605 = vmatprep.subr.bf16.mxu0 0
        %2606 = vmatpush2.bf16.msra.mxu0 0
        %2607 = vmatprep.subr.bf16.mxu0 0
        %2608 = vmatpush2.bf16.msra.mxu0 0
        %2609 = vmatprep.subr.bf16.mxu0 0
        %2610 = vmatpush2.bf16.msra.mxu0 0
        %2611 = vmatprep.subr.bf16.mxu0 0
        %2612 = vmatpush2.bf16.msra.mxu0 0
        %2613 = vmatprep.subr.bf16.mxu0 0
        %2614 = vmatpush2.bf16.msra.mxu0 0
        %2615 = vmatprep.mubr.bf16.mxu0 0
        %2616 = vmatmul.mubr.bf16.gmra.mxu0 %v2578
        %v2617 = vpop.f32.mrf.mxu0
        %v2618 = vadd.f32 0.0, %v2617
        %v2619 = vpop.f32.mrf.mxu0
        %v2620 = vadd.f32 0.0, %v2619
        %v2621 = vpop.f32.mrf.mxu0
        %v2622 = vadd.f32 0.0, %v2621
        %v2623 = vpop.f32.mrf.mxu0
        %v2624 = vadd.f32 0.0, %v2623
        %2625 = vmatprep.mubr.bf16.mxu0 0
        %2626 = vmatmul.mubr.bf16.gmra.mxu0 %v2581
        %v2627 = vpop.f32.mrf.mxu0
        %v2628 = vadd.f32 0.0, %v2627
        %v2629 = vpop.f32.mrf.mxu0
        %v2630 = vadd.f32 0.0, %v2629
        %v2631 = vpop.f32.mrf.mxu0
        %v2632 = vadd.f32 0.0, %v2631
        %v2633 = vpop.f32.mrf.mxu0
        %v2634 = vadd.f32 0.0, %v2633
        %2635 = vdwg.mxu0
        %v2636 = vadd.f32 %v2518, %v2618
        %v2637 = vadd.f32 %v2519, %v2620
        %v2638 = vadd.f32 %v2520, %v2622
        %v2639 = vadd.f32 %v2521, %v2624
        %v2640 = vadd.f32 %v2522, %v2628
        %v2641 = vadd.f32 %v2523, %v2630
        %v2642 = vadd.f32 %v2524, %v2632
        %v2643 = vadd.f32 %v2525, %v2634
        %2644 = vrot.lane.b32.xlu0 %v1859, 112
        %v2645 = vpop.permute.xlu0 %2644
        %2646 = vrot.lane.b32.xlu0 %v1861, 112
        %v2647 = vpop.permute.xlu0 %2646
        %2648 = vrot.lane.b32.xlu0 %v1863, 112
        %v2649 = vpop.permute.xlu0 %2648
        %2650 = vrot.lane.b32.xlu0 %v1865, 112
        %v2651 = vpop.permute.xlu0 %2650
        %2652 = vrot.lane.b32.xlu0 %v1860, 112
        %v2653 = vpop.permute.xlu0 %2652
        %2654 = vrot.lane.b32.xlu0 %v1862, 112
        %v2655 = vpop.permute.xlu0 %2654
        %2656 = vrot.lane.b32.xlu0 %v1864, 112
        %v2657 = vpop.permute.xlu0 %2656
        %2658 = vrot.lane.b32.xlu0 %v1866, 112
        %v2659 = vpop.permute.xlu0 %2658
        %v2660 = vsel %vm1476, %v2645, %v2653
        %v2661 = vsel %vm1476, %v2647, %v2655
        %v2662 = vsel %vm1476, %v2649, %v2657
        %v2663 = vsel %vm1476, %v2651, %v2659
        %v2664 = vsel %vm1476, %v2653, %v2645
        %v2665 = vsel %vm1476, %v2655, %v2647
        %v2666 = vsel %vm1476, %v2657, %v2649
        %v2667 = vsel %vm1476, %v2659, %v2651
        %v2668 = vsel %vm342, %v2660, 0.0
        %v2669 = vsel %vm343, %v2664, 0.0
        %v2670 = vsel %vm342, %v2661, 0.0
        %v2671 = vsel %vm343, %v2665, 0.0
        %v2672 = vsel %vm342, %v2662, 0.0
        %v2673 = vsel %vm343, %v2666, 0.0
        %v2674 = vsel %vm342, %v2663, 0.0
        %v2675 = vsel %vm343, %v2667, 0.0
        %v2676 = vpack.c.bf16 %v2670, %v2668
        %v2677 = vpack.c.bf16 %v2671, %v2669
        %v2678 = vpack.c.bf16 %v2674, %v2672
        %v2679 = vpack.c.bf16 %v2675, %v2673
        %s2680 = scalar_lea.vmem [#allocation6], 112
        %v2681 = vld [vmem:[%s2680] sm:$0xf]
        %v2682 = vld [vmem:[%s2680 + $0x4] sm:$0xf]
        %v2683 = vld [vmem:[%s2680 + $0x8] sm:$0xf]
        %v2684 = vld [vmem:[%s2680 + $0xc] sm:$0xf]
        %v2689 = vunpack.c.l.b16 %v2681
        %v2690 = vunpack.c.l.b16 %v2682
        %v2691 = vunpack.c.l.b16 %v2683
        %v2692 = vunpack.c.l.b16 %v2684
        %v2693 = vpack.c.b16 %v2690, %v2689
        %v2694 = vpack.c.b16 %v2692, %v2691
        %v2696 = vsel %vm434, %v2693, 0
        %v2699 = vsel %vm434, %v2694, 0
        %2701 = vmatprep.subr.bf16.mxu0 0
        %2702 = vmatpush1.bf16.msra.mxu0 0
        %2703 = vmatprep.subr.bf16.mxu0 0
        %2704 = vmatpush1.bf16.msra.mxu0 0
        %2705 = vmatprep.subr.bf16.mxu0 0
        %2706 = vmatpush1.bf16.msra.mxu0 0
        %2707 = vmatprep.subr.bf16.mxu0 0
        %2708 = vmatpush1.bf16.msra.mxu0 0
        %2709 = vmatprep.subr.bf16.mxu0 0
        %2710 = vmatpush1.bf16.msra.mxu0 0
        %2711 = vmatprep.subr.bf16.mxu0 0
        %2712 = vmatpush1.bf16.msra.mxu0 0
        %2713 = vmatprep.subr.bf16.mxu0 %v2679
        %2714 = vmatpush1.bf16.msra.mxu0 %v2678
        %2715 = vmatprep.subr.bf16.mxu0 %v2677
        %2716 = vmatpush1.bf16.msra.mxu0 %v2676
        %2717 = vmatprep.subr.bf16.mxu0 0
        %2718 = vmatpush2.bf16.msra.mxu0 0
        %2719 = vmatprep.subr.bf16.mxu0 0
        %2720 = vmatpush2.bf16.msra.mxu0 0
        %2721 = vmatprep.subr.bf16.mxu0 0
        %2722 = vmatpush2.bf16.msra.mxu0 0
        %2723 = vmatprep.subr.bf16.mxu0 0
        %2724 = vmatpush2.bf16.msra.mxu0 0
        %2725 = vmatprep.subr.bf16.mxu0 0
        %2726 = vmatpush2.bf16.msra.mxu0 0
        %2727 = vmatprep.subr.bf16.mxu0 0
        %2728 = vmatpush2.bf16.msra.mxu0 0
        %2729 = vmatprep.subr.bf16.mxu0 0
        %2730 = vmatpush2.bf16.msra.mxu0 0
        %2731 = vmatprep.subr.bf16.mxu0 0
        %2732 = vmatpush2.bf16.msra.mxu0 0
        %2733 = vmatprep.mubr.bf16.mxu0 0
        %2734 = vmatmul.mubr.bf16.gmra.mxu0 %v2696
        %v2735 = vpop.f32.mrf.mxu0
        %v2736 = vadd.f32 0.0, %v2735
        %v2737 = vpop.f32.mrf.mxu0
        %v2738 = vadd.f32 0.0, %v2737
        %v2739 = vpop.f32.mrf.mxu0
        %v2740 = vadd.f32 0.0, %v2739
        %v2741 = vpop.f32.mrf.mxu0
        %v2742 = vadd.f32 0.0, %v2741
        %2743 = vmatprep.mubr.bf16.mxu0 0
        %2744 = vmatmul.mubr.bf16.gmra.mxu0 %v2699
        %v2745 = vpop.f32.mrf.mxu0
        %v2746 = vadd.f32 0.0, %v2745
        %v2747 = vpop.f32.mrf.mxu0
        %v2748 = vadd.f32 0.0, %v2747
        %v2749 = vpop.f32.mrf.mxu0
        %v2750 = vadd.f32 0.0, %v2749
        %v2751 = vpop.f32.mrf.mxu0
        %v2752 = vadd.f32 0.0, %v2751
        %2753 = vdwg.mxu0
        %v2754 = vadd.f32 %v2636, %v2736
        %v2755 = vadd.f32 %v2637, %v2738
        %v2756 = vadd.f32 %v2638, %v2740
        %v2757 = vadd.f32 %v2639, %v2742
        %v2758 = vadd.f32 %v2640, %v2746
        %v2759 = vadd.f32 %v2641, %v2748
        %v2760 = vadd.f32 %v2642, %v2750
        %v2761 = vadd.f32 %v2643, %v2752
        %2762 = vrot.lane.b32.xlu0 %v1859, 111
        %v2763 = vpop.permute.xlu0 %2762
        %2764 = vrot.lane.b32.xlu0 %v1861, 111
        %v2765 = vpop.permute.xlu0 %2764
        %2766 = vrot.lane.b32.xlu0 %v1863, 111
        %v2767 = vpop.permute.xlu0 %2766
        %2768 = vrot.lane.b32.xlu0 %v1865, 111
        %v2769 = vpop.permute.xlu0 %2768
        %2770 = vrot.lane.b32.xlu0 %v1860, 111
        %v2771 = vpop.permute.xlu0 %2770
        %2772 = vrot.lane.b32.xlu0 %v1862, 111
        %v2773 = vpop.permute.xlu0 %2772
        %2774 = vrot.lane.b32.xlu0 %v1864, 111
        %v2775 = vpop.permute.xlu0 %2774
        %2776 = vrot.lane.b32.xlu0 %v1866, 111
        %v2777 = vpop.permute.xlu0 %2776
        %v2778 = vsel %vm1643, %v2763, %v2771
        %v2779 = vsel %vm1643, %v2765, %v2773
        %v2780 = vsel %vm1643, %v2767, %v2775
        %v2781 = vsel %vm1643, %v2769, %v2777
        %v2782 = vsel %vm1643, %v2771, %v2763
        %v2783 = vsel %vm1643, %v2773, %v2765
        %v2784 = vsel %vm1643, %v2775, %v2767
        %v2785 = vsel %vm1643, %v2777, %v2769
        %v2786 = vsel %vm354, %v2778, 0.0
        %v2787 = vsel %vm355, %v2782, 0.0
        %v2788 = vsel %vm354, %v2779, 0.0
        %v2789 = vsel %vm355, %v2783, 0.0
        %v2790 = vsel %vm354, %v2780, 0.0
        %v2791 = vsel %vm355, %v2784, 0.0
        %v2792 = vsel %vm354, %v2781, 0.0
        %v2793 = vsel %vm355, %v2785, 0.0
        %v2794 = vpack.c.bf16 %v2788, %v2786
        %v2795 = vpack.c.bf16 %v2789, %v2787
        %v2796 = vpack.c.bf16 %v2792, %v2790
        %v2797 = vpack.c.bf16 %v2793, %v2791
        %s2798 = scalar_lea.vmem [#allocation6], 128
        %v2799 = vld [vmem:[%s2798] sm:$0xf]
        %v2800 = vld [vmem:[%s2798 + $0x4] sm:$0xf]
        %v2801 = vld [vmem:[%s2798 + $0x8] sm:$0xf]
        %v2802 = vld [vmem:[%s2798 + $0xc] sm:$0xf]
        %v2807 = vunpack.c.l.b16 %v2799
        %v2808 = vunpack.c.l.b16 %v2800
        %v2809 = vunpack.c.l.b16 %v2801
        %v2810 = vunpack.c.l.b16 %v2802
        %v2811 = vpack.c.b16 %v2808, %v2807
        %v2812 = vpack.c.b16 %v2810, %v2809
        %v2814 = vsel %vm434, %v2811, 0
        %v2817 = vsel %vm434, %v2812, 0
        %2819 = vmatprep.subr.bf16.mxu0 0
        %2820 = vmatpush1.bf16.msra.mxu0 0
        %2821 = vmatprep.subr.bf16.mxu0 0
        %2822 = vmatpush1.bf16.msra.mxu0 0
        %2823 = vmatprep.subr.bf16.mxu0 0
        %2824 = vmatpush1.bf16.msra.mxu0 0
        %2825 = vmatprep.subr.bf16.mxu0 0
        %2826 = vmatpush1.bf16.msra.mxu0 0
        %2827 = vmatprep.subr.bf16.mxu0 0
        %2828 = vmatpush1.bf16.msra.mxu0 0
        %2829 = vmatprep.subr.bf16.mxu0 0
        %2830 = vmatpush1.bf16.msra.mxu0 0
        %2831 = vmatprep.subr.bf16.mxu0 %v2797
        %2832 = vmatpush1.bf16.msra.mxu0 %v2796
        %2833 = vmatprep.subr.bf16.mxu0 %v2795
        %2834 = vmatpush1.bf16.msra.mxu0 %v2794
        %2835 = vmatprep.subr.bf16.mxu0 0
        %2836 = vmatpush2.bf16.msra.mxu0 0
        %2837 = vmatprep.subr.bf16.mxu0 0
        %2838 = vmatpush2.bf16.msra.mxu0 0
        %2839 = vmatprep.subr.bf16.mxu0 0
        %2840 = vmatpush2.bf16.msra.mxu0 0
        %2841 = vmatprep.subr.bf16.mxu0 0
        %2842 = vmatpush2.bf16.msra.mxu0 0
        %2843 = vmatprep.subr.bf16.mxu0 0
        %2844 = vmatpush2.bf16.msra.mxu0 0
        %2845 = vmatprep.subr.bf16.mxu0 0
        %2846 = vmatpush2.bf16.msra.mxu0 0
        %2847 = vmatprep.subr.bf16.mxu0 0
        %2848 = vmatpush2.bf16.msra.mxu0 0
        %2849 = vmatprep.subr.bf16.mxu0 0
        %2850 = vmatpush2.bf16.msra.mxu0 0
        %2851 = vmatprep.mubr.bf16.mxu0 0
        %2852 = vmatmul.mubr.bf16.gmra.mxu0 %v2814
        %v2853 = vpop.f32.mrf.mxu0
        %v2854 = vadd.f32 0.0, %v2853
        %v2855 = vpop.f32.mrf.mxu0
        %v2856 = vadd.f32 0.0, %v2855
        %v2857 = vpop.f32.mrf.mxu0
        %v2858 = vadd.f32 0.0, %v2857
        %v2859 = vpop.f32.mrf.mxu0
        %v2860 = vadd.f32 0.0, %v2859
        %2861 = vmatprep.mubr.bf16.mxu0 0
        %2862 = vmatmul.mubr.bf16.gmra.mxu0 %v2817
        %v2863 = vpop.f32.mrf.mxu0
        %v2864 = vadd.f32 0.0, %v2863
        %v2865 = vpop.f32.mrf.mxu0
        %v2866 = vadd.f32 0.0, %v2865
        %v2867 = vpop.f32.mrf.mxu0
        %v2868 = vadd.f32 0.0, %v2867
        %v2869 = vpop.f32.mrf.mxu0
        %v2870 = vadd.f32 0.0, %v2869
        %2871 = vdwg.mxu0
        %v2872 = vadd.f32 %v2754, %v2854
        %v2873 = vadd.f32 %v2755, %v2856
        %v2874 = vadd.f32 %v2756, %v2858
        %v2875 = vadd.f32 %v2757, %v2860
        %v2876 = vadd.f32 %v2758, %v2864
        %v2877 = vadd.f32 %v2759, %v2866
        %v2878 = vadd.f32 %v2760, %v2868
        %v2879 = vadd.f32 %v2761, %v2870
        %v2880 = vadd.f32 %v2872, %v305
        %v2881 = vadd.f32 %v2873, %v306
        %v2882 = vadd.f32 %v2874, %v307
        %v2883 = vadd.f32 %v2875, %v308
        %v2884 = vadd.f32 %v2876, %v309
        %v2885 = vadd.f32 %v2877, %v310
        %v2886 = vadd.f32 %v2878, %v311
        %v2887 = vadd.f32 %v2879, %v312
        %vm2888 = vcmp.ge.f32.partialorder %v2880, 0.0
        %vm2889 = vcmp.ge.f32.partialorder %v2881, 0.0
        %vm2890 = vcmp.ge.f32.partialorder %v2882, 0.0
        %vm2891 = vcmp.ge.f32.partialorder %v2883, 0.0
        %vm2892 = vcmp.ge.f32.partialorder %v2884, 0.0
        %vm2893 = vcmp.ge.f32.partialorder %v2885, 0.0
        %vm2894 = vcmp.ge.f32.partialorder %v2886, 0.0
        %vm2895 = vcmp.ge.f32.partialorder %v2887, 0.0
        %v2896 = vmul.f32 %v1826, %v2880
        %v2897 = vmul.f32 %v1826, %v2881
        %v2898 = vmul.f32 %v1826, %v2882
        %v2899 = vmul.f32 %v1826, %v2883
        %v2900 = vmul.f32 %v1826, %v2884
        %v2901 = vmul.f32 %v1826, %v2885
        %v2902 = vmul.f32 %v1826, %v2886
        %v2903 = vmul.f32 %v1826, %v2887
        %v2904 = vsel %vm2888, %v2880, %v2896
        %v2905 = vsel %vm2889, %v2881, %v2897
        %v2906 = vsel %vm2890, %v2882, %v2898
        %v2907 = vsel %vm2891, %v2883, %v2899
        %v2908 = vsel %vm2892, %v2884, %v2900
        %v2909 = vsel %vm2893, %v2885, %v2901
        %v2910 = vsel %vm2894, %v2886, %v2902
        %v2911 = vsel %vm2895, %v2887, %v2903
        %v2912 = vmul.f32 %v1851, %v281
        %v2913 = vmul.f32 %v1852, %v282
        %v2914 = vmul.f32 %v1853, %v283
        %v2915 = vmul.f32 %v1854, %v284
        %v2916 = vmul.f32 %v1855, %v285
        %v2917 = vmul.f32 %v1856, %v286
        %v2918 = vmul.f32 %v1857, %v287
        %v2919 = vmul.f32 %v1858, %v288
        %v2920 = vsub.f32 1.0, %v1851
        %v2921 = vsub.f32 1.0, %v1852
        %v2922 = vsub.f32 1.0, %v1853
        %v2923 = vsub.f32 1.0, %v1854
        %v2924 = vsub.f32 1.0, %v1855
        %v2925 = vsub.f32 1.0, %v1856
        %v2926 = vsub.f32 1.0, %v1857
        %v2927 = vsub.f32 1.0, %v1858
        %v2928 = vmul.f32 %v2920, %v2904
        %v2929 = vmul.f32 %v2921, %v2905
        %v2930 = vmul.f32 %v2922, %v2906
        %v2931 = vmul.f32 %v2923, %v2907
        %v2932 = vmul.f32 %v2924, %v2908
        %v2933 = vmul.f32 %v2925, %v2909
        %v2934 = vmul.f32 %v2926, %v2910
        %v2935 = vmul.f32 %v2927, %v2911
        %v2936 = vadd.f32 %v2912, %v2928
        %v2937 = vadd.f32 %v2913, %v2929
        %v2938 = vadd.f32 %v2914, %v2930
        %v2939 = vadd.f32 %v2915, %v2931
        %v2940 = vadd.f32 %v2916, %v2932
        %v2941 = vadd.f32 %v2917, %v2933
        %v2942 = vadd.f32 %v2918, %v2934
        %v2943 = vadd.f32 %v2919, %v2935
        %2944 = vst [vmem:[%s273] sm:$0xff] %v2936
        %2945 = vst [vmem:[%s273 + $0x8] sm:$0xff] %v2937
        %2946 = vst [vmem:[%s273 + $0x10] sm:$0xff] %v2938
        %2947 = vst [vmem:[%s273 + $0x18] sm:$0xff] %v2939
        %2948 = vst [vmem:[%s273 + $0x20] sm:$0xff] %v2940
        %2949 = vst [vmem:[%s273 + $0x28] sm:$0xff] %v2941
        %2950 = vst [vmem:[%s273 + $0x30] sm:$0xff] %v2942
        %2951 = vst [vmem:[%s273 + $0x38] sm:$0xff] %v2943
        %s2952 = sand.u32 %s147, 1
        %s2953 = scalar_lea.sflag [#allocation5], %s2952
        %s2954 = sand.u32 %s147, 1
        %s2955 = smul.addr %s2954, 64
        %s2956 = scalar_lea.vmem [#allocation8], %s2955
        // Predicated region
        $region49: #{tpu_custom_call.1} parent=39 // pred_check
          %p2957 = pneg %p157
        $region50: #{tpu_custom_call.1} parent=39 // pred_check_branch
          %2959 = sbr.rel (%p2957) target = $region52
        $region51: #{tpu_custom_call.1} parent=39 // pred_region
          %s2961 = ssub.s32 1024, 1024
          %2962 = vsyncadd %s2953, %s2961
          %s2963 = smul.addr %s24, 8
          %s2964 = smul.addr %s2963, 128
          %s2965 = scalar_lea.hbm %s5, %s2964
          %s2966 = sshll.u32 %s2956, 4
          %s2967 = int_to_ptr.vmem [resolvable:$true] %s2966
          %2972 = dma.vmem_to_hbm [thread:$0]  %s2967, 1024, %s2965, %s2953, 256, 256, 16
        $region52: #{tpu_custom_call.1} parent=39 // pred_fallthru
          _
      $region40: #{tpu_custom_call.1} parent=5 // pred_fallthru
        _
      %p2973 = scmp.le.s32.totalorder 2, %s19
      // Predicated region
      $region53: #{tpu_custom_call.1} parent=5 // pred_check
        %p2974 = pneg %p2973
      $region54: #{tpu_custom_call.1} parent=5 // pred_check_branch
        %2976 = sbr.rel (%p2974) target = $region56
      $region55: #{tpu_custom_call.1} parent=5 // pred_region
        %s2977 = ssub.s32 %s19, 2
        // Predicated region
        $region57: #{tpu_custom_call.1} parent=55 // pred_check
          %p2978 = pneg %p163
        $region58: #{tpu_custom_call.1} parent=55 // pred_check_branch
          %2980 = sbr.rel (%p2978) target = $region60
        $region59: #{tpu_custom_call.1} parent=55 // pred_region
          %s2981 = sand.u32 %s148, 1
          %s2982 = scalar_lea.sflag [#allocation5], %s2981
          %s2983 = sand.u32 %s148, 1
          %s2984 = smul.addr %s2983, 64
          %s2985 = scalar_lea.vmem [#allocation8], %s2984
          %2986 = dma.done %s2982, 1024
        $region60: #{tpu_custom_call.1} parent=55 // pred_fallthru
          _
      $region56: #{tpu_custom_call.1} parent=5 // pred_fallthru
        _
    $region6: #{tpu_custom_call.1} parent=1 // loop_footer
      %s23 = sadd.s32 1, %s19
    $region7: #{tpu_custom_call.1} parent=1 // loop_footer_branch
      %18 = sbr.rel target = $region3
    $region8: #{tpu_custom_call.1} parent=1 // loop_exit
      _
    %2987 = vsyncpa [#allocation4], 1
    %s2988 = scalar_lea.sflag [#allocation4], 1
    %2989 = vsyncpa %s2988, 1
    %2990 = vsyncpa [#allocation7], 1
    %2991 = vsyncpa [#allocation5], 1
    %s2992 = scalar_lea.sflag [#allocation5], 1
    %2993 = vsyncpa %s2992, 1

</llo_original>
